<compile_context>
chip_gen: v6e
topology: v6e:2x2x1
jax: 0.10.0
libtpu: 0.0.40
codegen_flags: <defaults>
</compile_context>

<pallas_src>
import functools

import jax
import jax.numpy as jnp
import numpy as np
from jax.experimental import pallas as pl
from jax.experimental.pallas import tpu as pltpu


def _tap_offsets(W):
    # 3x3 conv, padding=1: flat-spatial offset of each tap, t = ky*3 + kx.
    return [(ky - 1) * W + (kx - 1) for ky in range(3) for kx in range(3)]


def _window_offsets(W, d):
    # correlation windows, w = (dy+d)*(2d+1) + (dx+d).
    return [dy * W + dx for dy in range(-d, d + 1) for dx in range(-d, d + 1)]


def _make_corrnet_kernel(H, W, C, P, D, S, NB, d):
    """One grid step == NB batch elements packed along the lane axis."""
    HW = H * W
    L = NB * HW
    win_offs = _window_offsets(W, d)
    tap_offs = _tap_offsets(W)

    def kernel(img1_ref, img2_ref, cmask_ref, tmask_ref, wf_ref, w2t_ref,
               bias_ref, out_ref, corr_ref):
        img1 = img1_ref[...]                              # (C, L)
        img2 = img2_ref[...]                              # (C, L)

        # ---- correlation windows built in-kernel (roll + mask, no HBM windows) --
        # corr row w = mask_w * sum_c img1[c] * roll(img2[c], window offset).
        # Border / cross-image wraparound positions are zeroed by cmask.
        corr_ref[...] = jnp.zeros_like(corr_ref)          # also zeroes rows D..S-1
        for w, off in enumerate(win_offs):
            shifted = img2 if off == 0 else pltpu.roll(img2, (-off) % L, axis=1)
            row = jnp.sum(img1 * shifted, axis=0, keepdims=True)      # (1, L)
            if off != 0:
                row = row * cmask_ref[w:w + 1, :]
            corr_ref[w:w + 1, :] = row
        corr = corr_ref[...]                               # (S, L), rows D..S-1 == 0

        # ---- im2col for 3x3 / pad=1 built as values (no patches scratch) ------
        def patches(src):                                  # src: (rows, L), rows % 8 == 0
            blocks = []
            for t, off in enumerate(tap_offs):
                if off == 0:                               # centre tap: identity
                    blocks.append(src)
                else:
                    blocks.append(pltpu.roll(src, (-off) % L, axis=1)
                                  * tmask_ref[t:t + 1, :])
            return jnp.concatenate(blocks, axis=0)         # (9*rows, L)

        # ---- conv1 (3x3) + 1x1 downsample fused into one K = 9*S matmul --------
        fused = jnp.dot(wf_ref[...], patches(corr),
                        preferred_element_type=jnp.float32)            # (2P, L)
        y1 = jnp.maximum(fused[0:P, :] + bias_ref[:, 0:1], 0.0)        # ReLU(BN1(conv1))
        res = fused[P:2 * P, :]                                        # BNd(1x1) - bias

        # ---- conv2 (3x3): second K = 9*P matmul on y1 --------------------------
        y2 = jnp.dot(w2t_ref[...], patches(y1),
                     preferred_element_type=jnp.float32)               # (P, L)

        # out = ReLU(BN2(conv2(y1)) + BNd(downsample(corr)))
        out_ref[...] = jnp.maximum(y2 + res + bias_ref[:, 1:2], 0.0)

    return kernel


def fold_params(params, in_channels):
    """Fold BN scales + correlation 1/C into matmul weights.  Call once per params."""
    w1, w2, wd = params["w1"], params["w2"], params["wd"]
    s1, b1 = params["s1"], params["b1"]
    s2, b2 = params["s2"], params["b2"]
    sd, bd = params["sd"], params["bd"]
    D, P = w1.shape[2], w1.shape[3]
    S = -(-D // 8) * 8                           # per-tap corr-row stride (mult of 8)
    C = in_channels

    # conv1: (3,3,D,P) HWIO -> (P, 9, S) -> (P, 9S); BN1 scale and 1/C folded in.
    w1s = (jnp.transpose(w1, (3, 0, 1, 2)).reshape(P, 9, D)
           * (s1 / C)[:, None, None])
    w1s = jnp.pad(w1s, ((0, 0), (0, 0), (0, S - D)))
    # 1x1 downsample lives on the centre tap only (rows P:2P of the fused weight).
    wds = jnp.pad(wd.T * (sd / C)[:, None], ((0, 0), (0, S - D)))      # (P, S)
    wdf = jnp.zeros((P, 9, S), jnp.float32).at[:, 4, :].set(wds)
    wf = jnp.concatenate([w1s, wdf], axis=0).reshape(2 * P, 9 * S)

    # conv2: (3,3,P,P) HWIO -> (P, 9P); BN2 scale folded in.
    w2t = (jnp.transpose(w2, (3, 0, 1, 2)).reshape(P, 9, P)
           * s2[:, None, None]).reshape(P, 9 * P)

    biases = jnp.stack([b1, b2 + bd], axis=1)                           # (P, 2)
    return dict(wf=wf, w2t=w2t, biases=biases, P=P, D=D, S=S)


def _build_masks(H, W, d, NB):
    """Border-validity masks over the packed flat-spatial axis (numpy, trace-time)."""
    HW = H * W
    yy, xx = np.meshgrid(np.arange(H), np.arange(W), indexing="ij")

    def valid(dy, dx):
        ok = ((yy + dy >= 0) & (yy + dy < H) & (xx + dx >= 0) & (xx + dx < W))
        return ok.reshape(HW).astype(np.float32)

    cmask = np.stack([valid(dy, dx)
                      for dy in range(-d, d + 1) for dx in range(-d, d + 1)])
    tmask = np.stack([valid(ky - 1, kx - 1)
                      for ky in range(3) for kx in range(3)])
    return (jnp.asarray(np.tile(cmask, (1, NB))),
            jnp.asarray(np.tile(tmask, (1, NB))))


def _pick_batches_per_step(B, HW, max_lanes=2048):
    """Pack batches on the lane axis, but keep >= 2 grid steps (v7x has 2 TCs)."""
    nb = 1
    for cand in range(1, B + 1):
        if B % cand == 0 and B // cand >= 2 and cand * HW <= max_lanes:
            nb = cand
    return nb


def correlation_net_forward(img1_nchw, img2_nchw, folded, corr_dist,
                            batches_per_step=None):
    """NCHW in / NCHW out, matching the PyTorch module's interface."""
    img1 = img1_nchw.astype(jnp.float32)
    img2 = img2_nchw.astype(jnp.float32)
    B, C, H, W = img1.shape
    HW = H * W
    d = corr_dist
    P, D, S = folded["P"], folded["D"], folded["S"]

    NB = batches_per_step or _pick_batches_per_step(B, HW)
    G = B // NB
    L = NB * HW

    # Pack NB batch elements along the lane axis: (G, C, NB*HW).
    x1 = jnp.transpose(img1.reshape(G, NB, C, HW), (0, 2, 1, 3)).reshape(G, C, L)
    x2 = jnp.transpose(img2.reshape(G, NB, C, HW), (0, 2, 1, 3)).reshape(G, C, L)

    cmask, tmask = _build_masks(H, W, d, NB)

    kernel = _make_corrnet_kernel(H, W, C, P, D, S, NB, d)

    # NOTE: f32 MXU matmuls kept (bf16 inputs would risk the 1e-3 tolerance and
    # the kernel is not MXU-bound at these sizes).
    out_flat = pl.pallas_call(
        kernel,
        out_shape=jax.ShapeDtypeStruct((G, P, L), jnp.float32),
        grid_spec=pltpu.PrefetchScalarGridSpec(
            num_scalar_prefetch=0,
            grid=(G,),
            in_specs=[
                pl.BlockSpec((None, C, L), lambda g: (g, 0, 0)),      # img1
                pl.BlockSpec((None, C, L), lambda g: (g, 0, 0)),      # img2
                pl.BlockSpec((D, L), lambda g: (0, 0)),               # corr masks
                pl.BlockSpec((9, L), lambda g: (0, 0)),               # conv tap masks
                pl.BlockSpec((2 * P, 9 * S), lambda g: (0, 0)),       # conv1 + 1x1
                pl.BlockSpec((P, 9 * P), lambda g: (0, 0)),           # conv2
                pl.BlockSpec((P, 2), lambda g: (0, 0)),               # biases
            ],
            out_specs=pl.BlockSpec((None, P, L), lambda g: (g, 0, 0)),
            scratch_shapes=[pltpu.VMEM((S, L), jnp.float32)],          # corr rows
        ),
        # Grid steps are independent: shard across TensorCores on v7x.
        compiler_params=pltpu.CompilerParams(
            dimension_semantics=("parallel",)),
    )(x1, x2, cmask, tmask, folded["wf"], folded["w2t"], folded["biases"])

    out = out_flat.reshape(G, P, NB, HW)
    out = jnp.transpose(out, (0, 2, 1, 3)).reshape(B, P, H, W)
    return out


def reference_forward(img1_nchw, img2_nchw, params, corr_dist):
    """Pure-JAX reference (XLA conv) with identical semantics, for validation."""
    x1 = jnp.transpose(img1_nchw, (0, 2, 3, 1)).astype(jnp.float32)
    x2 = jnp.transpose(img2_nchw, (0, 2, 3, 1)).astype(jnp.float32)
    B, H, W, C = x1.shape
    d = corr_dist
    x2p = jnp.pad(x2, ((0, 0), (d, d), (d, d), (0, 0)))
    cols = []
    for dy in range(2 * d + 1):
        for dx in range(2 * d + 1):
            win = x2p[:, dy:dy + H, dx:dx + W, :]
            cols.append(jnp.mean(x1 * win, axis=-1))
    corr = jnp.stack(cols, axis=-1)                       # (B,H,W,D)

    conv = functools.partial(
        jax.lax.conv_general_dilated, window_strides=(1, 1), padding="SAME",
        dimension_numbers=("NHWC", "HWIO", "NHWC"),
        precision=jax.lax.Precision.HIGHEST)
    y = conv(corr, params["w1"])
    y = jnp.maximum(y * params["s1"] + params["b1"], 0.0)
    y = conv(y, params["w2"])
    y = y * params["s2"] + params["b2"]
    res = jnp.einsum("bhwd,dp->bhwp", corr, params["wd"],
                     precision=jax.lax.Precision.HIGHEST)
    res = res * params["sd"] + params["bd"]
    out = jnp.maximum(y + res, 0.0)
    return jnp.transpose(out, (0, 3, 1, 2))


def init_params(key, corr_dist, planes):
    """Deterministic synthetic parameters (shapes from BasicBlock.__init__)."""
    D = (2 * corr_dist + 1) ** 2
    P = planes
    k1, k2, k3 = jax.random.split(key, 3)
    w1 = jax.random.normal(k1, (3, 3, D, P), jnp.float32) * 0.05   # conv1 (HWIO)
    w2 = jax.random.normal(k2, (3, 3, P, P), jnp.float32) * 0.05   # conv2 (HWIO)
    wd = jax.random.normal(k3, (D, P), jnp.float32) * 0.10         # 1x1 downsample

    def bn_fold(idx):
        i = jnp.arange(P, dtype=jnp.float32)
        gamma = 1.0 + 0.05 * jnp.sin(i + idx)
        beta = 0.02 * jnp.cos(i - idx)
        mean = 0.01 * jnp.sin(0.5 * i + idx)
        var = 1.0 + 0.1 * jnp.cos(0.3 * i + idx) ** 2
        scale = gamma / jnp.sqrt(var + 1e-5)
        return scale, beta - mean * scale

    s1, b1 = bn_fold(0)
    s2, b2 = bn_fold(1)
    sd, bd = bn_fold(2)
    return dict(w1=w1, w2=w2, wd=wd, s1=s1, b1=b1, s2=s2, b2=b2, sd=sd, bd=bd)


if __name__ == "__main__":
    corr_dist = 2          # -> corr_dim = (2*2+1)^2 = 25
    planes = 32
    B, C, H, W = 4, 4, 16, 16   # B=4 so NB=2 packing still leaves 2 grid steps

    key = jax.random.PRNGKey(0)
    kimg1, kimg2, kparam = jax.random.split(key, 3)
    img1 = jax.random.normal(kimg1, (B, C, H, W), jnp.float32)
    img2 = jax.random.normal(kimg2, (B, C, H, W), jnp.float32)
    params = init_params(kparam, corr_dist, planes)

    # One-time weight/BN folding, hoisted out of the per-call forward.
    folded = fold_params(params, C)

    out = correlation_net_forward(img1, img2, folded, corr_dist)
    out = jax.block_until_ready(out)

    ref = jax.block_until_ready(reference_forward(img1, img2, params, corr_dist))
    np.testing.assert_allclose(np.asarray(out), np.asarray(ref),
                               rtol=1e-3, atol=1e-3)
    print("KERNEL_OK")
</pallas_src>

<mosaic_0001>
module attributes {stable_mosaic.version = 11 : i64} {
  func.func @kernel(%arg0: i32, %arg1: memref<1x4x512xf32, #tpu.memory_space<vmem>>, %arg2: memref<1x4x512xf32, #tpu.memory_space<vmem>>, %arg3: memref<25x512xf32, #tpu.memory_space<vmem>>, %arg4: memref<9x512xf32, #tpu.memory_space<vmem>>, %arg5: memref<64x288xf32, #tpu.memory_space<vmem>>, %arg6: memref<32x288xf32, #tpu.memory_space<vmem>>, %arg7: memref<32x2xf32, #tpu.memory_space<vmem>>, %arg8: memref<1x32x512xf32, #tpu.memory_space<vmem>>, %arg9: memref<32x512xf32, #tpu.memory_space<vmem>>) attributes {dimension_semantics = [#tpu.dimension_semantics<parallel>], iteration_bounds = array<i64: 2>, scalar_prefetch = 0 : i64, scratch_operands = 1 : i64, tpu.core_type = #tpu.core_type<tc>, window_params = [{transform_indices = @transform_0, window_bounds = array<i64: 1, 4, 512>}, {transform_indices = @transform_1, window_bounds = array<i64: 1, 4, 512>}, {pipeline_mode = #tpu.pipeline_mode<synchronous>, transform_indices = @transform_2, window_bounds = array<i64: 25, 512>}, {pipeline_mode = #tpu.pipeline_mode<synchronous>, transform_indices = @transform_3, window_bounds = array<i64: 9, 512>}, {pipeline_mode = #tpu.pipeline_mode<synchronous>, transform_indices = @transform_4, window_bounds = array<i64: 64, 288>}, {pipeline_mode = #tpu.pipeline_mode<synchronous>, transform_indices = @transform_5, window_bounds = array<i64: 32, 288>}, {pipeline_mode = #tpu.pipeline_mode<synchronous>, transform_indices = @transform_6, window_bounds = array<i64: 32, 2>}, {transform_indices = @transform_7, window_bounds = array<i64: 1, 32, 512>}]} {
    %c0 = arith.constant 0 : index
    %c0_0 = arith.constant 0 : index
    %c0_1 = arith.constant 0 : index
    %0 = vector.load %arg1[%c0, %c0_0, %c0_1] : memref<1x4x512xf32, #tpu.memory_space<vmem>>, vector<1x4x512xf32>
    %1 = vector.shape_cast %0 : vector<1x4x512xf32> to vector<4x512xf32>
    %c0_2 = arith.constant 0 : index
    %c0_3 = arith.constant 0 : index
    %c0_4 = arith.constant 0 : index
    %2 = vector.load %arg2[%c0_2, %c0_3, %c0_4] : memref<1x4x512xf32, #tpu.memory_space<vmem>>, vector<1x4x512xf32>
    %3 = vector.shape_cast %2 : vector<1x4x512xf32> to vector<4x512xf32>
    %cst = arith.constant 0.000000e+00 : f32
    %4 = vector.broadcast %cst : f32 to vector<32x512xf32>
    %c0_5 = arith.constant 0 : index
    %c0_6 = arith.constant 0 : index
    %5 = vector.load %arg9[%c0_5, %c0_6] : memref<32x512xf32, #tpu.memory_space<vmem>>, vector<32x512xf32>
    tpu.vector_store %arg9[%c0_5, %c0_6], %4 {strides = array<i32>} : memref<32x512xf32, #tpu.memory_space<vmem>>, vector<32x512xf32>,
    %c34_i32 = arith.constant 34 : i32
    %6 = tpu.dynamic_rotate %3 by %c34_i32 dim 1 : vector<4x512xf32>, i32 -> vector<4x512xf32>
    %7 = arith.mulf %1, %6 : vector<4x512xf32>
    %cst_7 = arith.constant dense<0.000000e+00> : vector<512xf32>
    %8 = vector.multi_reduction <add>, %7, %cst_7 [0] : vector<4x512xf32> to vector<512xf32>
    %9 = vector.shape_cast %8 : vector<512xf32> to vector<1x512xf32>
    %c0_8 = arith.constant 0 : index
    %c0_9 = arith.constant 0 : index
    %10 = vector.load %arg3[%c0_8, %c0_9] : memref<25x512xf32, #tpu.memory_space<vmem>>, vector<1x512xf32>
    %11 = arith.mulf %9, %10 : vector<1x512xf32>
    %c0_10 = arith.constant 0 : index
    %c0_11 = arith.constant 0 : index
    %12 = vector.load %arg9[%c0_10, %c0_11] : memref<32x512xf32, #tpu.memory_space<vmem>>, vector<1x512xf32>
    tpu.vector_store %arg9[%c0_10, %c0_11], %11 {strides = array<i32>} : memref<32x512xf32, #tpu.memory_space<vmem>>, vector<1x512xf32>,
    %c33_i32 = arith.constant 33 : i32
    %13 = tpu.dynamic_rotate %3 by %c33_i32 dim 1 : vector<4x512xf32>, i32 -> vector<4x512xf32>
    %14 = arith.mulf %1, %13 : vector<4x512xf32>
    %cst_12 = arith.constant dense<0.000000e+00> : vector<512xf32>
    %15 = vector.multi_reduction <add>, %14, %cst_12 [0] : vector<4x512xf32> to vector<512xf32>
    %16 = vector.shape_cast %15 : vector<512xf32> to vector<1x512xf32>
    %c1 = arith.constant 1 : index
    %c0_13 = arith.constant 0 : index
    %17 = vector.load %arg3[%c1, %c0_13] : memref<25x512xf32, #tpu.memory_space<vmem>>, vector<1x512xf32>
    %18 = arith.mulf %16, %17 : vector<1x512xf32>
    %c1_14 = arith.constant 1 : index
    %c0_15 = arith.constant 0 : index
    %19 = vector.load %arg9[%c1_14, %c0_15] : memref<32x512xf32, #tpu.memory_space<vmem>>, vector<1x512xf32>
    tpu.vector_store %arg9[%c1_14, %c0_15], %18 {strides = array<i32>} : memref<32x512xf32, #tpu.memory_space<vmem>>, vector<1x512xf32>,
    %c32_i32 = arith.constant 32 : i32
    %20 = tpu.dynamic_rotate %3 by %c32_i32 dim 1 : vector<4x512xf32>, i32 -> vector<4x512xf32>
    %21 = arith.mulf %1, %20 : vector<4x512xf32>
    %cst_16 = arith.constant dense<0.000000e+00> : vector<512xf32>
    %22 = vector.multi_reduction <add>, %21, %cst_16 [0] : vector<4x512xf32> to vector<512xf32>
    %23 = vector.shape_cast %22 : vector<512xf32> to vector<1x512xf32>
    %c2 = arith.constant 2 : index
    %c0_17 = arith.constant 0 : index
    %24 = vector.load %arg3[%c2, %c0_17] : memref<25x512xf32, #tpu.memory_space<vmem>>, vector<1x512xf32>
    %25 = arith.mulf %23, %24 : vector<1x512xf32>
    %c2_18 = arith.constant 2 : index
    %c0_19 = arith.constant 0 : index
    %26 = vector.load %arg9[%c2_18, %c0_19] : memref<32x512xf32, #tpu.memory_space<vmem>>, vector<1x512xf32>
    tpu.vector_store %arg9[%c2_18, %c0_19], %25 {strides = array<i32>} : memref<32x512xf32, #tpu.memory_space<vmem>>, vector<1x512xf32>,
    %c31_i32 = arith.constant 31 : i32
    %27 = tpu.dynamic_rotate %3 by %c31_i32 dim 1 : vector<4x512xf32>, i32 -> vector<4x512xf32>
    %28 = arith.mulf %1, %27 : vector<4x512xf32>
    %cst_20 = arith.constant dense<0.000000e+00> : vector<512xf32>
    %29 = vector.multi_reduction <add>, %28, %cst_20 [0] : vector<4x512xf32> to vector<512xf32>
    %30 = vector.shape_cast %29 : vector<512xf32> to vector<1x512xf32>
    %c3 = arith.constant 3 : index
    %c0_21 = arith.constant 0 : index
    %31 = vector.load %arg3[%c3, %c0_21] : memref<25x512xf32, #tpu.memory_space<vmem>>, vector<1x512xf32>
    %32 = arith.mulf %30, %31 : vector<1x512xf32>
    %c3_22 = arith.constant 3 : index
    %c0_23 = arith.constant 0 : index
    %33 = vector.load %arg9[%c3_22, %c0_23] : memref<32x512xf32, #tpu.memory_space<vmem>>, vector<1x512xf32>
    tpu.vector_store %arg9[%c3_22, %c0_23], %32 {strides = array<i32>} : memref<32x512xf32, #tpu.memory_space<vmem>>, vector<1x512xf32>,
    %c30_i32 = arith.constant 30 : i32
    %34 = tpu.dynamic_rotate %3 by %c30_i32 dim 1 : vector<4x512xf32>, i32 -> vector<4x512xf32>
    %35 = arith.mulf %1, %34 : vector<4x512xf32>
    %cst_24 = arith.constant dense<0.000000e+00> : vector<512xf32>
    %36 = vector.multi_reduction <add>, %35, %cst_24 [0] : vector<4x512xf32> to vector<512xf32>
    %37 = vector.shape_cast %36 : vector<512xf32> to vector<1x512xf32>
    %c4 = arith.constant 4 : index
    %c0_25 = arith.constant 0 : index
    %38 = vector.load %arg3[%c4, %c0_25] : memref<25x512xf32, #tpu.memory_space<vmem>>, vector<1x512xf32>
    %39 = arith.mulf %37, %38 : vector<1x512xf32>
    %c4_26 = arith.constant 4 : index
    %c0_27 = arith.constant 0 : index
    %40 = vector.load %arg9[%c4_26, %c0_27] : memref<32x512xf32, #tpu.memory_space<vmem>>, vector<1x512xf32>
    tpu.vector_store %arg9[%c4_26, %c0_27], %39 {strides = array<i32>} : memref<32x512xf32, #tpu.memory_space<vmem>>, vector<1x512xf32>,
    %c18_i32 = arith.constant 18 : i32
    %41 = tpu.dynamic_rotate %3 by %c18_i32 dim 1 : vector<4x512xf32>, i32 -> vector<4x512xf32>
    %42 = arith.mulf %1, %41 : vector<4x512xf32>
    %cst_28 = arith.constant dense<0.000000e+00> : vector<512xf32>
    %43 = vector.multi_reduction <add>, %42, %cst_28 [0] : vector<4x512xf32> to vector<512xf32>
    %44 = vector.shape_cast %43 : vector<512xf32> to vector<1x512xf32>
    %c5 = arith.constant 5 : index
    %c0_29 = arith.constant 0 : index
    %45 = vector.load %arg3[%c5, %c0_29] : memref<25x512xf32, #tpu.memory_space<vmem>>, vector<1x512xf32>
    %46 = arith.mulf %44, %45 : vector<1x512xf32>
    %c5_30 = arith.constant 5 : index
    %c0_31 = arith.constant 0 : index
    %47 = vector.load %arg9[%c5_30, %c0_31] : memref<32x512xf32, #tpu.memory_space<vmem>>, vector<1x512xf32>
    tpu.vector_store %arg9[%c5_30, %c0_31], %46 {strides = array<i32>} : memref<32x512xf32, #tpu.memory_space<vmem>>, vector<1x512xf32>,
    %c17_i32 = arith.constant 17 : i32
    %48 = tpu.dynamic_rotate %3 by %c17_i32 dim 1 : vector<4x512xf32>, i32 -> vector<4x512xf32>
    %49 = arith.mulf %1, %48 : vector<4x512xf32>
    %cst_32 = arith.constant dense<0.000000e+00> : vector<512xf32>
    %50 = vector.multi_reduction <add>, %49, %cst_32 [0] : vector<4x512xf32> to vector<512xf32>
    %51 = vector.shape_cast %50 : vector<512xf32> to vector<1x512xf32>
    %c6 = arith.constant 6 : index
    %c0_33 = arith.constant 0 : index
    %52 = vector.load %arg3[%c6, %c0_33] : memref<25x512xf32, #tpu.memory_space<vmem>>, vector<1x512xf32>
    %53 = arith.mulf %51, %52 : vector<1x512xf32>
    %c6_34 = arith.constant 6 : index
    %c0_35 = arith.constant 0 : index
    %54 = vector.load %arg9[%c6_34, %c0_35] : memref<32x512xf32, #tpu.memory_space<vmem>>, vector<1x512xf32>
    tpu.vector_store %arg9[%c6_34, %c0_35], %53 {strides = array<i32>} : memref<32x512xf32, #tpu.memory_space<vmem>>, vector<1x512xf32>,
    %c16_i32 = arith.constant 16 : i32
    %55 = tpu.dynamic_rotate %3 by %c16_i32 dim 1 : vector<4x512xf32>, i32 -> vector<4x512xf32>
    %56 = arith.mulf %1, %55 : vector<4x512xf32>
    %cst_36 = arith.constant dense<0.000000e+00> : vector<512xf32>
    %57 = vector.multi_reduction <add>, %56, %cst_36 [0] : vector<4x512xf32> to vector<512xf32>
    %58 = vector.shape_cast %57 : vector<512xf32> to vector<1x512xf32>
    %c7 = arith.constant 7 : index
    %c0_37 = arith.constant 0 : index
    %59 = vector.load %arg3[%c7, %c0_37] : memref<25x512xf32, #tpu.memory_space<vmem>>, vector<1x512xf32>
    %60 = arith.mulf %58, %59 : vector<1x512xf32>
    %c7_38 = arith.constant 7 : index
    %c0_39 = arith.constant 0 : index
    %61 = vector.load %arg9[%c7_38, %c0_39] : memref<32x512xf32, #tpu.memory_space<vmem>>, vector<1x512xf32>
    tpu.vector_store %arg9[%c7_38, %c0_39], %60 {strides = array<i32>} : memref<32x512xf32, #tpu.memory_space<vmem>>, vector<1x512xf32>,
    %c15_i32 = arith.constant 15 : i32
    %62 = tpu.dynamic_rotate %3 by %c15_i32 dim 1 : vector<4x512xf32>, i32 -> vector<4x512xf32>
    %63 = arith.mulf %1, %62 : vector<4x512xf32>
    %cst_40 = arith.constant dense<0.000000e+00> : vector<512xf32>
    %64 = vector.multi_reduction <add>, %63, %cst_40 [0] : vector<4x512xf32> to vector<512xf32>
    %65 = vector.shape_cast %64 : vector<512xf32> to vector<1x512xf32>
    %c8 = arith.constant 8 : index
    %c0_41 = arith.constant 0 : index
    %66 = vector.load %arg3[%c8, %c0_41] : memref<25x512xf32, #tpu.memory_space<vmem>>, vector<1x512xf32>
    %67 = arith.mulf %65, %66 : vector<1x512xf32>
    %c8_42 = arith.constant 8 : index
    %c0_43 = arith.constant 0 : index
    %68 = vector.load %arg9[%c8_42, %c0_43] : memref<32x512xf32, #tpu.memory_space<vmem>>, vector<1x512xf32>
    tpu.vector_store %arg9[%c8_42, %c0_43], %67 {strides = array<i32>} : memref<32x512xf32, #tpu.memory_space<vmem>>, vector<1x512xf32>,
    %c14_i32 = arith.constant 14 : i32
    %69 = tpu.dynamic_rotate %3 by %c14_i32 dim 1 : vector<4x512xf32>, i32 -> vector<4x512xf32>
    %70 = arith.mulf %1, %69 : vector<4x512xf32>
    %cst_44 = arith.constant dense<0.000000e+00> : vector<512xf32>
    %71 = vector.multi_reduction <add>, %70, %cst_44 [0] : vector<4x512xf32> to vector<512xf32>
    %72 = vector.shape_cast %71 : vector<512xf32> to vector<1x512xf32>
    %c9 = arith.constant 9 : index
    %c0_45 = arith.constant 0 : index
    %73 = vector.load %arg3[%c9, %c0_45] : memref<25x512xf32, #tpu.memory_space<vmem>>, vector<1x512xf32>
    %74 = arith.mulf %72, %73 : vector<1x512xf32>
    %c9_46 = arith.constant 9 : index
    %c0_47 = arith.constant 0 : index
    %75 = vector.load %arg9[%c9_46, %c0_47] : memref<32x512xf32, #tpu.memory_space<vmem>>, vector<1x512xf32>
    tpu.vector_store %arg9[%c9_46, %c0_47], %74 {strides = array<i32>} : memref<32x512xf32, #tpu.memory_space<vmem>>, vector<1x512xf32>,
    %c2_i32 = arith.constant 2 : i32
    %76 = tpu.dynamic_rotate %3 by %c2_i32 dim 1 : vector<4x512xf32>, i32 -> vector<4x512xf32>
    %77 = arith.mulf %1, %76 : vector<4x512xf32>
    %cst_48 = arith.constant dense<0.000000e+00> : vector<512xf32>
    %78 = vector.multi_reduction <add>, %77, %cst_48 [0] : vector<4x512xf32> to vector<512xf32>
    %79 = vector.shape_cast %78 : vector<512xf32> to vector<1x512xf32>
    %c10 = arith.constant 10 : index
    %c0_49 = arith.constant 0 : index
    %80 = vector.load %arg3[%c10, %c0_49] : memref<25x512xf32, #tpu.memory_space<vmem>>, vector<1x512xf32>
    %81 = arith.mulf %79, %80 : vector<1x512xf32>
    %c10_50 = arith.constant 10 : index
    %c0_51 = arith.constant 0 : index
    %82 = vector.load %arg9[%c10_50, %c0_51] : memref<32x512xf32, #tpu.memory_space<vmem>>, vector<1x512xf32>
    tpu.vector_store %arg9[%c10_50, %c0_51], %81 {strides = array<i32>} : memref<32x512xf32, #tpu.memory_space<vmem>>, vector<1x512xf32>,
    %c1_i32 = arith.constant 1 : i32
    %83 = tpu.dynamic_rotate %3 by %c1_i32 dim 1 : vector<4x512xf32>, i32 -> vector<4x512xf32>
    %84 = arith.mulf %1, %83 : vector<4x512xf32>
    %cst_52 = arith.constant dense<0.000000e+00> : vector<512xf32>
    %85 = vector.multi_reduction <add>, %84, %cst_52 [0] : vector<4x512xf32> to vector<512xf32>
    %86 = vector.shape_cast %85 : vector<512xf32> to vector<1x512xf32>
    %c11 = arith.constant 11 : index
    %c0_53 = arith.constant 0 : index
    %87 = vector.load %arg3[%c11, %c0_53] : memref<25x512xf32, #tpu.memory_space<vmem>>, vector<1x512xf32>
    %88 = arith.mulf %86, %87 : vector<1x512xf32>
    %c11_54 = arith.constant 11 : index
    %c0_55 = arith.constant 0 : index
    %89 = vector.load %arg9[%c11_54, %c0_55] : memref<32x512xf32, #tpu.memory_space<vmem>>, vector<1x512xf32>
    tpu.vector_store %arg9[%c11_54, %c0_55], %88 {strides = array<i32>} : memref<32x512xf32, #tpu.memory_space<vmem>>, vector<1x512xf32>,
    %90 = arith.mulf %1, %3 : vector<4x512xf32>
    %cst_56 = arith.constant dense<0.000000e+00> : vector<512xf32>
    %91 = vector.multi_reduction <add>, %90, %cst_56 [0] : vector<4x512xf32> to vector<512xf32>
    %92 = vector.shape_cast %91 : vector<512xf32> to vector<1x512xf32>
    %c12 = arith.constant 12 : index
    %c0_57 = arith.constant 0 : index
    %93 = vector.load %arg9[%c12, %c0_57] : memref<32x512xf32, #tpu.memory_space<vmem>>, vector<1x512xf32>
    tpu.vector_store %arg9[%c12, %c0_57], %92 {strides = array<i32>} : memref<32x512xf32, #tpu.memory_space<vmem>>, vector<1x512xf32>,
    %c511_i32 = arith.constant 511 : i32
    %94 = tpu.dynamic_rotate %3 by %c511_i32 dim 1 : vector<4x512xf32>, i32 -> vector<4x512xf32>
    %95 = arith.mulf %1, %94 : vector<4x512xf32>
    %cst_58 = arith.constant dense<0.000000e+00> : vector<512xf32>
    %96 = vector.multi_reduction <add>, %95, %cst_58 [0] : vector<4x512xf32> to vector<512xf32>
    %97 = vector.shape_cast %96 : vector<512xf32> to vector<1x512xf32>
    %c13 = arith.constant 13 : index
    %c0_59 = arith.constant 0 : index
    %98 = vector.load %arg3[%c13, %c0_59] : memref<25x512xf32, #tpu.memory_space<vmem>>, vector<1x512xf32>
    %99 = arith.mulf %97, %98 : vector<1x512xf32>
    %c13_60 = arith.constant 13 : index
    %c0_61 = arith.constant 0 : index
    %100 = vector.load %arg9[%c13_60, %c0_61] : memref<32x512xf32, #tpu.memory_space<vmem>>, vector<1x512xf32>
    tpu.vector_store %arg9[%c13_60, %c0_61], %99 {strides = array<i32>} : memref<32x512xf32, #tpu.memory_space<vmem>>, vector<1x512xf32>,
    %c510_i32 = arith.constant 510 : i32
    %101 = tpu.dynamic_rotate %3 by %c510_i32 dim 1 : vector<4x512xf32>, i32 -> vector<4x512xf32>
    %102 = arith.mulf %1, %101 : vector<4x512xf32>
    %cst_62 = arith.constant dense<0.000000e+00> : vector<512xf32>
    %103 = vector.multi_reduction <add>, %102, %cst_62 [0] : vector<4x512xf32> to vector<512xf32>
    %104 = vector.shape_cast %103 : vector<512xf32> to vector<1x512xf32>
    %c14 = arith.constant 14 : index
    %c0_63 = arith.constant 0 : index
    %105 = vector.load %arg3[%c14, %c0_63] : memref<25x512xf32, #tpu.memory_space<vmem>>, vector<1x512xf32>
    %106 = arith.mulf %104, %105 : vector<1x512xf32>
    %c14_64 = arith.constant 14 : index
    %c0_65 = arith.constant 0 : index
    %107 = vector.load %arg9[%c14_64, %c0_65] : memref<32x512xf32, #tpu.memory_space<vmem>>, vector<1x512xf32>
    tpu.vector_store %arg9[%c14_64, %c0_65], %106 {strides = array<i32>} : memref<32x512xf32, #tpu.memory_space<vmem>>, vector<1x512xf32>,
    %c498_i32 = arith.constant 498 : i32
    %108 = tpu.dynamic_rotate %3 by %c498_i32 dim 1 : vector<4x512xf32>, i32 -> vector<4x512xf32>
    %109 = arith.mulf %1, %108 : vector<4x512xf32>
    %cst_66 = arith.constant dense<0.000000e+00> : vector<512xf32>
    %110 = vector.multi_reduction <add>, %109, %cst_66 [0] : vector<4x512xf32> to vector<512xf32>
    %111 = vector.shape_cast %110 : vector<512xf32> to vector<1x512xf32>
    %c15 = arith.constant 15 : index
    %c0_67 = arith.constant 0 : index
    %112 = vector.load %arg3[%c15, %c0_67] : memref<25x512xf32, #tpu.memory_space<vmem>>, vector<1x512xf32>
    %113 = arith.mulf %111, %112 : vector<1x512xf32>
    %c15_68 = arith.constant 15 : index
    %c0_69 = arith.constant 0 : index
    %114 = vector.load %arg9[%c15_68, %c0_69] : memref<32x512xf32, #tpu.memory_space<vmem>>, vector<1x512xf32>
    tpu.vector_store %arg9[%c15_68, %c0_69], %113 {strides = array<i32>} : memref<32x512xf32, #tpu.memory_space<vmem>>, vector<1x512xf32>,
    %c497_i32 = arith.constant 497 : i32
    %115 = tpu.dynamic_rotate %3 by %c497_i32 dim 1 : vector<4x512xf32>, i32 -> vector<4x512xf32>
    %116 = arith.mulf %1, %115 : vector<4x512xf32>
    %cst_70 = arith.constant dense<0.000000e+00> : vector<512xf32>
    %117 = vector.multi_reduction <add>, %116, %cst_70 [0] : vector<4x512xf32> to vector<512xf32>
    %118 = vector.shape_cast %117 : vector<512xf32> to vector<1x512xf32>
    %c16 = arith.constant 16 : index
    %c0_71 = arith.constant 0 : index
    %119 = vector.load %arg3[%c16, %c0_71] : memref<25x512xf32, #tpu.memory_space<vmem>>, vector<1x512xf32>
    %120 = arith.mulf %118, %119 : vector<1x512xf32>
    %c16_72 = arith.constant 16 : index
    %c0_73 = arith.constant 0 : index
    %121 = vector.load %arg9[%c16_72, %c0_73] : memref<32x512xf32, #tpu.memory_space<vmem>>, vector<1x512xf32>
    tpu.vector_store %arg9[%c16_72, %c0_73], %120 {strides = array<i32>} : memref<32x512xf32, #tpu.memory_space<vmem>>, vector<1x512xf32>,
    %c496_i32 = arith.constant 496 : i32
    %122 = tpu.dynamic_rotate %3 by %c496_i32 dim 1 : vector<4x512xf32>, i32 -> vector<4x512xf32>
    %123 = arith.mulf %1, %122 : vector<4x512xf32>
    %cst_74 = arith.constant dense<0.000000e+00> : vector<512xf32>
    %124 = vector.multi_reduction <add>, %123, %cst_74 [0] : vector<4x512xf32> to vector<512xf32>
    %125 = vector.shape_cast %124 : vector<512xf32> to vector<1x512xf32>
    %c17 = arith.constant 17 : index
    %c0_75 = arith.constant 0 : index
    %126 = vector.load %arg3[%c17, %c0_75] : memref<25x512xf32, #tpu.memory_space<vmem>>, vector<1x512xf32>
    %127 = arith.mulf %125, %126 : vector<1x512xf32>
    %c17_76 = arith.constant 17 : index
    %c0_77 = arith.constant 0 : index
    %128 = vector.load %arg9[%c17_76, %c0_77] : memref<32x512xf32, #tpu.memory_space<vmem>>, vector<1x512xf32>
    tpu.vector_store %arg9[%c17_76, %c0_77], %127 {strides = array<i32>} : memref<32x512xf32, #tpu.memory_space<vmem>>, vector<1x512xf32>,
    %c495_i32 = arith.constant 495 : i32
    %129 = tpu.dynamic_rotate %3 by %c495_i32 dim 1 : vector<4x512xf32>, i32 -> vector<4x512xf32>
    %130 = arith.mulf %1, %129 : vector<4x512xf32>
    %cst_78 = arith.constant dense<0.000000e+00> : vector<512xf32>
    %131 = vector.multi_reduction <add>, %130, %cst_78 [0] : vector<4x512xf32> to vector<512xf32>
    %132 = vector.shape_cast %131 : vector<512xf32> to vector<1x512xf32>
    %c18 = arith.constant 18 : index
    %c0_79 = arith.constant 0 : index
    %133 = vector.load %arg3[%c18, %c0_79] : memref<25x512xf32, #tpu.memory_space<vmem>>, vector<1x512xf32>
    %134 = arith.mulf %132, %133 : vector<1x512xf32>
    %c18_80 = arith.constant 18 : index
    %c0_81 = arith.constant 0 : index
    %135 = vector.load %arg9[%c18_80, %c0_81] : memref<32x512xf32, #tpu.memory_space<vmem>>, vector<1x512xf32>
    tpu.vector_store %arg9[%c18_80, %c0_81], %134 {strides = array<i32>} : memref<32x512xf32, #tpu.memory_space<vmem>>, vector<1x512xf32>,
    %c494_i32 = arith.constant 494 : i32
    %136 = tpu.dynamic_rotate %3 by %c494_i32 dim 1 : vector<4x512xf32>, i32 -> vector<4x512xf32>
    %137 = arith.mulf %1, %136 : vector<4x512xf32>
    %cst_82 = arith.constant dense<0.000000e+00> : vector<512xf32>
    %138 = vector.multi_reduction <add>, %137, %cst_82 [0] : vector<4x512xf32> to vector<512xf32>
    %139 = vector.shape_cast %138 : vector<512xf32> to vector<1x512xf32>
    %c19 = arith.constant 19 : index
    %c0_83 = arith.constant 0 : index
    %140 = vector.load %arg3[%c19, %c0_83] : memref<25x512xf32, #tpu.memory_space<vmem>>, vector<1x512xf32>
    %141 = arith.mulf %139, %140 : vector<1x512xf32>
    %c19_84 = arith.constant 19 : index
    %c0_85 = arith.constant 0 : index
    %142 = vector.load %arg9[%c19_84, %c0_85] : memref<32x512xf32, #tpu.memory_space<vmem>>, vector<1x512xf32>
    tpu.vector_store %arg9[%c19_84, %c0_85], %141 {strides = array<i32>} : memref<32x512xf32, #tpu.memory_space<vmem>>, vector<1x512xf32>,
    %c482_i32 = arith.constant 482 : i32
    %143 = tpu.dynamic_rotate %3 by %c482_i32 dim 1 : vector<4x512xf32>, i32 -> vector<4x512xf32>
    %144 = arith.mulf %1, %143 : vector<4x512xf32>
    %cst_86 = arith.constant dense<0.000000e+00> : vector<512xf32>
    %145 = vector.multi_reduction <add>, %144, %cst_86 [0] : vector<4x512xf32> to vector<512xf32>
    %146 = vector.shape_cast %145 : vector<512xf32> to vector<1x512xf32>
    %c20 = arith.constant 20 : index
    %c0_87 = arith.constant 0 : index
    %147 = vector.load %arg3[%c20, %c0_87] : memref<25x512xf32, #tpu.memory_space<vmem>>, vector<1x512xf32>
    %148 = arith.mulf %146, %147 : vector<1x512xf32>
    %c20_88 = arith.constant 20 : index
    %c0_89 = arith.constant 0 : index
    %149 = vector.load %arg9[%c20_88, %c0_89] : memref<32x512xf32, #tpu.memory_space<vmem>>, vector<1x512xf32>
    tpu.vector_store %arg9[%c20_88, %c0_89], %148 {strides = array<i32>} : memref<32x512xf32, #tpu.memory_space<vmem>>, vector<1x512xf32>,
    %c481_i32 = arith.constant 481 : i32
    %150 = tpu.dynamic_rotate %3 by %c481_i32 dim 1 : vector<4x512xf32>, i32 -> vector<4x512xf32>
    %151 = arith.mulf %1, %150 : vector<4x512xf32>
    %cst_90 = arith.constant dense<0.000000e+00> : vector<512xf32>
    %152 = vector.multi_reduction <add>, %151, %cst_90 [0] : vector<4x512xf32> to vector<512xf32>
    %153 = vector.shape_cast %152 : vector<512xf32> to vector<1x512xf32>
    %c21 = arith.constant 21 : index
    %c0_91 = arith.constant 0 : index
    %154 = vector.load %arg3[%c21, %c0_91] : memref<25x512xf32, #tpu.memory_space<vmem>>, vector<1x512xf32>
    %155 = arith.mulf %153, %154 : vector<1x512xf32>
    %c21_92 = arith.constant 21 : index
    %c0_93 = arith.constant 0 : index
    %156 = vector.load %arg9[%c21_92, %c0_93] : memref<32x512xf32, #tpu.memory_space<vmem>>, vector<1x512xf32>
    tpu.vector_store %arg9[%c21_92, %c0_93], %155 {strides = array<i32>} : memref<32x512xf32, #tpu.memory_space<vmem>>, vector<1x512xf32>,
    %c480_i32 = arith.constant 480 : i32
    %157 = tpu.dynamic_rotate %3 by %c480_i32 dim 1 : vector<4x512xf32>, i32 -> vector<4x512xf32>
    %158 = arith.mulf %1, %157 : vector<4x512xf32>
    %cst_94 = arith.constant dense<0.000000e+00> : vector<512xf32>
    %159 = vector.multi_reduction <add>, %158, %cst_94 [0] : vector<4x512xf32> to vector<512xf32>
    %160 = vector.shape_cast %159 : vector<512xf32> to vector<1x512xf32>
    %c22 = arith.constant 22 : index
    %c0_95 = arith.constant 0 : index
    %161 = vector.load %arg3[%c22, %c0_95] : memref<25x512xf32, #tpu.memory_space<vmem>>, vector<1x512xf32>
    %162 = arith.mulf %160, %161 : vector<1x512xf32>
    %c22_96 = arith.constant 22 : index
    %c0_97 = arith.constant 0 : index
    %163 = vector.load %arg9[%c22_96, %c0_97] : memref<32x512xf32, #tpu.memory_space<vmem>>, vector<1x512xf32>
    tpu.vector_store %arg9[%c22_96, %c0_97], %162 {strides = array<i32>} : memref<32x512xf32, #tpu.memory_space<vmem>>, vector<1x512xf32>,
    %c479_i32 = arith.constant 479 : i32
    %164 = tpu.dynamic_rotate %3 by %c479_i32 dim 1 : vector<4x512xf32>, i32 -> vector<4x512xf32>
    %165 = arith.mulf %1, %164 : vector<4x512xf32>
    %cst_98 = arith.constant dense<0.000000e+00> : vector<512xf32>
    %166 = vector.multi_reduction <add>, %165, %cst_98 [0] : vector<4x512xf32> to vector<512xf32>
    %167 = vector.shape_cast %166 : vector<512xf32> to vector<1x512xf32>
    %c23 = arith.constant 23 : index
    %c0_99 = arith.constant 0 : index
    %168 = vector.load %arg3[%c23, %c0_99] : memref<25x512xf32, #tpu.memory_space<vmem>>, vector<1x512xf32>
    %169 = arith.mulf %167, %168 : vector<1x512xf32>
    %c23_100 = arith.constant 23 : index
    %c0_101 = arith.constant 0 : index
    %170 = vector.load %arg9[%c23_100, %c0_101] : memref<32x512xf32, #tpu.memory_space<vmem>>, vector<1x512xf32>
    tpu.vector_store %arg9[%c23_100, %c0_101], %169 {strides = array<i32>} : memref<32x512xf32, #tpu.memory_space<vmem>>, vector<1x512xf32>,
    %c478_i32 = arith.constant 478 : i32
    %171 = tpu.dynamic_rotate %3 by %c478_i32 dim 1 : vector<4x512xf32>, i32 -> vector<4x512xf32>
    %172 = arith.mulf %1, %171 : vector<4x512xf32>
    %cst_102 = arith.constant dense<0.000000e+00> : vector<512xf32>
    %173 = vector.multi_reduction <add>, %172, %cst_102 [0] : vector<4x512xf32> to vector<512xf32>
    %174 = vector.shape_cast %173 : vector<512xf32> to vector<1x512xf32>
    %c24 = arith.constant 24 : index
    %c0_103 = arith.constant 0 : index
    %175 = vector.load %arg3[%c24, %c0_103] : memref<25x512xf32, #tpu.memory_space<vmem>>, vector<1x512xf32>
    %176 = arith.mulf %174, %175 : vector<1x512xf32>
    %c24_104 = arith.constant 24 : index
    %c0_105 = arith.constant 0 : index
    %177 = vector.load %arg9[%c24_104, %c0_105] : memref<32x512xf32, #tpu.memory_space<vmem>>, vector<1x512xf32>
    tpu.vector_store %arg9[%c24_104, %c0_105], %176 {strides = array<i32>} : memref<32x512xf32, #tpu.memory_space<vmem>>, vector<1x512xf32>,
    %c0_106 = arith.constant 0 : index
    %c0_107 = arith.constant 0 : index
    %178 = vector.load %arg9[%c0_106, %c0_107] : memref<32x512xf32, #tpu.memory_space<vmem>>, vector<32x512xf32>
    %c0_108 = arith.constant 0 : index
    %c0_109 = arith.constant 0 : index
    %179 = vector.load %arg5[%c0_108, %c0_109] : memref<64x288xf32, #tpu.memory_space<vmem>>, vector<64x288xf32>
    %c17_i32_110 = arith.constant 17 : i32
    %180 = tpu.dynamic_rotate %178 by %c17_i32_110 dim 1 : vector<32x512xf32>, i32 -> vector<32x512xf32>
    %c0_111 = arith.constant 0 : index
    %c0_112 = arith.constant 0 : index
    %181 = vector.load %arg4[%c0_111, %c0_112] : memref<9x512xf32, #tpu.memory_space<vmem>>, vector<1x512xf32>
    %182 = vector.broadcast %181 : vector<1x512xf32> to vector<32x512xf32>
    %183 = arith.mulf %180, %182 : vector<32x512xf32>
    %c16_i32_113 = arith.constant 16 : i32
    %184 = tpu.dynamic_rotate %178 by %c16_i32_113 dim 1 : vector<32x512xf32>, i32 -> vector<32x512xf32>
    %c1_114 = arith.constant 1 : index
    %c0_115 = arith.constant 0 : index
    %185 = vector.load %arg4[%c1_114, %c0_115] : memref<9x512xf32, #tpu.memory_space<vmem>>, vector<1x512xf32>
    %186 = vector.broadcast %185 : vector<1x512xf32> to vector<32x512xf32>
    %187 = arith.mulf %184, %186 : vector<32x512xf32>
    %c15_i32_116 = arith.constant 15 : i32
    %188 = tpu.dynamic_rotate %178 by %c15_i32_116 dim 1 : vector<32x512xf32>, i32 -> vector<32x512xf32>
    %c2_117 = arith.constant 2 : index
    %c0_118 = arith.constant 0 : index
    %189 = vector.load %arg4[%c2_117, %c0_118] : memref<9x512xf32, #tpu.memory_space<vmem>>, vector<1x512xf32>
    %190 = vector.broadcast %189 : vector<1x512xf32> to vector<32x512xf32>
    %191 = arith.mulf %188, %190 : vector<32x512xf32>
    %c1_i32_119 = arith.constant 1 : i32
    %192 = tpu.dynamic_rotate %178 by %c1_i32_119 dim 1 : vector<32x512xf32>, i32 -> vector<32x512xf32>
    %c3_120 = arith.constant 3 : index
    %c0_121 = arith.constant 0 : index
    %193 = vector.load %arg4[%c3_120, %c0_121] : memref<9x512xf32, #tpu.memory_space<vmem>>, vector<1x512xf32>
    %194 = vector.broadcast %193 : vector<1x512xf32> to vector<32x512xf32>
    %195 = arith.mulf %192, %194 : vector<32x512xf32>
    %c511_i32_122 = arith.constant 511 : i32
    %196 = tpu.dynamic_rotate %178 by %c511_i32_122 dim 1 : vector<32x512xf32>, i32 -> vector<32x512xf32>
    %c5_123 = arith.constant 5 : index
    %c0_124 = arith.constant 0 : index
    %197 = vector.load %arg4[%c5_123, %c0_124] : memref<9x512xf32, #tpu.memory_space<vmem>>, vector<1x512xf32>
    %198 = vector.broadcast %197 : vector<1x512xf32> to vector<32x512xf32>
    %199 = arith.mulf %196, %198 : vector<32x512xf32>
    %c497_i32_125 = arith.constant 497 : i32
    %200 = tpu.dynamic_rotate %178 by %c497_i32_125 dim 1 : vector<32x512xf32>, i32 -> vector<32x512xf32>
    %c6_126 = arith.constant 6 : index
    %c0_127 = arith.constant 0 : index
    %201 = vector.load %arg4[%c6_126, %c0_127] : memref<9x512xf32, #tpu.memory_space<vmem>>, vector<1x512xf32>
    %202 = vector.broadcast %201 : vector<1x512xf32> to vector<32x512xf32>
    %203 = arith.mulf %200, %202 : vector<32x512xf32>
    %c496_i32_128 = arith.constant 496 : i32
    %204 = tpu.dynamic_rotate %178 by %c496_i32_128 dim 1 : vector<32x512xf32>, i32 -> vector<32x512xf32>
    %c7_129 = arith.constant 7 : index
    %c0_130 = arith.constant 0 : index
    %205 = vector.load %arg4[%c7_129, %c0_130] : memref<9x512xf32, #tpu.memory_space<vmem>>, vector<1x512xf32>
    %206 = vector.broadcast %205 : vector<1x512xf32> to vector<32x512xf32>
    %207 = arith.mulf %204, %206 : vector<32x512xf32>
    %c495_i32_131 = arith.constant 495 : i32
    %208 = tpu.dynamic_rotate %178 by %c495_i32_131 dim 1 : vector<32x512xf32>, i32 -> vector<32x512xf32>
    %c8_132 = arith.constant 8 : index
    %c0_133 = arith.constant 0 : index
    %209 = vector.load %arg4[%c8_132, %c0_133] : memref<9x512xf32, #tpu.memory_space<vmem>>, vector<1x512xf32>
    %210 = vector.broadcast %209 : vector<1x512xf32> to vector<32x512xf32>
    %211 = arith.mulf %208, %210 : vector<32x512xf32>
    %212 = tpu.concatenate %183, %187, %191, %195, %178, %199, %203, %207, %211 in 0 : vector<32x512xf32>, vector<32x512xf32>, vector<32x512xf32>, vector<32x512xf32>, vector<32x512xf32>, vector<32x512xf32>, vector<32x512xf32>, vector<32x512xf32>, vector<32x512xf32> -> vector<288x512xf32>
    %cst_134 = arith.constant dense<0.000000e+00> : vector<64x512xf32>
    %213 = tpu.matmul %179, %212, %cst_134 {dimension_numbers = #tpu.dot_dimension_numbers<[1], [0], [0], [1], [0, 0, 1, 1], [], []>} : vector<64x288xf32>, vector<288x512xf32>, vector<64x512xf32> -> vector<64x512xf32>
    %214 = vector.extract_strided_slice %213 {offsets = [0, 0], sizes = [32, 512], strides = [1, 1]} : vector<64x512xf32> to vector<32x512xf32>
    %c0_135 = arith.constant 0 : index
    %c0_136 = arith.constant 0 : index
    %215 = vector.load %arg7[%c0_135, %c0_136] : memref<32x2xf32, #tpu.memory_space<vmem>>, vector<32x1xf32>
    %216 = vector.broadcast %215 : vector<32x1xf32> to vector<32x512xf32>
    %217 = arith.addf %214, %216 : vector<32x512xf32>
    %cst_137 = arith.constant 0.000000e+00 : f32
    %218 = vector.broadcast %cst_137 : f32 to vector<32x512xf32>
    %219 = arith.maximumf %217, %218 : vector<32x512xf32>
    %220 = vector.extract_strided_slice %213 {offsets = [32, 0], sizes = [32, 512], strides = [1, 1]} : vector<64x512xf32> to vector<32x512xf32>
    %c0_138 = arith.constant 0 : index
    %c0_139 = arith.constant 0 : index
    %221 = vector.load %arg6[%c0_138, %c0_139] : memref<32x288xf32, #tpu.memory_space<vmem>>, vector<32x288xf32>
    %c17_i32_140 = arith.constant 17 : i32
    %222 = tpu.dynamic_rotate %219 by %c17_i32_140 dim 1 : vector<32x512xf32>, i32 -> vector<32x512xf32>
    %c0_141 = arith.constant 0 : index
    %c0_142 = arith.constant 0 : index
    %223 = vector.load %arg4[%c0_141, %c0_142] : memref<9x512xf32, #tpu.memory_space<vmem>>, vector<1x512xf32>
    %224 = vector.broadcast %223 : vector<1x512xf32> to vector<32x512xf32>
    %225 = arith.mulf %222, %224 : vector<32x512xf32>
    %c16_i32_143 = arith.constant 16 : i32
    %226 = tpu.dynamic_rotate %219 by %c16_i32_143 dim 1 : vector<32x512xf32>, i32 -> vector<32x512xf32>
    %c1_144 = arith.constant 1 : index
    %c0_145 = arith.constant 0 : index
    %227 = vector.load %arg4[%c1_144, %c0_145] : memref<9x512xf32, #tpu.memory_space<vmem>>, vector<1x512xf32>
    %228 = vector.broadcast %227 : vector<1x512xf32> to vector<32x512xf32>
    %229 = arith.mulf %226, %228 : vector<32x512xf32>
    %c15_i32_146 = arith.constant 15 : i32
    %230 = tpu.dynamic_rotate %219 by %c15_i32_146 dim 1 : vector<32x512xf32>, i32 -> vector<32x512xf32>
    %c2_147 = arith.constant 2 : index
    %c0_148 = arith.constant 0 : index
    %231 = vector.load %arg4[%c2_147, %c0_148] : memref<9x512xf32, #tpu.memory_space<vmem>>, vector<1x512xf32>
    %232 = vector.broadcast %231 : vector<1x512xf32> to vector<32x512xf32>
    %233 = arith.mulf %230, %232 : vector<32x512xf32>
    %c1_i32_149 = arith.constant 1 : i32
    %234 = tpu.dynamic_rotate %219 by %c1_i32_149 dim 1 : vector<32x512xf32>, i32 -> vector<32x512xf32>
    %c3_150 = arith.constant 3 : index
    %c0_151 = arith.constant 0 : index
    %235 = vector.load %arg4[%c3_150, %c0_151] : memref<9x512xf32, #tpu.memory_space<vmem>>, vector<1x512xf32>
    %236 = vector.broadcast %235 : vector<1x512xf32> to vector<32x512xf32>
    %237 = arith.mulf %234, %236 : vector<32x512xf32>
    %c511_i32_152 = arith.constant 511 : i32
    %238 = tpu.dynamic_rotate %219 by %c511_i32_152 dim 1 : vector<32x512xf32>, i32 -> vector<32x512xf32>
    %c5_153 = arith.constant 5 : index
    %c0_154 = arith.constant 0 : index
    %239 = vector.load %arg4[%c5_153, %c0_154] : memref<9x512xf32, #tpu.memory_space<vmem>>, vector<1x512xf32>
    %240 = vector.broadcast %239 : vector<1x512xf32> to vector<32x512xf32>
    %241 = arith.mulf %238, %240 : vector<32x512xf32>
    %c497_i32_155 = arith.constant 497 : i32
    %242 = tpu.dynamic_rotate %219 by %c497_i32_155 dim 1 : vector<32x512xf32>, i32 -> vector<32x512xf32>
    %c6_156 = arith.constant 6 : index
    %c0_157 = arith.constant 0 : index
    %243 = vector.load %arg4[%c6_156, %c0_157] : memref<9x512xf32, #tpu.memory_space<vmem>>, vector<1x512xf32>
    %244 = vector.broadcast %243 : vector<1x512xf32> to vector<32x512xf32>
    %245 = arith.mulf %242, %244 : vector<32x512xf32>
    %c496_i32_158 = arith.constant 496 : i32
    %246 = tpu.dynamic_rotate %219 by %c496_i32_158 dim 1 : vector<32x512xf32>, i32 -> vector<32x512xf32>
    %c7_159 = arith.constant 7 : index
    %c0_160 = arith.constant 0 : index
    %247 = vector.load %arg4[%c7_159, %c0_160] : memref<9x512xf32, #tpu.memory_space<vmem>>, vector<1x512xf32>
    %248 = vector.broadcast %247 : vector<1x512xf32> to vector<32x512xf32>
    %249 = arith.mulf %246, %248 : vector<32x512xf32>
    %c495_i32_161 = arith.constant 495 : i32
    %250 = tpu.dynamic_rotate %219 by %c495_i32_161 dim 1 : vector<32x512xf32>, i32 -> vector<32x512xf32>
    %c8_162 = arith.constant 8 : index
    %c0_163 = arith.constant 0 : index
    %251 = vector.load %arg4[%c8_162, %c0_163] : memref<9x512xf32, #tpu.memory_space<vmem>>, vector<1x512xf32>
    %252 = vector.broadcast %251 : vector<1x512xf32> to vector<32x512xf32>
    %253 = arith.mulf %250, %252 : vector<32x512xf32>
    %254 = tpu.concatenate %225, %229, %233, %237, %219, %241, %245, %249, %253 in 0 : vector<32x512xf32>, vector<32x512xf32>, vector<32x512xf32>, vector<32x512xf32>, vector<32x512xf32>, vector<32x512xf32>, vector<32x512xf32>, vector<32x512xf32>, vector<32x512xf32> -> vector<288x512xf32>
    %cst_164 = arith.constant dense<0.000000e+00> : vector<32x512xf32>
    %255 = tpu.matmul %221, %254, %cst_164 {dimension_numbers = #tpu.dot_dimension_numbers<[1], [0], [0], [1], [0, 0, 1, 1], [], []>} : vector<32x288xf32>, vector<288x512xf32>, vector<32x512xf32> -> vector<32x512xf32>
    %256 = arith.addf %255, %220 : vector<32x512xf32>
    %c0_165 = arith.constant 0 : index
    %c1_166 = arith.constant 1 : index
    %257 = vector.load %arg7[%c0_165, %c1_166] : memref<32x2xf32, #tpu.memory_space<vmem>>, vector<32x1xf32>
    %258 = vector.broadcast %257 : vector<32x1xf32> to vector<32x512xf32>
    %259 = arith.addf %256, %258 : vector<32x512xf32>
    %cst_167 = arith.constant 0.000000e+00 : f32
    %260 = vector.broadcast %cst_167 : f32 to vector<32x512xf32>
    %261 = arith.maximumf %259, %260 : vector<32x512xf32>
    %c0_168 = arith.constant 0 : index
    %c0_169 = arith.constant 0 : index
    %c0_170 = arith.constant 0 : index
    %262 = vector.load %arg8[%c0_168, %c0_169, %c0_170] : memref<1x32x512xf32, #tpu.memory_space<vmem>>, vector<1x32x512xf32>
    %263 = vector.shape_cast %262 : vector<1x32x512xf32> to vector<32x512xf32>
    %264 = vector.shape_cast %261 : vector<32x512xf32> to vector<1x32x512xf32>
    tpu.vector_store %arg8[%c0_168, %c0_169, %c0_170], %264 {strides = array<i32>} : memref<1x32x512xf32, #tpu.memory_space<vmem>>, vector<1x32x512xf32>,
    return
  }
  func.func @transform_0(%arg0: i32) -> (i32, i32, i32) {
    %c0_i32 = arith.constant 0 : i32
    %c0_i32_0 = arith.constant 0 : i32
    %c0_i32_1 = arith.constant 0 : i32
    return %arg0, %c0_i32, %c0_i32_0 : i32, i32, i32
  }
  func.func @transform_1(%arg0: i32) -> (i32, i32, i32) {
    %c0_i32 = arith.constant 0 : i32
    %c0_i32_0 = arith.constant 0 : i32
    %c0_i32_1 = arith.constant 0 : i32
    return %arg0, %c0_i32, %c0_i32_0 : i32, i32, i32
  }
  func.func @transform_2(%arg0: i32) -> (i32, i32) {
    %c0_i32 = arith.constant 0 : i32
    %c0_i32_0 = arith.constant 0 : i32
    %c0_i32_1 = arith.constant 0 : i32
    return %c0_i32, %c0_i32_0 : i32, i32
  }
  func.func @transform_3(%arg0: i32) -> (i32, i32) {
    %c0_i32 = arith.constant 0 : i32
    %c0_i32_0 = arith.constant 0 : i32
    %c0_i32_1 = arith.constant 0 : i32
    return %c0_i32, %c0_i32_0 : i32, i32
  }
  func.func @transform_4(%arg0: i32) -> (i32, i32) {
    %c0_i32 = arith.constant 0 : i32
    %c0_i32_0 = arith.constant 0 : i32
    %c0_i32_1 = arith.constant 0 : i32
    return %c0_i32, %c0_i32_0 : i32, i32
  }
  func.func @transform_5(%arg0: i32) -> (i32, i32) {
    %c0_i32 = arith.constant 0 : i32
    %c0_i32_0 = arith.constant 0 : i32
    %c0_i32_1 = arith.constant 0 : i32
    return %c0_i32, %c0_i32_0 : i32, i32
  }
  func.func @transform_6(%arg0: i32) -> (i32, i32) {
    %c0_i32 = arith.constant 0 : i32
    %c0_i32_0 = arith.constant 0 : i32
    %c0_i32_1 = arith.constant 0 : i32
    return %c0_i32, %c0_i32_0 : i32, i32
  }
  func.func @transform_7(%arg0: i32) -> (i32, i32, i32) {
    %c0_i32 = arith.constant 0 : i32
    %c0_i32_0 = arith.constant 0 : i32
    %c0_i32_1 = arith.constant 0 : i32
    return %arg0, %c0_i32, %c0_i32_0 : i32, i32, i32
  }
}

</mosaic_0001>

<llo_original>
// kernel: tpu_custom_call.1
$region0: #{tpu_custom_call.1}
  #allocation0 [shape = 'u32[]', space=smem, size = 0x4, offset = 0x4, fixed_abs, tag = 'smem constant byte address 0x4 - core index']
  #allocation1 [shape = 'u32[144,128]{1,0:T(1,128)}', space=vmem, size = 0x12000, scoped, tag = 'internal scratch']
  #allocation2 [shape = 'f32[32,512]{1,0:T(8,128)}', space=vmem, size = 0x10000, scoped, tag = 'scratch operand']
  %s0 = inlined_call_operand.vmem [shape: f32[2,4,512], index: 0, kind: input, shape index: {}]
  %s1 = inlined_call_operand.hbm [shape: f32[2,4,512], index: 1, kind: input, shape index: {}]
  %s2 = inlined_call_operand.hbm [shape: f32[25,512], index: 2, kind: input, shape index: {}]
  %s3 = inlined_call_operand.hbm [shape: f32[9,512], index: 3, kind: input, shape index: {}]
  %s4 = inlined_call_operand.hbm [shape: f32[64,288], index: 4, kind: input, shape index: {}]
  %s5 = inlined_call_operand.hbm [shape: f32[32,288], index: 5, kind: input, shape index: {}]
  %s6 = inlined_call_operand.vmem [shape: f32[32,2], index: 6, kind: input, shape index: {}]
  %s7 = inlined_call_operand.hbm [shape: f32[2,32,512], index: 7, kind: output, shape index: {}]
  %s8 = sld [smem:[#allocation0]]
  $region81: #{tpu_custom_call.1} parent=0
    _
  %s10 = ssub.s32 1, %s8
  %s11 = scalar_select 0, %s10, %s8
  $region1: #{tpu_custom_call.1} parent=0
    #allocation3 [shape = 'u8[16384]{0}', space=vmem, size = 0x4000, scoped, tag = 'input window, operand 1']
    #allocation4 [shape = 's32[2]{0}', space=sflag, size = 0x8, scoped, tag = 'scoped memory for tpu_custom_call.1']
    #allocation5 [shape = 's32[2]{0}', space=sflag, size = 0x8, scoped, tag = 'scoped memory for tpu_custom_call.1']
    #allocation6 [shape = 'u8[65536]{0}', space=vmem, size = 0x10000, scoped, tag = 'input window, operand 2, single buffered']
    #allocation7 [shape = 's32[1]{0}', space=sflag, size = 0x4, scoped, tag = 'scoped memory for tpu_custom_call.1']
    #allocation8 [shape = 'u8[32768]{0}', space=vmem, size = 0x8000, scoped, tag = 'input window, operand 3, single buffered']
    #allocation9 [shape = 'u8[98304]{0}', space=vmem, size = 0x18000, scoped, tag = 'input window, operand 4, single buffered']
    #allocation10 [shape = 's32[1]{0}', space=sflag, size = 0x4, scoped, tag = 'scoped memory for tpu_custom_call.1']
    #allocation11 [shape = 'u8[49152]{0}', space=vmem, size = 0xc000, scoped, tag = 'input window, operand 5, single buffered']
    #allocation12 [shape = 'u8[131072]{0}', space=vmem, size = 0x20000, scoped, tag = 'output window, operand 0']
    %12 = vsyncpa [#allocation4], 0
    %s13 = scalar_lea.sflag [#allocation4], 1
    %14 = vsyncpa %s13, 0
    %15 = vsyncpa [#allocation7], 0
    %16 = vsyncpa [#allocation10], 0
    %17 = vsyncpa [#allocation5], 0
    %s18 = scalar_lea.sflag [#allocation5], 1
    %19 = vsyncpa %s18, 0
    loop: start=0, step=1, limit=4
    $region2: #{tpu_custom_call.1} parent=1 // loop_pre_header
      _
    $region3: #{tpu_custom_call.1} parent=1 // loop_header
      %s21 = sphi 0, %s25
      %p22 = scmp.ge.s32.totalorder %s21, 4
      %s31 = sphi 0, %s33
      %s34 = sphi 0, %s31
      %s35 = sphi 0, %s34
      %s51 = sphi 0, %s35
      %s57 = sphi 0, %s59
      %s60 = sphi 0, %s57
      %s61 = sphi 0, %s60
      %s77 = sphi 0, %s61
      %s81 = sphi 0, %s81
      %s83 = sphi 0, %s81
      %s84 = sphi 0, %s83
      %s98 = sphi 0, %s84
      %s102 = sphi 0, %s102
      %s104 = sphi 0, %s102
      %s105 = sphi 0, %s104
      %s119 = sphi 0, %s105
      %s123 = sphi 0, %s123
      %s125 = sphi 0, %s123
      %s126 = sphi 0, %s125
      %s140 = sphi 0, %s126
      %s144 = sphi 0, %s144
      %s146 = sphi 0, %s144
      %s147 = sphi 0, %s146
      %s161 = sphi 0, %s147
      %s165 = sphi 0, %s165
      %s167 = sphi 0, %s165
      %s168 = sphi 0, %s167
      %s182 = sphi 0, %s168
      %s188 = sphi 0, %s190
      %s191 = sphi 0, %s188
      %s192 = sphi 0, %s191
      %s208 = sphi 0, %s192
    $region4: #{tpu_custom_call.1} parent=1 // loop_header_branch
      %24 = sbr.rel (%p22) target = $region8
    $region5: #{tpu_custom_call.1} parent=1 // loop_body
      %s26 = ssub.s32 %s21, 1
      %s27 = ssub.s32 %s21, 2
      %s28 = sadd.s32 %s21, 1
      %s29 = ssub.s32 %s21, %s28
      %p30 = scmp.eq.s32.totalorder %s29, 0
      %s32 = sadd.s32 %s31, 1
      %s33 = scalar_select %p30, %s31, %s32
      %p36 = pneg %p30
      %p37 = scmp.eq.s32.totalorder %s21, 1
      %p38 = por %p36, %p37
      %p39 = scmp.ne.s32.totalorder %s31, %s34
      %p40 = scmp.eq.s32.totalorder %s21, 0
      %p41 = por %p39, %p40
      %p42 = scmp.ne.s32.totalorder %s31, %s34
      %p43 = scmp.eq.s32.totalorder %s26, 1
      %p44 = por %p42, %p43
      %p45 = scmp.ne.s32.totalorder %s34, %s35
      %p46 = scmp.eq.s32.totalorder %s26, 0
      %p47 = por %p45, %p46
      %p48 = scmp.ne.s32.totalorder %s34, %s35
      %p49 = scmp.eq.s32.totalorder %s27, 1
      %p50 = por %p48, %p49
      %p52 = scmp.ne.s32.totalorder %s35, %s51
      %p53 = scmp.eq.s32.totalorder %s27, 0
      %p54 = por %p52, %p53
      %s55 = ssub.s32 %s21, %s28
      %p56 = scmp.eq.s32.totalorder %s55, 0
      %s58 = sadd.s32 %s57, 1
      %s59 = scalar_select %p56, %s57, %s58
      %p62 = pneg %p56
      %p63 = scmp.eq.s32.totalorder %s21, 1
      %p64 = por %p62, %p63
      %p65 = scmp.ne.s32.totalorder %s57, %s60
      %p66 = scmp.eq.s32.totalorder %s21, 0
      %p67 = por %p65, %p66
      %p68 = scmp.ne.s32.totalorder %s57, %s60
      %p69 = scmp.eq.s32.totalorder %s26, 1
      %p70 = por %p68, %p69
      %p71 = scmp.ne.s32.totalorder %s60, %s61
      %p72 = scmp.eq.s32.totalorder %s26, 0
      %p73 = por %p71, %p72
      %p74 = scmp.ne.s32.totalorder %s60, %s61
      %p75 = scmp.eq.s32.totalorder %s27, 1
      %p76 = por %p74, %p75
      %p78 = scmp.ne.s32.totalorder %s61, %s77
      %p79 = scmp.eq.s32.totalorder %s27, 0
      %p80 = por %p78, %p79
      %s82 = sadd.s32 %s81, 1
      %p85 = scmp.eq.s32.totalorder %s21, 1
      %p86 = scmp.ne.s32.totalorder %s81, %s83
      %p87 = scmp.eq.s32.totalorder %s21, 0
      %p88 = por %p86, %p87
      %p89 = scmp.ne.s32.totalorder %s81, %s83
      %p90 = scmp.eq.s32.totalorder %s26, 1
      %p91 = por %p89, %p90
      %p92 = scmp.ne.s32.totalorder %s83, %s84
      %p93 = scmp.eq.s32.totalorder %s26, 0
      %p94 = por %p92, %p93
      %p95 = scmp.ne.s32.totalorder %s83, %s84
      %p96 = scmp.eq.s32.totalorder %s27, 1
      %p97 = por %p95, %p96
      %p99 = scmp.ne.s32.totalorder %s84, %s98
      %p100 = scmp.eq.s32.totalorder %s27, 0
      %p101 = por %p99, %p100
      %s103 = sadd.s32 %s102, 1
      %p106 = scmp.eq.s32.totalorder %s21, 1
      %p107 = scmp.ne.s32.totalorder %s102, %s104
      %p108 = scmp.eq.s32.totalorder %s21, 0
      %p109 = por %p107, %p108
      %p110 = scmp.ne.s32.totalorder %s102, %s104
      %p111 = scmp.eq.s32.totalorder %s26, 1
      %p112 = por %p110, %p111
      %p113 = scmp.ne.s32.totalorder %s104, %s105
      %p114 = scmp.eq.s32.totalorder %s26, 0
      %p115 = por %p113, %p114
      %p116 = scmp.ne.s32.totalorder %s104, %s105
      %p117 = scmp.eq.s32.totalorder %s27, 1
      %p118 = por %p116, %p117
      %p120 = scmp.ne.s32.totalorder %s105, %s119
      %p121 = scmp.eq.s32.totalorder %s27, 0
      %p122 = por %p120, %p121
      %s124 = sadd.s32 %s123, 1
      %p127 = scmp.eq.s32.totalorder %s21, 1
      %p128 = scmp.ne.s32.totalorder %s123, %s125
      %p129 = scmp.eq.s32.totalorder %s21, 0
      %p130 = por %p128, %p129
      %p131 = scmp.ne.s32.totalorder %s123, %s125
      %p132 = scmp.eq.s32.totalorder %s26, 1
      %p133 = por %p131, %p132
      %p134 = scmp.ne.s32.totalorder %s125, %s126
      %p135 = scmp.eq.s32.totalorder %s26, 0
      %p136 = por %p134, %p135
      %p137 = scmp.ne.s32.totalorder %s125, %s126
      %p138 = scmp.eq.s32.totalorder %s27, 1
      %p139 = por %p137, %p138
      %p141 = scmp.ne.s32.totalorder %s126, %s140
      %p142 = scmp.eq.s32.totalorder %s27, 0
      %p143 = por %p141, %p142
      %s145 = sadd.s32 %s144, 1
      %p148 = scmp.eq.s32.totalorder %s21, 1
      %p149 = scmp.ne.s32.totalorder %s144, %s146
      %p150 = scmp.eq.s32.totalorder %s21, 0
      %p151 = por %p149, %p150
      %p152 = scmp.ne.s32.totalorder %s144, %s146
      %p153 = scmp.eq.s32.totalorder %s26, 1
      %p154 = por %p152, %p153
      %p155 = scmp.ne.s32.totalorder %s146, %s147
      %p156 = scmp.eq.s32.totalorder %s26, 0
      %p157 = por %p155, %p156
      %p158 = scmp.ne.s32.totalorder %s146, %s147
      %p159 = scmp.eq.s32.totalorder %s27, 1
      %p160 = por %p158, %p159
      %p162 = scmp.ne.s32.totalorder %s147, %s161
      %p163 = scmp.eq.s32.totalorder %s27, 0
      %p164 = por %p162, %p163
      %s166 = sadd.s32 %s165, 1
      %p169 = scmp.eq.s32.totalorder %s21, 1
      %p170 = scmp.ne.s32.totalorder %s165, %s167
      %p171 = scmp.eq.s32.totalorder %s21, 0
      %p172 = por %p170, %p171
      %p173 = scmp.ne.s32.totalorder %s165, %s167
      %p174 = scmp.eq.s32.totalorder %s26, 1
      %p175 = por %p173, %p174
      %p176 = scmp.ne.s32.totalorder %s167, %s168
      %p177 = scmp.eq.s32.totalorder %s26, 0
      %p178 = por %p176, %p177
      %p179 = scmp.ne.s32.totalorder %s167, %s168
      %p180 = scmp.eq.s32.totalorder %s27, 1
      %p181 = por %p179, %p180
      %p183 = scmp.ne.s32.totalorder %s168, %s182
      %p184 = scmp.eq.s32.totalorder %s27, 0
      %p185 = por %p183, %p184
      %s186 = ssub.s32 %s21, %s28
      %p187 = scmp.eq.s32.totalorder %s186, 0
      %s189 = sadd.s32 %s188, 1
      %s190 = scalar_select %p187, %s188, %s189
      %p193 = pneg %p187
      %p194 = scmp.eq.s32.totalorder %s21, 1
      %p195 = por %p193, %p194
      %p196 = scmp.ne.s32.totalorder %s188, %s191
      %p197 = scmp.eq.s32.totalorder %s21, 0
      %p198 = por %p196, %p197
      %p199 = scmp.ne.s32.totalorder %s188, %s191
      %p200 = scmp.eq.s32.totalorder %s26, 1
      %p201 = por %p199, %p200
      %p202 = scmp.ne.s32.totalorder %s191, %s192
      %p203 = scmp.eq.s32.totalorder %s26, 0
      %p204 = por %p202, %p203
      %p205 = scmp.ne.s32.totalorder %s191, %s192
      %p206 = scmp.eq.s32.totalorder %s27, 1
      %p207 = por %p205, %p206
      %p209 = scmp.ne.s32.totalorder %s192, %s208
      %p210 = scmp.eq.s32.totalorder %s27, 0
      %p211 = por %p209, %p210
      %p212 = scmp.le.s32.totalorder 1, %s21
      %p213 = scmp.lt.s32.totalorder %s21, 3
      %p214 = pnand %p212, %p213
      %p215 = pneg %p214
      // Predicated region
      $region9: #{tpu_custom_call.1} parent=5 // pred_check
        _
      $region10: #{tpu_custom_call.1} parent=5 // pred_check_branch
        %217 = sbr.rel (%p214) target = $region12
      $region11: #{tpu_custom_call.1} parent=5 // pred_region
        %s218 = ssub.s32 %s21, 1
        // Predicated region
        $region13: #{tpu_custom_call.1} parent=11 // pred_check
          %p219 = pneg %p94
        $region14: #{tpu_custom_call.1} parent=11 // pred_check_branch
          %221 = sbr.rel (%p219) target = $region16
        $region15: #{tpu_custom_call.1} parent=11 // pred_region
          %s223 = ssub.s32 2048, 2048
          %224 = vsyncadd [#allocation7], %s223
          %s225 = sshll.u32 [#allocation6], 4
          %s226 = int_to_ptr.vmem [resolvable:$true] %s225
          %231 = dma.hbm_to_vmem [thread:$0]  %s2, 2048, %s226, [#allocation7], 512, 512, 32
        $region16: #{tpu_custom_call.1} parent=11 // pred_fallthru
          _
        // Predicated region
        $region17: #{tpu_custom_call.1} parent=11 // pred_check
          %p232 = pneg %p115
        $region18: #{tpu_custom_call.1} parent=11 // pred_check_branch
          %234 = sbr.rel (%p232) target = $region20
        $region19: #{tpu_custom_call.1} parent=11 // pred_region
          %s236 = ssub.s32 1024, 1024
          %237 = vsyncadd [#allocation7], %s236
          %s238 = sshll.u32 [#allocation8], 4
          %s239 = int_to_ptr.vmem [resolvable:$true] %s238
          %244 = dma.hbm_to_vmem [thread:$0]  %s3, 1024, %s239, [#allocation7], 512, 512, 32
        $region20: #{tpu_custom_call.1} parent=11 // pred_fallthru
          _
        // Predicated region
        $region21: #{tpu_custom_call.1} parent=11 // pred_check
          %p245 = pneg %p136
        $region22: #{tpu_custom_call.1} parent=11 // pred_check_branch
          %247 = sbr.rel (%p245) target = $region24
        $region23: #{tpu_custom_call.1} parent=11 // pred_region
          %s249 = ssub.s32 3072, 3072
          %250 = vsyncadd [#allocation10], %s249
          %s251 = sshll.u32 [#allocation9], 4
          %s252 = int_to_ptr.vmem [resolvable:$true] %s251
          %257 = dma.hbm_to_vmem [thread:$0]  %s4, 3072, %s252, [#allocation10], 384, 384, 24
        $region24: #{tpu_custom_call.1} parent=11 // pred_fallthru
          _
        // Predicated region
        $region25: #{tpu_custom_call.1} parent=11 // pred_check
          %p258 = pneg %p157
        $region26: #{tpu_custom_call.1} parent=11 // pred_check_branch
          %260 = sbr.rel (%p258) target = $region28
        $region27: #{tpu_custom_call.1} parent=11 // pred_region
          %s262 = ssub.s32 1536, 1536
          %263 = vsyncadd [#allocation10], %s262
          %s264 = sshll.u32 [#allocation11], 4
          %s265 = int_to_ptr.vmem [resolvable:$true] %s264
          %270 = dma.hbm_to_vmem [thread:$0]  %s5, 1536, %s265, [#allocation10], 384, 384, 24
        $region28: #{tpu_custom_call.1} parent=11 // pred_fallthru
          _
        // Predicated region
        $region29: #{tpu_custom_call.1} parent=11 // pred_check
          %p271 = pneg %p178
        $region30: #{tpu_custom_call.1} parent=11 // pred_check_branch
          %273 = sbr.rel (%p271) target = $region32
        $region31: #{tpu_custom_call.1} parent=11 // pred_region
          _
        $region32: #{tpu_custom_call.1} parent=11 // pred_fallthru
          _
      $region12: #{tpu_custom_call.1} parent=5 // pred_fallthru
        _
      %p274 = scmp.lt.s32.totalorder %s21, 2
      // Predicated region
      $region33: #{tpu_custom_call.1} parent=5 // pred_check
        %p275 = pneg %p274
      $region34: #{tpu_custom_call.1} parent=5 // pred_check_branch
        %277 = sbr.rel (%p275) target = $region36
      $region35: #{tpu_custom_call.1} parent=5 // pred_region
        // Predicated region
        $region37: #{tpu_custom_call.1} parent=35 // pred_check
          %p278 = pneg %p41
        $region38: #{tpu_custom_call.1} parent=35 // pred_check_branch
          %280 = sbr.rel (%p278) target = $region40
        $region39: #{tpu_custom_call.1} parent=35 // pred_region
          %p281 = scmp.lt.s32.totalorder %s21, 1
          %s282 = scalar_select %p281, %s21, 1
          %s283 = smul.addr %s282, 4
          %s284 = smul.addr %s283, 4
          %s285 = scalar_lea.vmem %s0, %s284
        $region40: #{tpu_custom_call.1} parent=35 // pred_fallthru
          _
        // Predicated region
        $region41: #{tpu_custom_call.1} parent=35 // pred_check
          %p286 = pneg %p67
        $region42: #{tpu_custom_call.1} parent=35 // pred_check_branch
          %288 = sbr.rel (%p286) target = $region44
        $region43: #{tpu_custom_call.1} parent=35 // pred_region
          %s289 = sand.u32 %s57, 1
          %s290 = scalar_lea.sflag [#allocation4], %s289
          %s291 = sand.u32 %s57, 1
          %s292 = smul.addr %s291, 16
          %s293 = scalar_lea.vmem [#allocation3], %s292
          %s295 = ssub.s32 256, 256
          %296 = vsyncadd %s290, %s295
          %s297 = smul.addr %s21, 4
          %s298 = smul.addr %s297, 64
          %s299 = scalar_lea.hbm %s1, %s298
          %s301 = sshll.u32 %s293, 4
          %s302 = int_to_ptr.vmem [resolvable:$true] %s301
          %304 = dma.hbm_to_vmem [thread:$0]  %s299, 256, %s302, %s290
        $region44: #{tpu_custom_call.1} parent=35 // pred_fallthru
          _
      $region36: #{tpu_custom_call.1} parent=5 // pred_fallthru
        _
      %p305 = scmp.le.s32.totalorder 1, %s21
      %p306 = scmp.lt.s32.totalorder %s21, 3
      %p307 = pnand %p305, %p306
      %p308 = pneg %p307
      // Predicated region
      $region45: #{tpu_custom_call.1} parent=5 // pred_check
        _
      $region46: #{tpu_custom_call.1} parent=5 // pred_check_branch
        %310 = sbr.rel (%p307) target = $region48
      $region47: #{tpu_custom_call.1} parent=5 // pred_region
        %s311 = ssub.s32 %s21, 1
        %s312 = sand.u32 %s60, 1
        %s313 = scalar_lea.sflag [#allocation4], %s312
        %s314 = sand.u32 %s60, 1
        %s315 = smul.addr %s314, 16
        %s316 = scalar_lea.vmem [#allocation3], %s315
        // Predicated region
        $region49: #{tpu_custom_call.1} parent=47 // pred_check
          %p317 = pneg %p73
        $region50: #{tpu_custom_call.1} parent=47 // pred_check_branch
          %319 = sbr.rel (%p317) target = $region52
        $region51: #{tpu_custom_call.1} parent=47 // pred_region
          %320 = dma.done %s313, 256
        $region52: #{tpu_custom_call.1} parent=47 // pred_fallthru
          _
        // Predicated region
        $region53: #{tpu_custom_call.1} parent=47 // pred_check
          %p321 = pneg %p94
        $region54: #{tpu_custom_call.1} parent=47 // pred_check_branch
          %323 = sbr.rel (%p321) target = $region56
        $region55: #{tpu_custom_call.1} parent=47 // pred_region
          %324 = dma.done [#allocation7], 2048
        $region56: #{tpu_custom_call.1} parent=47 // pred_fallthru
          _
        // Predicated region
        $region57: #{tpu_custom_call.1} parent=47 // pred_check
          %p325 = pneg %p115
        $region58: #{tpu_custom_call.1} parent=47 // pred_check_branch
          %327 = sbr.rel (%p325) target = $region60
        $region59: #{tpu_custom_call.1} parent=47 // pred_region
          %328 = dma.done [#allocation7], 1024
        $region60: #{tpu_custom_call.1} parent=47 // pred_fallthru
          _
        // Predicated region
        $region61: #{tpu_custom_call.1} parent=47 // pred_check
          %p329 = pneg %p136
        $region62: #{tpu_custom_call.1} parent=47 // pred_check_branch
          %331 = sbr.rel (%p329) target = $region64
        $region63: #{tpu_custom_call.1} parent=47 // pred_region
          %332 = dma.done [#allocation10], 3072
        $region64: #{tpu_custom_call.1} parent=47 // pred_fallthru
          _
        // Predicated region
        $region65: #{tpu_custom_call.1} parent=47 // pred_check
          %p333 = pneg %p157
        $region66: #{tpu_custom_call.1} parent=47 // pred_check_branch
          %335 = sbr.rel (%p333) target = $region68
        $region67: #{tpu_custom_call.1} parent=47 // pred_region
          %336 = dma.done [#allocation10], 1536
        $region68: #{tpu_custom_call.1} parent=47 // pred_fallthru
          _
        %p337 = scmp.lt.s32.totalorder %s26, 1
        %s338 = scalar_select %p337, %s26, 1
        %s339 = smul.addr %s338, 4
        %s340 = smul.addr %s339, 4
        %s341 = scalar_lea.vmem %s0, %s340
        %p342 = pneg %p47
        %p343 = pneg %p44
        %s344 = sand.u32 %s60, 1
        %s345 = scalar_lea.sflag [#allocation4], %s344
        %s346 = sand.u32 %s60, 1
        %s347 = smul.addr %s346, 16
        %s348 = scalar_lea.vmem [#allocation3], %s347
        %p349 = pneg %p73
        %p350 = pneg %p70
        %p351 = pneg %p94
        %p352 = pneg %p91
        %p353 = pneg %p115
        %p354 = pneg %p112
        %p355 = pneg %p136
        %p356 = pneg %p133
        %p357 = pneg %p157
        %p358 = pneg %p154
        %p359 = pneg %p178
        %p360 = pneg %p175
        %p361 = pneg %p204
        %p362 = pneg %p201
        %s363 = sand.u32 %s191, 1
        %s364 = scalar_lea.sflag [#allocation5], %s363
        %s365 = sand.u32 %s191, 1
        %s366 = smul.addr %s365, 128
        %s367 = scalar_lea.vmem [#allocation12], %s366
        %p368 = scmp.lt.s32.totalorder %s26, 1
        %s369 = scalar_select %p368, %s26, 1
        %s370 = smul.addr %s369, 4
        %s371 = smul.addr %s370, 4
        %s372 = scalar_lea.vmem %s0, %s371
        %v373 = vld [vmem:[%s372] sm:$0xff]
        %v374 = vld [vmem:[%s372 + $0x8] sm:$0xff]
        %v375 = vld [vmem:[%s316] sm:$0xff]
        %v376 = vld [vmem:[%s316 + $0x8] sm:$0xff]
        %377 = vst [vmem:[#allocation2] sm:$0xff] 0.0
        %378 = vst [vmem:[#allocation2 + $0x8] sm:$0xff] 0.0
        %379 = vst [vmem:[#allocation2 + $0x10] sm:$0xff] 0.0
        %380 = vst [vmem:[#allocation2 + $0x18] sm:$0xff] 0.0
        %381 = vst [vmem:[#allocation2 + $0x20] sm:$0xff] 0.0
        %382 = vst [vmem:[#allocation2 + $0x28] sm:$0xff] 0.0
        %383 = vst [vmem:[#allocation2 + $0x30] sm:$0xff] 0.0
        %384 = vst [vmem:[#allocation2 + $0x38] sm:$0xff] 0.0
        %385 = vst [vmem:[#allocation2 + $0x40] sm:$0xff] 0.0
        %386 = vst [vmem:[#allocation2 + $0x48] sm:$0xff] 0.0
        %387 = vst [vmem:[#allocation2 + $0x50] sm:$0xff] 0.0
        %388 = vst [vmem:[#allocation2 + $0x58] sm:$0xff] 0.0
        %389 = vst [vmem:[#allocation2 + $0x60] sm:$0xff] 0.0
        %390 = vst [vmem:[#allocation2 + $0x68] sm:$0xff] 0.0
        %391 = vst [vmem:[#allocation2 + $0x70] sm:$0xff] 0.0
        %392 = vst [vmem:[#allocation2 + $0x78] sm:$0xff] 0.0
        %v395 = vcombine.high %v375, %v375
        %v396 = vcombine.high %v376, %v376
        %399 = vrot.lane.b32.xlu0 %v375, 34
        %v400 = vpop.permute.xlu0 %399
        %401 = vrot.lane.b32.xlu0 %v395, 34
        %v402 = vpop.permute.xlu0 %401
        %403 = vrot.lane.b32.xlu0 %v376, 34
        %v404 = vpop.permute.xlu0 %403
        %405 = vrot.lane.b32.xlu0 %v396, 34
        %v406 = vpop.permute.xlu0 %405
        %v407 = vlaneseq
        %v408 = vand.u32 %v407, 127
        %vm409 = vcmp.lt.s32.totalorder %v408, 34
        %v410 = vsel %vm409, %v404, %v406
        %v411 = vsel %vm409, %v402, %v404
        %v412 = vsel %vm409, %v400, %v402
        %v413 = vsel %vm409, %v406, %v400
        %v418 = vcombine.low %v413, %v412
        %v419 = vcombine.low %v411, %v410
        %v422 = vmul.f32 %v373, %v418
        %v423 = vmul.f32 %v374, %v419
        %v426 = vcombine.high %v422, %v422
        %v427 = vcombine.high %v423, %v423
        %vm430 = vcmask 1043456
        %v431 = vsel %vm430, %v422, 0.0
        %v432 = vrot.slane %v431, 4
        %v433 = vadd.f32 %v431, %v432
        %v434 = vrot.slane %v433, 2
        %v435 = vadd.f32 %v433, %v434
        %v436 = vrot.slane %v435, 1
        %v437 = vadd.f32 %v435, %v436
        %v438 = vsel %vm430, %v426, 0.0
        %v439 = vrot.slane %v438, 4
        %v440 = vadd.f32 %v438, %v439
        %v441 = vrot.slane %v440, 2
        %v442 = vadd.f32 %v440, %v441
        %v443 = vrot.slane %v442, 1
        %v444 = vadd.f32 %v442, %v443
        %v445 = vsel %vm430, %v423, 0.0
        %v446 = vrot.slane %v445, 4
        %v447 = vadd.f32 %v445, %v446
        %v448 = vrot.slane %v447, 2
        %v449 = vadd.f32 %v447, %v448
        %v450 = vrot.slane %v449, 1
        %v451 = vadd.f32 %v449, %v450
        %v452 = vsel %vm430, %v427, 0.0
        %v453 = vrot.slane %v452, 4
        %v454 = vadd.f32 %v452, %v453
        %v455 = vrot.slane %v454, 2
        %v456 = vadd.f32 %v454, %v455
        %v457 = vrot.slane %v456, 1
        %v458 = vadd.f32 %v456, %v457
        %v459 = vld [vmem:[#allocation6] ss:$8 sm:$0xf]
        %v461 = vlaneseq
        %v462 = vshrl.u32 %v461, 7
        %v463 = vsub.s32 0, %v462
        %v464 = vrot.slane %v459, %v463
        %v465 = vlaneseq
        %v466 = vshrl.u32 %v465, 7
        %v467 = vsub.s32 1, %v466
        %v468 = vrot.slane %v459, %v467
        %v469 = vlaneseq
        %v470 = vshrl.u32 %v469, 7
        %v471 = vsub.s32 2, %v470
        %v472 = vrot.slane %v459, %v471
        %v473 = vlaneseq
        %v474 = vshrl.u32 %v473, 7
        %v475 = vsub.s32 3, %v474
        %v476 = vrot.slane %v459, %v475
        %v481 = vmul.f32 %v437, %v464
        %v482 = vmul.f32 %v444, %v468
        %v483 = vmul.f32 %v451, %v472
        %v484 = vmul.f32 %v458, %v476
        %v489 = vcombine.low %v481, %v482
        %v490 = vcombine.low %v483, %v484
        %v492 = vunpack.c.l.s4 1966171168
        %v493 = vunpack.c.0.s8 %v492
        %v494 = vlaneseq
        %v495 = vshrl.u32 %v494, 7
        %v496 = vsub.s32 %v493, %v495
        %v497 = vrot.slane %v489, %v496
        %v499 = vunpack.c.l.s4 1966171168
        %v500 = vunpack.c.0.s8 %v499
        %v501 = vlaneseq
        %v502 = vshrl.u32 %v501, 7
        %v503 = vsub.s32 %v500, %v502
        %v504 = vrot.slane %v490, %v503
        %v505 = vcombine.low %v497, %v504
        %v507 = vunpack.c.l.s4 1966171168
        %v508 = vunpack.c.0.s8 %v507
        %v509 = vlaneseq
        %v510 = vshrl.u32 %v509, 7
        %v511 = vsub.s32 %v508, %v510
        %v512 = vrot.slane %v505, %v511
        %v514 = vlaneseq
        %vm515 = vcmp.ge.s32.totalorder %v514, 0
        %vm516 = vcmp.lt.s32.totalorder %v514, 512
        %vm517 = vmand %vm515, %vm516
        %518 = vst.msk [vmem:[#allocation2] ss:$8 sm:$0xf] %vm517, %v512
        %519 = vst.msk [vmem:[#allocation2] ss:$8 sm:$0x0] %vm517, %v512
        %520 = vrot.lane.b32.xlu0 %v375, 33
        %v521 = vpop.permute.xlu0 %520
        %522 = vrot.lane.b32.xlu0 %v395, 33
        %v523 = vpop.permute.xlu0 %522
        %524 = vrot.lane.b32.xlu0 %v376, 33
        %v525 = vpop.permute.xlu0 %524
        %526 = vrot.lane.b32.xlu0 %v396, 33
        %v527 = vpop.permute.xlu0 %526
        %vm528 = vcmp.lt.s32.totalorder %v408, 33
        %v529 = vsel %vm528, %v525, %v527
        %v530 = vsel %vm528, %v523, %v525
        %v531 = vsel %vm528, %v521, %v523
        %v532 = vsel %vm528, %v527, %v521
        %v537 = vcombine.low %v532, %v531
        %v538 = vcombine.low %v530, %v529
        %v541 = vmul.f32 %v373, %v537
        %v542 = vmul.f32 %v374, %v538
        %v545 = vcombine.high %v541, %v541
        %v546 = vcombine.high %v542, %v542
        %v549 = vsel %vm430, %v541, 0.0
        %v550 = vrot.slane %v549, 4
        %v551 = vadd.f32 %v549, %v550
        %v552 = vrot.slane %v551, 2
        %v553 = vadd.f32 %v551, %v552
        %v554 = vrot.slane %v553, 1
        %v555 = vadd.f32 %v553, %v554
        %v556 = vsel %vm430, %v545, 0.0
        %v557 = vrot.slane %v556, 4
        %v558 = vadd.f32 %v556, %v557
        %v559 = vrot.slane %v558, 2
        %v560 = vadd.f32 %v558, %v559
        %v561 = vrot.slane %v560, 1
        %v562 = vadd.f32 %v560, %v561
        %v563 = vsel %vm430, %v542, 0.0
        %v564 = vrot.slane %v563, 4
        %v565 = vadd.f32 %v563, %v564
        %v566 = vrot.slane %v565, 2
        %v567 = vadd.f32 %v565, %v566
        %v568 = vrot.slane %v567, 1
        %v569 = vadd.f32 %v567, %v568
        %v570 = vsel %vm430, %v546, 0.0
        %v571 = vrot.slane %v570, 4
        %v572 = vadd.f32 %v570, %v571
        %v573 = vrot.slane %v572, 2
        %v574 = vadd.f32 %v572, %v573
        %v575 = vrot.slane %v574, 1
        %v576 = vadd.f32 %v574, %v575
        %s577 = scalar_lea.vmem [#allocation6], 1
        %v578 = vld [vmem:[%s577] ss:$8 sm:$0xf]
        %v580 = vlaneseq
        %v581 = vshrl.u32 %v580, 7
        %v582 = vsub.s32 0, %v581
        %v583 = vrot.slane %v578, %v582
        %v584 = vlaneseq
        %v585 = vshrl.u32 %v584, 7
        %v586 = vsub.s32 1, %v585
        %v587 = vrot.slane %v578, %v586
        %v588 = vlaneseq
        %v589 = vshrl.u32 %v588, 7
        %v590 = vsub.s32 2, %v589
        %v591 = vrot.slane %v578, %v590
        %v592 = vlaneseq
        %v593 = vshrl.u32 %v592, 7
        %v594 = vsub.s32 3, %v593
        %v595 = vrot.slane %v578, %v594
        %v600 = vmul.f32 %v555, %v583
        %v601 = vmul.f32 %v562, %v587
        %v602 = vmul.f32 %v569, %v591
        %v603 = vmul.f32 %v576, %v595
        %v608 = vcombine.low %v600, %v601
        %v609 = vcombine.low %v602, %v603
        %v611 = vunpack.c.l.s4 1966171168
        %v612 = vunpack.c.0.s8 %v611
        %v613 = vlaneseq
        %v614 = vshrl.u32 %v613, 7
        %v615 = vsub.s32 %v612, %v614
        %v616 = vrot.slane %v608, %v615
        %v618 = vunpack.c.l.s4 1966171168
        %v619 = vunpack.c.0.s8 %v618
        %v620 = vlaneseq
        %v621 = vshrl.u32 %v620, 7
        %v622 = vsub.s32 %v619, %v621
        %v623 = vrot.slane %v609, %v622
        %v624 = vcombine.low %v616, %v623
        %v626 = vunpack.c.l.s4 1966171168
        %v627 = vunpack.c.0.s8 %v626
        %v628 = vlaneseq
        %v629 = vshrl.u32 %v628, 7
        %v630 = vsub.s32 %v627, %v629
        %v631 = vrot.slane %v624, %v630
        %s633 = scalar_lea.vmem [#allocation2], 1
        %634 = vst.msk [vmem:[%s633] ss:$8 sm:$0xf] %vm517, %v631
        %635 = vst.msk [vmem:[%s633] ss:$8 sm:$0x0] %vm517, %v631
        %636 = vrot.lane.b32.xlu0 %v375, 32
        %v637 = vpop.permute.xlu0 %636
        %638 = vrot.lane.b32.xlu0 %v395, 32
        %v639 = vpop.permute.xlu0 %638
        %640 = vrot.lane.b32.xlu0 %v376, 32
        %v641 = vpop.permute.xlu0 %640
        %642 = vrot.lane.b32.xlu0 %v396, 32
        %v643 = vpop.permute.xlu0 %642
        %vm644 = vcmp.lt.s32.totalorder %v408, 32
        %v645 = vsel %vm644, %v641, %v643
        %v646 = vsel %vm644, %v639, %v641
        %v647 = vsel %vm644, %v637, %v639
        %v648 = vsel %vm644, %v643, %v637
        %v653 = vcombine.low %v648, %v647
        %v654 = vcombine.low %v646, %v645
        %v657 = vmul.f32 %v373, %v653
        %v658 = vmul.f32 %v374, %v654
        %v661 = vcombine.high %v657, %v657
        %v662 = vcombine.high %v658, %v658
        %v665 = vsel %vm430, %v657, 0.0
        %v666 = vrot.slane %v665, 4
        %v667 = vadd.f32 %v665, %v666
        %v668 = vrot.slane %v667, 2
        %v669 = vadd.f32 %v667, %v668
        %v670 = vrot.slane %v669, 1
        %v671 = vadd.f32 %v669, %v670
        %v672 = vsel %vm430, %v661, 0.0
        %v673 = vrot.slane %v672, 4
        %v674 = vadd.f32 %v672, %v673
        %v675 = vrot.slane %v674, 2
        %v676 = vadd.f32 %v674, %v675
        %v677 = vrot.slane %v676, 1
        %v678 = vadd.f32 %v676, %v677
        %v679 = vsel %vm430, %v658, 0.0
        %v680 = vrot.slane %v679, 4
        %v681 = vadd.f32 %v679, %v680
        %v682 = vrot.slane %v681, 2
        %v683 = vadd.f32 %v681, %v682
        %v684 = vrot.slane %v683, 1
        %v685 = vadd.f32 %v683, %v684
        %v686 = vsel %vm430, %v662, 0.0
        %v687 = vrot.slane %v686, 4
        %v688 = vadd.f32 %v686, %v687
        %v689 = vrot.slane %v688, 2
        %v690 = vadd.f32 %v688, %v689
        %v691 = vrot.slane %v690, 1
        %v692 = vadd.f32 %v690, %v691
        %s693 = scalar_lea.vmem [#allocation6], 2
        %v694 = vld [vmem:[%s693] ss:$8 sm:$0xf]
        %v696 = vlaneseq
        %v697 = vshrl.u32 %v696, 7
        %v698 = vsub.s32 0, %v697
        %v699 = vrot.slane %v694, %v698
        %v700 = vlaneseq
        %v701 = vshrl.u32 %v700, 7
        %v702 = vsub.s32 1, %v701
        %v703 = vrot.slane %v694, %v702
        %v704 = vlaneseq
        %v705 = vshrl.u32 %v704, 7
        %v706 = vsub.s32 2, %v705
        %v707 = vrot.slane %v694, %v706
        %v708 = vlaneseq
        %v709 = vshrl.u32 %v708, 7
        %v710 = vsub.s32 3, %v709
        %v711 = vrot.slane %v694, %v710
        %v716 = vmul.f32 %v671, %v699
        %v717 = vmul.f32 %v678, %v703
        %v718 = vmul.f32 %v685, %v707
        %v719 = vmul.f32 %v692, %v711
        %v724 = vcombine.low %v716, %v717
        %v725 = vcombine.low %v718, %v719
        %v727 = vunpack.c.l.s4 1966171168
        %v728 = vunpack.c.0.s8 %v727
        %v729 = vlaneseq
        %v730 = vshrl.u32 %v729, 7
        %v731 = vsub.s32 %v728, %v730
        %v732 = vrot.slane %v724, %v731
        %v734 = vunpack.c.l.s4 1966171168
        %v735 = vunpack.c.0.s8 %v734
        %v736 = vlaneseq
        %v737 = vshrl.u32 %v736, 7
        %v738 = vsub.s32 %v735, %v737
        %v739 = vrot.slane %v725, %v738
        %v740 = vcombine.low %v732, %v739
        %v742 = vunpack.c.l.s4 1966171168
        %v743 = vunpack.c.0.s8 %v742
        %v744 = vlaneseq
        %v745 = vshrl.u32 %v744, 7
        %v746 = vsub.s32 %v743, %v745
        %v747 = vrot.slane %v740, %v746
        %s749 = scalar_lea.vmem [#allocation2], 2
        %750 = vst.msk [vmem:[%s749] ss:$8 sm:$0xf] %vm517, %v747
        %751 = vst.msk [vmem:[%s749] ss:$8 sm:$0x0] %vm517, %v747
        %752 = vrot.lane.b32.xlu0 %v375, 31
        %v753 = vpop.permute.xlu0 %752
        %754 = vrot.lane.b32.xlu0 %v395, 31
        %v755 = vpop.permute.xlu0 %754
        %756 = vrot.lane.b32.xlu0 %v376, 31
        %v757 = vpop.permute.xlu0 %756
        %758 = vrot.lane.b32.xlu0 %v396, 31
        %v759 = vpop.permute.xlu0 %758
        %vm760 = vcmp.lt.s32.totalorder %v408, 31
        %v761 = vsel %vm760, %v757, %v759
        %v762 = vsel %vm760, %v755, %v757
        %v763 = vsel %vm760, %v753, %v755
        %v764 = vsel %vm760, %v759, %v753
        %v769 = vcombine.low %v764, %v763
        %v770 = vcombine.low %v762, %v761
        %v773 = vmul.f32 %v373, %v769
        %v774 = vmul.f32 %v374, %v770
        %v777 = vcombine.high %v773, %v773
        %v778 = vcombine.high %v774, %v774
        %v781 = vsel %vm430, %v773, 0.0
        %v782 = vrot.slane %v781, 4
        %v783 = vadd.f32 %v781, %v782
        %v784 = vrot.slane %v783, 2
        %v785 = vadd.f32 %v783, %v784
        %v786 = vrot.slane %v785, 1
        %v787 = vadd.f32 %v785, %v786
        %v788 = vsel %vm430, %v777, 0.0
        %v789 = vrot.slane %v788, 4
        %v790 = vadd.f32 %v788, %v789
        %v791 = vrot.slane %v790, 2
        %v792 = vadd.f32 %v790, %v791
        %v793 = vrot.slane %v792, 1
        %v794 = vadd.f32 %v792, %v793
        %v795 = vsel %vm430, %v774, 0.0
        %v796 = vrot.slane %v795, 4
        %v797 = vadd.f32 %v795, %v796
        %v798 = vrot.slane %v797, 2
        %v799 = vadd.f32 %v797, %v798
        %v800 = vrot.slane %v799, 1
        %v801 = vadd.f32 %v799, %v800
        %v802 = vsel %vm430, %v778, 0.0
        %v803 = vrot.slane %v802, 4
        %v804 = vadd.f32 %v802, %v803
        %v805 = vrot.slane %v804, 2
        %v806 = vadd.f32 %v804, %v805
        %v807 = vrot.slane %v806, 1
        %v808 = vadd.f32 %v806, %v807
        %s809 = scalar_lea.vmem [#allocation6], 3
        %v810 = vld [vmem:[%s809] ss:$8 sm:$0xf]
        %v812 = vlaneseq
        %v813 = vshrl.u32 %v812, 7
        %v814 = vsub.s32 0, %v813
        %v815 = vrot.slane %v810, %v814
        %v816 = vlaneseq
        %v817 = vshrl.u32 %v816, 7
        %v818 = vsub.s32 1, %v817
        %v819 = vrot.slane %v810, %v818
        %v820 = vlaneseq
        %v821 = vshrl.u32 %v820, 7
        %v822 = vsub.s32 2, %v821
        %v823 = vrot.slane %v810, %v822
        %v824 = vlaneseq
        %v825 = vshrl.u32 %v824, 7
        %v826 = vsub.s32 3, %v825
        %v827 = vrot.slane %v810, %v826
        %v832 = vmul.f32 %v787, %v815
        %v833 = vmul.f32 %v794, %v819
        %v834 = vmul.f32 %v801, %v823
        %v835 = vmul.f32 %v808, %v827
        %v840 = vcombine.low %v832, %v833
        %v841 = vcombine.low %v834, %v835
        %v843 = vunpack.c.l.s4 1966171168
        %v844 = vunpack.c.0.s8 %v843
        %v845 = vlaneseq
        %v846 = vshrl.u32 %v845, 7
        %v847 = vsub.s32 %v844, %v846
        %v848 = vrot.slane %v840, %v847
        %v850 = vunpack.c.l.s4 1966171168
        %v851 = vunpack.c.0.s8 %v850
        %v852 = vlaneseq
        %v853 = vshrl.u32 %v852, 7
        %v854 = vsub.s32 %v851, %v853
        %v855 = vrot.slane %v841, %v854
        %v856 = vcombine.low %v848, %v855
        %v858 = vunpack.c.l.s4 1966171168
        %v859 = vunpack.c.0.s8 %v858
        %v860 = vlaneseq
        %v861 = vshrl.u32 %v860, 7
        %v862 = vsub.s32 %v859, %v861
        %v863 = vrot.slane %v856, %v862
        %s865 = scalar_lea.vmem [#allocation2], 3
        %866 = vst.msk [vmem:[%s865] ss:$8 sm:$0xf] %vm517, %v863
        %867 = vst.msk [vmem:[%s865] ss:$8 sm:$0x0] %vm517, %v863
        %868 = vrot.lane.b32.xlu0 %v375, 30
        %v869 = vpop.permute.xlu0 %868
        %870 = vrot.lane.b32.xlu0 %v395, 30
        %v871 = vpop.permute.xlu0 %870
        %872 = vrot.lane.b32.xlu0 %v376, 30
        %v873 = vpop.permute.xlu0 %872
        %874 = vrot.lane.b32.xlu0 %v396, 30
        %v875 = vpop.permute.xlu0 %874
        %vm876 = vcmp.lt.s32.totalorder %v408, 30
        %v877 = vsel %vm876, %v873, %v875
        %v878 = vsel %vm876, %v871, %v873
        %v879 = vsel %vm876, %v869, %v871
        %v880 = vsel %vm876, %v875, %v869
        %v885 = vcombine.low %v880, %v879
        %v886 = vcombine.low %v878, %v877
        %v889 = vmul.f32 %v373, %v885
        %v890 = vmul.f32 %v374, %v886
        %v893 = vcombine.high %v889, %v889
        %v894 = vcombine.high %v890, %v890
        %v897 = vsel %vm430, %v889, 0.0
        %v898 = vrot.slane %v897, 4
        %v899 = vadd.f32 %v897, %v898
        %v900 = vrot.slane %v899, 2
        %v901 = vadd.f32 %v899, %v900
        %v902 = vrot.slane %v901, 1
        %v903 = vadd.f32 %v901, %v902
        %v904 = vsel %vm430, %v893, 0.0
        %v905 = vrot.slane %v904, 4
        %v906 = vadd.f32 %v904, %v905
        %v907 = vrot.slane %v906, 2
        %v908 = vadd.f32 %v906, %v907
        %v909 = vrot.slane %v908, 1
        %v910 = vadd.f32 %v908, %v909
        %v911 = vsel %vm430, %v890, 0.0
        %v912 = vrot.slane %v911, 4
        %v913 = vadd.f32 %v911, %v912
        %v914 = vrot.slane %v913, 2
        %v915 = vadd.f32 %v913, %v914
        %v916 = vrot.slane %v915, 1
        %v917 = vadd.f32 %v915, %v916
        %v918 = vsel %vm430, %v894, 0.0
        %v919 = vrot.slane %v918, 4
        %v920 = vadd.f32 %v918, %v919
        %v921 = vrot.slane %v920, 2
        %v922 = vadd.f32 %v920, %v921
        %v923 = vrot.slane %v922, 1
        %v924 = vadd.f32 %v922, %v923
        %s925 = scalar_lea.vmem [#allocation6], 4
        %v926 = vld [vmem:[%s925] ss:$8 sm:$0xf]
        %v928 = vlaneseq
        %v929 = vshrl.u32 %v928, 7
        %v930 = vsub.s32 0, %v929
        %v931 = vrot.slane %v926, %v930
        %v932 = vlaneseq
        %v933 = vshrl.u32 %v932, 7
        %v934 = vsub.s32 1, %v933
        %v935 = vrot.slane %v926, %v934
        %v936 = vlaneseq
        %v937 = vshrl.u32 %v936, 7
        %v938 = vsub.s32 2, %v937
        %v939 = vrot.slane %v926, %v938
        %v940 = vlaneseq
        %v941 = vshrl.u32 %v940, 7
        %v942 = vsub.s32 3, %v941
        %v943 = vrot.slane %v926, %v942
        %v948 = vmul.f32 %v903, %v931
        %v949 = vmul.f32 %v910, %v935
        %v950 = vmul.f32 %v917, %v939
        %v951 = vmul.f32 %v924, %v943
        %v956 = vcombine.low %v948, %v949
        %v957 = vcombine.low %v950, %v951
        %v959 = vunpack.c.l.s4 1966171168
        %v960 = vunpack.c.0.s8 %v959
        %v961 = vlaneseq
        %v962 = vshrl.u32 %v961, 7
        %v963 = vsub.s32 %v960, %v962
        %v964 = vrot.slane %v956, %v963
        %v966 = vunpack.c.l.s4 1966171168
        %v967 = vunpack.c.0.s8 %v966
        %v968 = vlaneseq
        %v969 = vshrl.u32 %v968, 7
        %v970 = vsub.s32 %v967, %v969
        %v971 = vrot.slane %v957, %v970
        %v972 = vcombine.low %v964, %v971
        %v974 = vunpack.c.l.s4 1966171168
        %v975 = vunpack.c.0.s8 %v974
        %v976 = vlaneseq
        %v977 = vshrl.u32 %v976, 7
        %v978 = vsub.s32 %v975, %v977
        %v979 = vrot.slane %v972, %v978
        %s981 = scalar_lea.vmem [#allocation2], 4
        %982 = vst.msk [vmem:[%s981] ss:$8 sm:$0xf] %vm517, %v979
        %983 = vst.msk [vmem:[%s981] ss:$8 sm:$0x0] %vm517, %v979
        %984 = vrot.lane.b32.xlu0 %v375, 18
        %v985 = vpop.permute.xlu0 %984
        %986 = vrot.lane.b32.xlu0 %v395, 18
        %v987 = vpop.permute.xlu0 %986
        %988 = vrot.lane.b32.xlu0 %v376, 18
        %v989 = vpop.permute.xlu0 %988
        %990 = vrot.lane.b32.xlu0 %v396, 18
        %v991 = vpop.permute.xlu0 %990
        %vm992 = vcmp.lt.s32.totalorder %v408, 18
        %v993 = vsel %vm992, %v989, %v991
        %v994 = vsel %vm992, %v987, %v989
        %v995 = vsel %vm992, %v985, %v987
        %v996 = vsel %vm992, %v991, %v985
        %v1001 = vcombine.low %v996, %v995
        %v1002 = vcombine.low %v994, %v993
        %v1005 = vmul.f32 %v373, %v1001
        %v1006 = vmul.f32 %v374, %v1002
        %v1009 = vcombine.high %v1005, %v1005
        %v1010 = vcombine.high %v1006, %v1006
        %v1013 = vsel %vm430, %v1005, 0.0
        %v1014 = vrot.slane %v1013, 4
        %v1015 = vadd.f32 %v1013, %v1014
        %v1016 = vrot.slane %v1015, 2
        %v1017 = vadd.f32 %v1015, %v1016
        %v1018 = vrot.slane %v1017, 1
        %v1019 = vadd.f32 %v1017, %v1018
        %v1020 = vsel %vm430, %v1009, 0.0
        %v1021 = vrot.slane %v1020, 4
        %v1022 = vadd.f32 %v1020, %v1021
        %v1023 = vrot.slane %v1022, 2
        %v1024 = vadd.f32 %v1022, %v1023
        %v1025 = vrot.slane %v1024, 1
        %v1026 = vadd.f32 %v1024, %v1025
        %v1027 = vsel %vm430, %v1006, 0.0
        %v1028 = vrot.slane %v1027, 4
        %v1029 = vadd.f32 %v1027, %v1028
        %v1030 = vrot.slane %v1029, 2
        %v1031 = vadd.f32 %v1029, %v1030
        %v1032 = vrot.slane %v1031, 1
        %v1033 = vadd.f32 %v1031, %v1032
        %v1034 = vsel %vm430, %v1010, 0.0
        %v1035 = vrot.slane %v1034, 4
        %v1036 = vadd.f32 %v1034, %v1035
        %v1037 = vrot.slane %v1036, 2
        %v1038 = vadd.f32 %v1036, %v1037
        %v1039 = vrot.slane %v1038, 1
        %v1040 = vadd.f32 %v1038, %v1039
        %s1041 = scalar_lea.vmem [#allocation6], 5
        %v1042 = vld [vmem:[%s1041] ss:$8 sm:$0xf]
        %v1044 = vlaneseq
        %v1045 = vshrl.u32 %v1044, 7
        %v1046 = vsub.s32 0, %v1045
        %v1047 = vrot.slane %v1042, %v1046
        %v1048 = vlaneseq
        %v1049 = vshrl.u32 %v1048, 7
        %v1050 = vsub.s32 1, %v1049
        %v1051 = vrot.slane %v1042, %v1050
        %v1052 = vlaneseq
        %v1053 = vshrl.u32 %v1052, 7
        %v1054 = vsub.s32 2, %v1053
        %v1055 = vrot.slane %v1042, %v1054
        %v1056 = vlaneseq
        %v1057 = vshrl.u32 %v1056, 7
        %v1058 = vsub.s32 3, %v1057
        %v1059 = vrot.slane %v1042, %v1058
        %v1064 = vmul.f32 %v1019, %v1047
        %v1065 = vmul.f32 %v1026, %v1051
        %v1066 = vmul.f32 %v1033, %v1055
        %v1067 = vmul.f32 %v1040, %v1059
        %v1072 = vcombine.low %v1064, %v1065
        %v1073 = vcombine.low %v1066, %v1067
        %v1075 = vunpack.c.l.s4 1966171168
        %v1076 = vunpack.c.0.s8 %v1075
        %v1077 = vlaneseq
        %v1078 = vshrl.u32 %v1077, 7
        %v1079 = vsub.s32 %v1076, %v1078
        %v1080 = vrot.slane %v1072, %v1079
        %v1082 = vunpack.c.l.s4 1966171168
        %v1083 = vunpack.c.0.s8 %v1082
        %v1084 = vlaneseq
        %v1085 = vshrl.u32 %v1084, 7
        %v1086 = vsub.s32 %v1083, %v1085
        %v1087 = vrot.slane %v1073, %v1086
        %v1088 = vcombine.low %v1080, %v1087
        %v1090 = vunpack.c.l.s4 1966171168
        %v1091 = vunpack.c.0.s8 %v1090
        %v1092 = vlaneseq
        %v1093 = vshrl.u32 %v1092, 7
        %v1094 = vsub.s32 %v1091, %v1093
        %v1095 = vrot.slane %v1088, %v1094
        %s1097 = scalar_lea.vmem [#allocation2], 5
        %1098 = vst.msk [vmem:[%s1097] ss:$8 sm:$0xf] %vm517, %v1095
        %1099 = vst.msk [vmem:[%s1097] ss:$8 sm:$0x0] %vm517, %v1095
        %1100 = vrot.lane.b32.xlu0 %v375, 17
        %v1101 = vpop.permute.xlu0 %1100
        %1102 = vrot.lane.b32.xlu0 %v395, 17
        %v1103 = vpop.permute.xlu0 %1102
        %1104 = vrot.lane.b32.xlu0 %v376, 17
        %v1105 = vpop.permute.xlu0 %1104
        %1106 = vrot.lane.b32.xlu0 %v396, 17
        %v1107 = vpop.permute.xlu0 %1106
        %vm1108 = vcmp.lt.s32.totalorder %v408, 17
        %v1109 = vsel %vm1108, %v1105, %v1107
        %v1110 = vsel %vm1108, %v1103, %v1105
        %v1111 = vsel %vm1108, %v1101, %v1103
        %v1112 = vsel %vm1108, %v1107, %v1101
        %v1117 = vcombine.low %v1112, %v1111
        %v1118 = vcombine.low %v1110, %v1109
        %v1121 = vmul.f32 %v373, %v1117
        %v1122 = vmul.f32 %v374, %v1118
        %v1125 = vcombine.high %v1121, %v1121
        %v1126 = vcombine.high %v1122, %v1122
        %v1129 = vsel %vm430, %v1121, 0.0
        %v1130 = vrot.slane %v1129, 4
        %v1131 = vadd.f32 %v1129, %v1130
        %v1132 = vrot.slane %v1131, 2
        %v1133 = vadd.f32 %v1131, %v1132
        %v1134 = vrot.slane %v1133, 1
        %v1135 = vadd.f32 %v1133, %v1134
        %v1136 = vsel %vm430, %v1125, 0.0
        %v1137 = vrot.slane %v1136, 4
        %v1138 = vadd.f32 %v1136, %v1137
        %v1139 = vrot.slane %v1138, 2
        %v1140 = vadd.f32 %v1138, %v1139
        %v1141 = vrot.slane %v1140, 1
        %v1142 = vadd.f32 %v1140, %v1141
        %v1143 = vsel %vm430, %v1122, 0.0
        %v1144 = vrot.slane %v1143, 4
        %v1145 = vadd.f32 %v1143, %v1144
        %v1146 = vrot.slane %v1145, 2
        %v1147 = vadd.f32 %v1145, %v1146
        %v1148 = vrot.slane %v1147, 1
        %v1149 = vadd.f32 %v1147, %v1148
        %v1150 = vsel %vm430, %v1126, 0.0
        %v1151 = vrot.slane %v1150, 4
        %v1152 = vadd.f32 %v1150, %v1151
        %v1153 = vrot.slane %v1152, 2
        %v1154 = vadd.f32 %v1152, %v1153
        %v1155 = vrot.slane %v1154, 1
        %v1156 = vadd.f32 %v1154, %v1155
        %s1157 = scalar_lea.vmem [#allocation6], 6
        %v1158 = vld [vmem:[%s1157] ss:$8 sm:$0xf]
        %v1160 = vlaneseq
        %v1161 = vshrl.u32 %v1160, 7
        %v1162 = vsub.s32 0, %v1161
        %v1163 = vrot.slane %v1158, %v1162
        %v1164 = vlaneseq
        %v1165 = vshrl.u32 %v1164, 7
        %v1166 = vsub.s32 1, %v1165
        %v1167 = vrot.slane %v1158, %v1166
        %v1168 = vlaneseq
        %v1169 = vshrl.u32 %v1168, 7
        %v1170 = vsub.s32 2, %v1169
        %v1171 = vrot.slane %v1158, %v1170
        %v1172 = vlaneseq
        %v1173 = vshrl.u32 %v1172, 7
        %v1174 = vsub.s32 3, %v1173
        %v1175 = vrot.slane %v1158, %v1174
        %v1180 = vmul.f32 %v1135, %v1163
        %v1181 = vmul.f32 %v1142, %v1167
        %v1182 = vmul.f32 %v1149, %v1171
        %v1183 = vmul.f32 %v1156, %v1175
        %v1188 = vcombine.low %v1180, %v1181
        %v1189 = vcombine.low %v1182, %v1183
        %v1191 = vunpack.c.l.s4 1966171168
        %v1192 = vunpack.c.0.s8 %v1191
        %v1193 = vlaneseq
        %v1194 = vshrl.u32 %v1193, 7
        %v1195 = vsub.s32 %v1192, %v1194
        %v1196 = vrot.slane %v1188, %v1195
        %v1198 = vunpack.c.l.s4 1966171168
        %v1199 = vunpack.c.0.s8 %v1198
        %v1200 = vlaneseq
        %v1201 = vshrl.u32 %v1200, 7
        %v1202 = vsub.s32 %v1199, %v1201
        %v1203 = vrot.slane %v1189, %v1202
        %v1204 = vcombine.low %v1196, %v1203
        %v1206 = vunpack.c.l.s4 1966171168
        %v1207 = vunpack.c.0.s8 %v1206
        %v1208 = vlaneseq
        %v1209 = vshrl.u32 %v1208, 7
        %v1210 = vsub.s32 %v1207, %v1209
        %v1211 = vrot.slane %v1204, %v1210
        %s1213 = scalar_lea.vmem [#allocation2], 6
        %1214 = vst.msk [vmem:[%s1213] ss:$8 sm:$0xf] %vm517, %v1211
        %1215 = vst.msk [vmem:[%s1213] ss:$8 sm:$0x0] %vm517, %v1211
        %1216 = vrot.lane.b32.xlu0 %v375, 16
        %v1217 = vpop.permute.xlu0 %1216
        %1218 = vrot.lane.b32.xlu0 %v395, 16
        %v1219 = vpop.permute.xlu0 %1218
        %1220 = vrot.lane.b32.xlu0 %v376, 16
        %v1221 = vpop.permute.xlu0 %1220
        %1222 = vrot.lane.b32.xlu0 %v396, 16
        %v1223 = vpop.permute.xlu0 %1222
        %vm1224 = vcmp.lt.s32.totalorder %v408, 16
        %v1225 = vsel %vm1224, %v1221, %v1223
        %v1226 = vsel %vm1224, %v1219, %v1221
        %v1227 = vsel %vm1224, %v1217, %v1219
        %v1228 = vsel %vm1224, %v1223, %v1217
        %v1233 = vcombine.low %v1228, %v1227
        %v1234 = vcombine.low %v1226, %v1225
        %v1237 = vmul.f32 %v373, %v1233
        %v1238 = vmul.f32 %v374, %v1234
        %v1241 = vcombine.high %v1237, %v1237
        %v1242 = vcombine.high %v1238, %v1238
        %v1245 = vsel %vm430, %v1237, 0.0
        %v1246 = vrot.slane %v1245, 4
        %v1247 = vadd.f32 %v1245, %v1246
        %v1248 = vrot.slane %v1247, 2
        %v1249 = vadd.f32 %v1247, %v1248
        %v1250 = vrot.slane %v1249, 1
        %v1251 = vadd.f32 %v1249, %v1250
        %v1252 = vsel %vm430, %v1241, 0.0
        %v1253 = vrot.slane %v1252, 4
        %v1254 = vadd.f32 %v1252, %v1253
        %v1255 = vrot.slane %v1254, 2
        %v1256 = vadd.f32 %v1254, %v1255
        %v1257 = vrot.slane %v1256, 1
        %v1258 = vadd.f32 %v1256, %v1257
        %v1259 = vsel %vm430, %v1238, 0.0
        %v1260 = vrot.slane %v1259, 4
        %v1261 = vadd.f32 %v1259, %v1260
        %v1262 = vrot.slane %v1261, 2
        %v1263 = vadd.f32 %v1261, %v1262
        %v1264 = vrot.slane %v1263, 1
        %v1265 = vadd.f32 %v1263, %v1264
        %v1266 = vsel %vm430, %v1242, 0.0
        %v1267 = vrot.slane %v1266, 4
        %v1268 = vadd.f32 %v1266, %v1267
        %v1269 = vrot.slane %v1268, 2
        %v1270 = vadd.f32 %v1268, %v1269
        %v1271 = vrot.slane %v1270, 1
        %v1272 = vadd.f32 %v1270, %v1271
        %s1273 = scalar_lea.vmem [#allocation6], 7
        %v1274 = vld [vmem:[%s1273] ss:$8 sm:$0xf]
        %v1276 = vlaneseq
        %v1277 = vshrl.u32 %v1276, 7
        %v1278 = vsub.s32 0, %v1277
        %v1279 = vrot.slane %v1274, %v1278
        %v1280 = vlaneseq
        %v1281 = vshrl.u32 %v1280, 7
        %v1282 = vsub.s32 1, %v1281
        %v1283 = vrot.slane %v1274, %v1282
        %v1284 = vlaneseq
        %v1285 = vshrl.u32 %v1284, 7
        %v1286 = vsub.s32 2, %v1285
        %v1287 = vrot.slane %v1274, %v1286
        %v1288 = vlaneseq
        %v1289 = vshrl.u32 %v1288, 7
        %v1290 = vsub.s32 3, %v1289
        %v1291 = vrot.slane %v1274, %v1290
        %v1296 = vmul.f32 %v1251, %v1279
        %v1297 = vmul.f32 %v1258, %v1283
        %v1298 = vmul.f32 %v1265, %v1287
        %v1299 = vmul.f32 %v1272, %v1291
        %v1304 = vcombine.low %v1296, %v1297
        %v1305 = vcombine.low %v1298, %v1299
        %v1307 = vunpack.c.l.s4 1966171168
        %v1308 = vunpack.c.0.s8 %v1307
        %v1309 = vlaneseq
        %v1310 = vshrl.u32 %v1309, 7
        %v1311 = vsub.s32 %v1308, %v1310
        %v1312 = vrot.slane %v1304, %v1311
        %v1314 = vunpack.c.l.s4 1966171168
        %v1315 = vunpack.c.0.s8 %v1314
        %v1316 = vlaneseq
        %v1317 = vshrl.u32 %v1316, 7
        %v1318 = vsub.s32 %v1315, %v1317
        %v1319 = vrot.slane %v1305, %v1318
        %v1320 = vcombine.low %v1312, %v1319
        %v1322 = vunpack.c.l.s4 1966171168
        %v1323 = vunpack.c.0.s8 %v1322
        %v1324 = vlaneseq
        %v1325 = vshrl.u32 %v1324, 7
        %v1326 = vsub.s32 %v1323, %v1325
        %v1327 = vrot.slane %v1320, %v1326
        %s1329 = scalar_lea.vmem [#allocation2], 7
        %1330 = vst.msk [vmem:[%s1329] ss:$8 sm:$0xf] %vm517, %v1327
        %1331 = vst.msk [vmem:[%s1329] ss:$8 sm:$0x0] %vm517, %v1327
        %1332 = vrot.lane.b32.xlu0 %v375, 15
        %v1333 = vpop.permute.xlu0 %1332
        %1334 = vrot.lane.b32.xlu0 %v395, 15
        %v1335 = vpop.permute.xlu0 %1334
        %1336 = vrot.lane.b32.xlu0 %v376, 15
        %v1337 = vpop.permute.xlu0 %1336
        %1338 = vrot.lane.b32.xlu0 %v396, 15
        %v1339 = vpop.permute.xlu0 %1338
        %vm1340 = vcmp.lt.s32.totalorder %v408, 15
        %v1341 = vsel %vm1340, %v1337, %v1339
        %v1342 = vsel %vm1340, %v1335, %v1337
        %v1343 = vsel %vm1340, %v1333, %v1335
        %v1344 = vsel %vm1340, %v1339, %v1333
        %v1349 = vcombine.low %v1344, %v1343
        %v1350 = vcombine.low %v1342, %v1341
        %v1353 = vmul.f32 %v373, %v1349
        %v1354 = vmul.f32 %v374, %v1350
        %v1357 = vcombine.high %v1353, %v1353
        %v1358 = vcombine.high %v1354, %v1354
        %v1361 = vsel %vm430, %v1353, 0.0
        %v1362 = vrot.slane %v1361, 4
        %v1363 = vadd.f32 %v1361, %v1362
        %v1364 = vrot.slane %v1363, 2
        %v1365 = vadd.f32 %v1363, %v1364
        %v1366 = vrot.slane %v1365, 1
        %v1367 = vadd.f32 %v1365, %v1366
        %v1368 = vsel %vm430, %v1357, 0.0
        %v1369 = vrot.slane %v1368, 4
        %v1370 = vadd.f32 %v1368, %v1369
        %v1371 = vrot.slane %v1370, 2
        %v1372 = vadd.f32 %v1370, %v1371
        %v1373 = vrot.slane %v1372, 1
        %v1374 = vadd.f32 %v1372, %v1373
        %v1375 = vsel %vm430, %v1354, 0.0
        %v1376 = vrot.slane %v1375, 4
        %v1377 = vadd.f32 %v1375, %v1376
        %v1378 = vrot.slane %v1377, 2
        %v1379 = vadd.f32 %v1377, %v1378
        %v1380 = vrot.slane %v1379, 1
        %v1381 = vadd.f32 %v1379, %v1380
        %v1382 = vsel %vm430, %v1358, 0.0
        %v1383 = vrot.slane %v1382, 4
        %v1384 = vadd.f32 %v1382, %v1383
        %v1385 = vrot.slane %v1384, 2
        %v1386 = vadd.f32 %v1384, %v1385
        %v1387 = vrot.slane %v1386, 1
        %v1388 = vadd.f32 %v1386, %v1387
        %s1389 = scalar_lea.vmem [#allocation6], 32
        %v1390 = vld [vmem:[%s1389] ss:$8 sm:$0xf]
        %v1392 = vlaneseq
        %v1393 = vshrl.u32 %v1392, 7
        %v1394 = vsub.s32 0, %v1393
        %v1395 = vrot.slane %v1390, %v1394
        %v1396 = vlaneseq
        %v1397 = vshrl.u32 %v1396, 7
        %v1398 = vsub.s32 1, %v1397
        %v1399 = vrot.slane %v1390, %v1398
        %v1400 = vlaneseq
        %v1401 = vshrl.u32 %v1400, 7
        %v1402 = vsub.s32 2, %v1401
        %v1403 = vrot.slane %v1390, %v1402
        %v1404 = vlaneseq
        %v1405 = vshrl.u32 %v1404, 7
        %v1406 = vsub.s32 3, %v1405
        %v1407 = vrot.slane %v1390, %v1406
        %v1412 = vmul.f32 %v1367, %v1395
        %v1413 = vmul.f32 %v1374, %v1399
        %v1414 = vmul.f32 %v1381, %v1403
        %v1415 = vmul.f32 %v1388, %v1407
        %v1420 = vcombine.low %v1412, %v1413
        %v1421 = vcombine.low %v1414, %v1415
        %v1423 = vunpack.c.l.s4 1966171168
        %v1424 = vunpack.c.0.s8 %v1423
        %v1425 = vlaneseq
        %v1426 = vshrl.u32 %v1425, 7
        %v1427 = vsub.s32 %v1424, %v1426
        %v1428 = vrot.slane %v1420, %v1427
        %v1430 = vunpack.c.l.s4 1966171168
        %v1431 = vunpack.c.0.s8 %v1430
        %v1432 = vlaneseq
        %v1433 = vshrl.u32 %v1432, 7
        %v1434 = vsub.s32 %v1431, %v1433
        %v1435 = vrot.slane %v1421, %v1434
        %v1436 = vcombine.low %v1428, %v1435
        %v1438 = vunpack.c.l.s4 1966171168
        %v1439 = vunpack.c.0.s8 %v1438
        %v1440 = vlaneseq
        %v1441 = vshrl.u32 %v1440, 7
        %v1442 = vsub.s32 %v1439, %v1441
        %v1443 = vrot.slane %v1436, %v1442
        %s1445 = scalar_lea.vmem [#allocation2], 32
        %1446 = vst.msk [vmem:[%s1445] ss:$8 sm:$0xf] %vm517, %v1443
        %1447 = vst.msk [vmem:[%s1445] ss:$8 sm:$0x0] %vm517, %v1443
        %1448 = vrot.lane.b32.xlu0 %v375, 14
        %v1449 = vpop.permute.xlu0 %1448
        %1450 = vrot.lane.b32.xlu0 %v395, 14
        %v1451 = vpop.permute.xlu0 %1450
        %1452 = vrot.lane.b32.xlu0 %v376, 14
        %v1453 = vpop.permute.xlu0 %1452
        %1454 = vrot.lane.b32.xlu0 %v396, 14
        %v1455 = vpop.permute.xlu0 %1454
        %vm1456 = vcmp.lt.s32.totalorder %v408, 14
        %v1457 = vsel %vm1456, %v1453, %v1455
        %v1458 = vsel %vm1456, %v1451, %v1453
        %v1459 = vsel %vm1456, %v1449, %v1451
        %v1460 = vsel %vm1456, %v1455, %v1449
        %v1465 = vcombine.low %v1460, %v1459
        %v1466 = vcombine.low %v1458, %v1457
        %v1469 = vmul.f32 %v373, %v1465
        %v1470 = vmul.f32 %v374, %v1466
        %v1473 = vcombine.high %v1469, %v1469
        %v1474 = vcombine.high %v1470, %v1470
        %v1477 = vsel %vm430, %v1469, 0.0
        %v1478 = vrot.slane %v1477, 4
        %v1479 = vadd.f32 %v1477, %v1478
        %v1480 = vrot.slane %v1479, 2
        %v1481 = vadd.f32 %v1479, %v1480
        %v1482 = vrot.slane %v1481, 1
        %v1483 = vadd.f32 %v1481, %v1482
        %v1484 = vsel %vm430, %v1473, 0.0
        %v1485 = vrot.slane %v1484, 4
        %v1486 = vadd.f32 %v1484, %v1485
        %v1487 = vrot.slane %v1486, 2
        %v1488 = vadd.f32 %v1486, %v1487
        %v1489 = vrot.slane %v1488, 1
        %v1490 = vadd.f32 %v1488, %v1489
        %v1491 = vsel %vm430, %v1470, 0.0
        %v1492 = vrot.slane %v1491, 4
        %v1493 = vadd.f32 %v1491, %v1492
        %v1494 = vrot.slane %v1493, 2
        %v1495 = vadd.f32 %v1493, %v1494
        %v1496 = vrot.slane %v1495, 1
        %v1497 = vadd.f32 %v1495, %v1496
        %v1498 = vsel %vm430, %v1474, 0.0
        %v1499 = vrot.slane %v1498, 4
        %v1500 = vadd.f32 %v1498, %v1499
        %v1501 = vrot.slane %v1500, 2
        %v1502 = vadd.f32 %v1500, %v1501
        %v1503 = vrot.slane %v1502, 1
        %v1504 = vadd.f32 %v1502, %v1503
        %s1505 = scalar_lea.vmem [#allocation6], 33
        %v1506 = vld [vmem:[%s1505] ss:$8 sm:$0xf]
        %v1508 = vlaneseq
        %v1509 = vshrl.u32 %v1508, 7
        %v1510 = vsub.s32 0, %v1509
        %v1511 = vrot.slane %v1506, %v1510
        %v1512 = vlaneseq
        %v1513 = vshrl.u32 %v1512, 7
        %v1514 = vsub.s32 1, %v1513
        %v1515 = vrot.slane %v1506, %v1514
        %v1516 = vlaneseq
        %v1517 = vshrl.u32 %v1516, 7
        %v1518 = vsub.s32 2, %v1517
        %v1519 = vrot.slane %v1506, %v1518
        %v1520 = vlaneseq
        %v1521 = vshrl.u32 %v1520, 7
        %v1522 = vsub.s32 3, %v1521
        %v1523 = vrot.slane %v1506, %v1522
        %v1528 = vmul.f32 %v1483, %v1511
        %v1529 = vmul.f32 %v1490, %v1515
        %v1530 = vmul.f32 %v1497, %v1519
        %v1531 = vmul.f32 %v1504, %v1523
        %v1536 = vcombine.low %v1528, %v1529
        %v1537 = vcombine.low %v1530, %v1531
        %v1539 = vunpack.c.l.s4 1966171168
        %v1540 = vunpack.c.0.s8 %v1539
        %v1541 = vlaneseq
        %v1542 = vshrl.u32 %v1541, 7
        %v1543 = vsub.s32 %v1540, %v1542
        %v1544 = vrot.slane %v1536, %v1543
        %v1546 = vunpack.c.l.s4 1966171168
        %v1547 = vunpack.c.0.s8 %v1546
        %v1548 = vlaneseq
        %v1549 = vshrl.u32 %v1548, 7
        %v1550 = vsub.s32 %v1547, %v1549
        %v1551 = vrot.slane %v1537, %v1550
        %v1552 = vcombine.low %v1544, %v1551
        %v1554 = vunpack.c.l.s4 1966171168
        %v1555 = vunpack.c.0.s8 %v1554
        %v1556 = vlaneseq
        %v1557 = vshrl.u32 %v1556, 7
        %v1558 = vsub.s32 %v1555, %v1557
        %v1559 = vrot.slane %v1552, %v1558
        %s1561 = scalar_lea.vmem [#allocation2], 33
        %1562 = vst.msk [vmem:[%s1561] ss:$8 sm:$0xf] %vm517, %v1559
        %1563 = vst.msk [vmem:[%s1561] ss:$8 sm:$0x0] %vm517, %v1559
        %1564 = vrot.lane.b32.xlu0 %v375, 2
        %v1565 = vpop.permute.xlu0 %1564
        %1566 = vrot.lane.b32.xlu0 %v395, 2
        %v1567 = vpop.permute.xlu0 %1566
        %1568 = vrot.lane.b32.xlu0 %v376, 2
        %v1569 = vpop.permute.xlu0 %1568
        %1570 = vrot.lane.b32.xlu0 %v396, 2
        %v1571 = vpop.permute.xlu0 %1570
        %vm1572 = vcmp.lt.s32.totalorder %v408, 2
        %v1573 = vsel %vm1572, %v1569, %v1571
        %v1574 = vsel %vm1572, %v1567, %v1569
        %v1575 = vsel %vm1572, %v1565, %v1567
        %v1576 = vsel %vm1572, %v1571, %v1565
        %v1581 = vcombine.low %v1576, %v1575
        %v1582 = vcombine.low %v1574, %v1573
        %v1585 = vmul.f32 %v373, %v1581
        %v1586 = vmul.f32 %v374, %v1582
        %v1589 = vcombine.high %v1585, %v1585
        %v1590 = vcombine.high %v1586, %v1586
        %v1593 = vsel %vm430, %v1585, 0.0
        %v1594 = vrot.slane %v1593, 4
        %v1595 = vadd.f32 %v1593, %v1594
        %v1596 = vrot.slane %v1595, 2
        %v1597 = vadd.f32 %v1595, %v1596
        %v1598 = vrot.slane %v1597, 1
        %v1599 = vadd.f32 %v1597, %v1598
        %v1600 = vsel %vm430, %v1589, 0.0
        %v1601 = vrot.slane %v1600, 4
        %v1602 = vadd.f32 %v1600, %v1601
        %v1603 = vrot.slane %v1602, 2
        %v1604 = vadd.f32 %v1602, %v1603
        %v1605 = vrot.slane %v1604, 1
        %v1606 = vadd.f32 %v1604, %v1605
        %v1607 = vsel %vm430, %v1586, 0.0
        %v1608 = vrot.slane %v1607, 4
        %v1609 = vadd.f32 %v1607, %v1608
        %v1610 = vrot.slane %v1609, 2
        %v1611 = vadd.f32 %v1609, %v1610
        %v1612 = vrot.slane %v1611, 1
        %v1613 = vadd.f32 %v1611, %v1612
        %v1614 = vsel %vm430, %v1590, 0.0
        %v1615 = vrot.slane %v1614, 4
        %v1616 = vadd.f32 %v1614, %v1615
        %v1617 = vrot.slane %v1616, 2
        %v1618 = vadd.f32 %v1616, %v1617
        %v1619 = vrot.slane %v1618, 1
        %v1620 = vadd.f32 %v1618, %v1619
        %s1621 = scalar_lea.vmem [#allocation6], 34
        %v1622 = vld [vmem:[%s1621] ss:$8 sm:$0xf]
        %v1624 = vlaneseq
        %v1625 = vshrl.u32 %v1624, 7
        %v1626 = vsub.s32 0, %v1625
        %v1627 = vrot.slane %v1622, %v1626
        %v1628 = vlaneseq
        %v1629 = vshrl.u32 %v1628, 7
        %v1630 = vsub.s32 1, %v1629
        %v1631 = vrot.slane %v1622, %v1630
        %v1632 = vlaneseq
        %v1633 = vshrl.u32 %v1632, 7
        %v1634 = vsub.s32 2, %v1633
        %v1635 = vrot.slane %v1622, %v1634
        %v1636 = vlaneseq
        %v1637 = vshrl.u32 %v1636, 7
        %v1638 = vsub.s32 3, %v1637
        %v1639 = vrot.slane %v1622, %v1638
        %v1644 = vmul.f32 %v1599, %v1627
        %v1645 = vmul.f32 %v1606, %v1631
        %v1646 = vmul.f32 %v1613, %v1635
        %v1647 = vmul.f32 %v1620, %v1639
        %v1652 = vcombine.low %v1644, %v1645
        %v1653 = vcombine.low %v1646, %v1647
        %v1655 = vunpack.c.l.s4 1966171168
        %v1656 = vunpack.c.0.s8 %v1655
        %v1657 = vlaneseq
        %v1658 = vshrl.u32 %v1657, 7
        %v1659 = vsub.s32 %v1656, %v1658
        %v1660 = vrot.slane %v1652, %v1659
        %v1662 = vunpack.c.l.s4 1966171168
        %v1663 = vunpack.c.0.s8 %v1662
        %v1664 = vlaneseq
        %v1665 = vshrl.u32 %v1664, 7
        %v1666 = vsub.s32 %v1663, %v1665
        %v1667 = vrot.slane %v1653, %v1666
        %v1668 = vcombine.low %v1660, %v1667
        %v1670 = vunpack.c.l.s4 1966171168
        %v1671 = vunpack.c.0.s8 %v1670
        %v1672 = vlaneseq
        %v1673 = vshrl.u32 %v1672, 7
        %v1674 = vsub.s32 %v1671, %v1673
        %v1675 = vrot.slane %v1668, %v1674
        %s1677 = scalar_lea.vmem [#allocation2], 34
        %1678 = vst.msk [vmem:[%s1677] ss:$8 sm:$0xf] %vm517, %v1675
        %1679 = vst.msk [vmem:[%s1677] ss:$8 sm:$0x0] %vm517, %v1675
        %1680 = vrot.lane.b32.xlu0 %v375, 1
        %v1681 = vpop.permute.xlu0 %1680
        %1682 = vrot.lane.b32.xlu0 %v395, 1
        %v1683 = vpop.permute.xlu0 %1682
        %1684 = vrot.lane.b32.xlu0 %v376, 1
        %v1685 = vpop.permute.xlu0 %1684
        %1686 = vrot.lane.b32.xlu0 %v396, 1
        %v1687 = vpop.permute.xlu0 %1686
        %vm1688 = vcmp.lt.s32.totalorder %v408, 1
        %v1689 = vsel %vm1688, %v1685, %v1687
        %v1690 = vsel %vm1688, %v1683, %v1685
        %v1691 = vsel %vm1688, %v1681, %v1683
        %v1692 = vsel %vm1688, %v1687, %v1681
        %v1697 = vcombine.low %v1692, %v1691
        %v1698 = vcombine.low %v1690, %v1689
        %v1701 = vmul.f32 %v373, %v1697
        %v1702 = vmul.f32 %v374, %v1698
        %v1705 = vcombine.high %v1701, %v1701
        %v1706 = vcombine.high %v1702, %v1702
        %v1709 = vsel %vm430, %v1701, 0.0
        %v1710 = vrot.slane %v1709, 4
        %v1711 = vadd.f32 %v1709, %v1710
        %v1712 = vrot.slane %v1711, 2
        %v1713 = vadd.f32 %v1711, %v1712
        %v1714 = vrot.slane %v1713, 1
        %v1715 = vadd.f32 %v1713, %v1714
        %v1716 = vsel %vm430, %v1705, 0.0
        %v1717 = vrot.slane %v1716, 4
        %v1718 = vadd.f32 %v1716, %v1717
        %v1719 = vrot.slane %v1718, 2
        %v1720 = vadd.f32 %v1718, %v1719
        %v1721 = vrot.slane %v1720, 1
        %v1722 = vadd.f32 %v1720, %v1721
        %v1723 = vsel %vm430, %v1702, 0.0
        %v1724 = vrot.slane %v1723, 4
        %v1725 = vadd.f32 %v1723, %v1724
        %v1726 = vrot.slane %v1725, 2
        %v1727 = vadd.f32 %v1725, %v1726
        %v1728 = vrot.slane %v1727, 1
        %v1729 = vadd.f32 %v1727, %v1728
        %v1730 = vsel %vm430, %v1706, 0.0
        %v1731 = vrot.slane %v1730, 4
        %v1732 = vadd.f32 %v1730, %v1731
        %v1733 = vrot.slane %v1732, 2
        %v1734 = vadd.f32 %v1732, %v1733
        %v1735 = vrot.slane %v1734, 1
        %v1736 = vadd.f32 %v1734, %v1735
        %s1737 = scalar_lea.vmem [#allocation6], 35
        %v1738 = vld [vmem:[%s1737] ss:$8 sm:$0xf]
        %v1740 = vlaneseq
        %v1741 = vshrl.u32 %v1740, 7
        %v1742 = vsub.s32 0, %v1741
        %v1743 = vrot.slane %v1738, %v1742
        %v1744 = vlaneseq
        %v1745 = vshrl.u32 %v1744, 7
        %v1746 = vsub.s32 1, %v1745
        %v1747 = vrot.slane %v1738, %v1746
        %v1748 = vlaneseq
        %v1749 = vshrl.u32 %v1748, 7
        %v1750 = vsub.s32 2, %v1749
        %v1751 = vrot.slane %v1738, %v1750
        %v1752 = vlaneseq
        %v1753 = vshrl.u32 %v1752, 7
        %v1754 = vsub.s32 3, %v1753
        %v1755 = vrot.slane %v1738, %v1754
        %v1760 = vmul.f32 %v1715, %v1743
        %v1761 = vmul.f32 %v1722, %v1747
        %v1762 = vmul.f32 %v1729, %v1751
        %v1763 = vmul.f32 %v1736, %v1755
        %v1768 = vcombine.low %v1760, %v1761
        %v1769 = vcombine.low %v1762, %v1763
        %v1771 = vunpack.c.l.s4 1966171168
        %v1772 = vunpack.c.0.s8 %v1771
        %v1773 = vlaneseq
        %v1774 = vshrl.u32 %v1773, 7
        %v1775 = vsub.s32 %v1772, %v1774
        %v1776 = vrot.slane %v1768, %v1775
        %v1778 = vunpack.c.l.s4 1966171168
        %v1779 = vunpack.c.0.s8 %v1778
        %v1780 = vlaneseq
        %v1781 = vshrl.u32 %v1780, 7
        %v1782 = vsub.s32 %v1779, %v1781
        %v1783 = vrot.slane %v1769, %v1782
        %v1784 = vcombine.low %v1776, %v1783
        %v1786 = vunpack.c.l.s4 1966171168
        %v1787 = vunpack.c.0.s8 %v1786
        %v1788 = vlaneseq
        %v1789 = vshrl.u32 %v1788, 7
        %v1790 = vsub.s32 %v1787, %v1789
        %v1791 = vrot.slane %v1784, %v1790
        %s1793 = scalar_lea.vmem [#allocation2], 35
        %1794 = vst.msk [vmem:[%s1793] ss:$8 sm:$0xf] %vm517, %v1791
        %1795 = vst.msk [vmem:[%s1793] ss:$8 sm:$0x0] %vm517, %v1791
        %v1796 = vmul.f32 %v373, %v375
        %v1797 = vmul.f32 %v374, %v376
        %v1800 = vcombine.high %v1796, %v1796
        %v1801 = vcombine.high %v1797, %v1797
        %v1804 = vsel %vm430, %v1796, 0.0
        %v1805 = vrot.slane %v1804, 4
        %v1806 = vadd.f32 %v1804, %v1805
        %v1807 = vrot.slane %v1806, 2
        %v1808 = vadd.f32 %v1806, %v1807
        %v1809 = vrot.slane %v1808, 1
        %v1810 = vadd.f32 %v1808, %v1809
        %v1811 = vsel %vm430, %v1800, 0.0
        %v1812 = vrot.slane %v1811, 4
        %v1813 = vadd.f32 %v1811, %v1812
        %v1814 = vrot.slane %v1813, 2
        %v1815 = vadd.f32 %v1813, %v1814
        %v1816 = vrot.slane %v1815, 1
        %v1817 = vadd.f32 %v1815, %v1816
        %v1818 = vsel %vm430, %v1797, 0.0
        %v1819 = vrot.slane %v1818, 4
        %v1820 = vadd.f32 %v1818, %v1819
        %v1821 = vrot.slane %v1820, 2
        %v1822 = vadd.f32 %v1820, %v1821
        %v1823 = vrot.slane %v1822, 1
        %v1824 = vadd.f32 %v1822, %v1823
        %v1825 = vsel %vm430, %v1801, 0.0
        %v1826 = vrot.slane %v1825, 4
        %v1827 = vadd.f32 %v1825, %v1826
        %v1828 = vrot.slane %v1827, 2
        %v1829 = vadd.f32 %v1827, %v1828
        %v1830 = vrot.slane %v1829, 1
        %v1831 = vadd.f32 %v1829, %v1830
        %v1836 = vcombine.low %v1810, %v1817
        %v1837 = vcombine.low %v1824, %v1831
        %v1839 = vunpack.c.l.s4 1966171168
        %v1840 = vunpack.c.0.s8 %v1839
        %v1841 = vlaneseq
        %v1842 = vshrl.u32 %v1841, 7
        %v1843 = vsub.s32 %v1840, %v1842
        %v1844 = vrot.slane %v1836, %v1843
        %v1846 = vunpack.c.l.s4 1966171168
        %v1847 = vunpack.c.0.s8 %v1846
        %v1848 = vlaneseq
        %v1849 = vshrl.u32 %v1848, 7
        %v1850 = vsub.s32 %v1847, %v1849
        %v1851 = vrot.slane %v1837, %v1850
        %v1852 = vcombine.low %v1844, %v1851
        %v1854 = vunpack.c.l.s4 1966171168
        %v1855 = vunpack.c.0.s8 %v1854
        %v1856 = vlaneseq
        %v1857 = vshrl.u32 %v1856, 7
        %v1858 = vsub.s32 %v1855, %v1857
        %v1859 = vrot.slane %v1852, %v1858
        %s1861 = scalar_lea.vmem [#allocation2], 36
        %1862 = vst.msk [vmem:[%s1861] ss:$8 sm:$0xf] %vm517, %v1859
        %1863 = vst.msk [vmem:[%s1861] ss:$8 sm:$0x0] %vm517, %v1859
        %1864 = vrot.lane.b32.xlu0 %v375, 127
        %v1865 = vpop.permute.xlu0 %1864
        %1866 = vrot.lane.b32.xlu0 %v395, 127
        %v1867 = vpop.permute.xlu0 %1866
        %1868 = vrot.lane.b32.xlu0 %v376, 127
        %v1869 = vpop.permute.xlu0 %1868
        %1870 = vrot.lane.b32.xlu0 %v396, 127
        %v1871 = vpop.permute.xlu0 %1870
        %vm1872 = vcmp.lt.s32.totalorder %v408, 127
        %v1873 = vsel %vm1872, %v1869, %v1871
        %v1874 = vsel %vm1872, %v1867, %v1869
        %v1875 = vsel %vm1872, %v1865, %v1867
        %v1876 = vsel %vm1872, %v1871, %v1865
        %v1881 = vcombine.low %v1875, %v1874
        %v1882 = vcombine.low %v1873, %v1876
        %v1885 = vmul.f32 %v373, %v1881
        %v1886 = vmul.f32 %v374, %v1882
        %v1889 = vcombine.high %v1885, %v1885
        %v1890 = vcombine.high %v1886, %v1886
        %v1893 = vsel %vm430, %v1885, 0.0
        %v1894 = vrot.slane %v1893, 4
        %v1895 = vadd.f32 %v1893, %v1894
        %v1896 = vrot.slane %v1895, 2
        %v1897 = vadd.f32 %v1895, %v1896
        %v1898 = vrot.slane %v1897, 1
        %v1899 = vadd.f32 %v1897, %v1898
        %v1900 = vsel %vm430, %v1889, 0.0
        %v1901 = vrot.slane %v1900, 4
        %v1902 = vadd.f32 %v1900, %v1901
        %v1903 = vrot.slane %v1902, 2
        %v1904 = vadd.f32 %v1902, %v1903
        %v1905 = vrot.slane %v1904, 1
        %v1906 = vadd.f32 %v1904, %v1905
        %v1907 = vsel %vm430, %v1886, 0.0
        %v1908 = vrot.slane %v1907, 4
        %v1909 = vadd.f32 %v1907, %v1908
        %v1910 = vrot.slane %v1909, 2
        %v1911 = vadd.f32 %v1909, %v1910
        %v1912 = vrot.slane %v1911, 1
        %v1913 = vadd.f32 %v1911, %v1912
        %v1914 = vsel %vm430, %v1890, 0.0
        %v1915 = vrot.slane %v1914, 4
        %v1916 = vadd.f32 %v1914, %v1915
        %v1917 = vrot.slane %v1916, 2
        %v1918 = vadd.f32 %v1916, %v1917
        %v1919 = vrot.slane %v1918, 1
        %v1920 = vadd.f32 %v1918, %v1919
        %s1921 = scalar_lea.vmem [#allocation6], 37
        %v1922 = vld [vmem:[%s1921] ss:$8 sm:$0xf]
        %v1924 = vlaneseq
        %v1925 = vshrl.u32 %v1924, 7
        %v1926 = vsub.s32 0, %v1925
        %v1927 = vrot.slane %v1922, %v1926
        %v1928 = vlaneseq
        %v1929 = vshrl.u32 %v1928, 7
        %v1930 = vsub.s32 1, %v1929
        %v1931 = vrot.slane %v1922, %v1930
        %v1932 = vlaneseq
        %v1933 = vshrl.u32 %v1932, 7
        %v1934 = vsub.s32 2, %v1933
        %v1935 = vrot.slane %v1922, %v1934
        %v1936 = vlaneseq
        %v1937 = vshrl.u32 %v1936, 7
        %v1938 = vsub.s32 3, %v1937
        %v1939 = vrot.slane %v1922, %v1938
        %v1944 = vmul.f32 %v1899, %v1927
        %v1945 = vmul.f32 %v1906, %v1931
        %v1946 = vmul.f32 %v1913, %v1935
        %v1947 = vmul.f32 %v1920, %v1939
        %v1952 = vcombine.low %v1944, %v1945
        %v1953 = vcombine.low %v1946, %v1947
        %v1955 = vunpack.c.l.s4 1966171168
        %v1956 = vunpack.c.0.s8 %v1955
        %v1957 = vlaneseq
        %v1958 = vshrl.u32 %v1957, 7
        %v1959 = vsub.s32 %v1956, %v1958
        %v1960 = vrot.slane %v1952, %v1959
        %v1962 = vunpack.c.l.s4 1966171168
        %v1963 = vunpack.c.0.s8 %v1962
        %v1964 = vlaneseq
        %v1965 = vshrl.u32 %v1964, 7
        %v1966 = vsub.s32 %v1963, %v1965
        %v1967 = vrot.slane %v1953, %v1966
        %v1968 = vcombine.low %v1960, %v1967
        %v1970 = vunpack.c.l.s4 1966171168
        %v1971 = vunpack.c.0.s8 %v1970
        %v1972 = vlaneseq
        %v1973 = vshrl.u32 %v1972, 7
        %v1974 = vsub.s32 %v1971, %v1973
        %v1975 = vrot.slane %v1968, %v1974
        %s1977 = scalar_lea.vmem [#allocation2], 37
        %1978 = vst.msk [vmem:[%s1977] ss:$8 sm:$0xf] %vm517, %v1975
        %1979 = vst.msk [vmem:[%s1977] ss:$8 sm:$0x0] %vm517, %v1975
        %1980 = vrot.lane.b32.xlu0 %v375, 126
        %v1981 = vpop.permute.xlu0 %1980
        %1982 = vrot.lane.b32.xlu0 %v395, 126
        %v1983 = vpop.permute.xlu0 %1982
        %1984 = vrot.lane.b32.xlu0 %v376, 126
        %v1985 = vpop.permute.xlu0 %1984
        %1986 = vrot.lane.b32.xlu0 %v396, 126
        %v1987 = vpop.permute.xlu0 %1986
        %vm1988 = vcmp.lt.s32.totalorder %v408, 126
        %v1989 = vsel %vm1988, %v1985, %v1987
        %v1990 = vsel %vm1988, %v1983, %v1985
        %v1991 = vsel %vm1988, %v1981, %v1983
        %v1992 = vsel %vm1988, %v1987, %v1981
        %v1997 = vcombine.low %v1991, %v1990
        %v1998 = vcombine.low %v1989, %v1992
        %v2001 = vmul.f32 %v373, %v1997
        %v2002 = vmul.f32 %v374, %v1998
        %v2005 = vcombine.high %v2001, %v2001
        %v2006 = vcombine.high %v2002, %v2002
        %v2009 = vsel %vm430, %v2001, 0.0
        %v2010 = vrot.slane %v2009, 4
        %v2011 = vadd.f32 %v2009, %v2010
        %v2012 = vrot.slane %v2011, 2
        %v2013 = vadd.f32 %v2011, %v2012
        %v2014 = vrot.slane %v2013, 1
        %v2015 = vadd.f32 %v2013, %v2014
        %v2016 = vsel %vm430, %v2005, 0.0
        %v2017 = vrot.slane %v2016, 4
        %v2018 = vadd.f32 %v2016, %v2017
        %v2019 = vrot.slane %v2018, 2
        %v2020 = vadd.f32 %v2018, %v2019
        %v2021 = vrot.slane %v2020, 1
        %v2022 = vadd.f32 %v2020, %v2021
        %v2023 = vsel %vm430, %v2002, 0.0
        %v2024 = vrot.slane %v2023, 4
        %v2025 = vadd.f32 %v2023, %v2024
        %v2026 = vrot.slane %v2025, 2
        %v2027 = vadd.f32 %v2025, %v2026
        %v2028 = vrot.slane %v2027, 1
        %v2029 = vadd.f32 %v2027, %v2028
        %v2030 = vsel %vm430, %v2006, 0.0
        %v2031 = vrot.slane %v2030, 4
        %v2032 = vadd.f32 %v2030, %v2031
        %v2033 = vrot.slane %v2032, 2
        %v2034 = vadd.f32 %v2032, %v2033
        %v2035 = vrot.slane %v2034, 1
        %v2036 = vadd.f32 %v2034, %v2035
        %s2037 = scalar_lea.vmem [#allocation6], 38
        %v2038 = vld [vmem:[%s2037] ss:$8 sm:$0xf]
        %v2040 = vlaneseq
        %v2041 = vshrl.u32 %v2040, 7
        %v2042 = vsub.s32 0, %v2041
        %v2043 = vrot.slane %v2038, %v2042
        %v2044 = vlaneseq
        %v2045 = vshrl.u32 %v2044, 7
        %v2046 = vsub.s32 1, %v2045
        %v2047 = vrot.slane %v2038, %v2046
        %v2048 = vlaneseq
        %v2049 = vshrl.u32 %v2048, 7
        %v2050 = vsub.s32 2, %v2049
        %v2051 = vrot.slane %v2038, %v2050
        %v2052 = vlaneseq
        %v2053 = vshrl.u32 %v2052, 7
        %v2054 = vsub.s32 3, %v2053
        %v2055 = vrot.slane %v2038, %v2054
        %v2060 = vmul.f32 %v2015, %v2043
        %v2061 = vmul.f32 %v2022, %v2047
        %v2062 = vmul.f32 %v2029, %v2051
        %v2063 = vmul.f32 %v2036, %v2055
        %v2068 = vcombine.low %v2060, %v2061
        %v2069 = vcombine.low %v2062, %v2063
        %v2071 = vunpack.c.l.s4 1966171168
        %v2072 = vunpack.c.0.s8 %v2071
        %v2073 = vlaneseq
        %v2074 = vshrl.u32 %v2073, 7
        %v2075 = vsub.s32 %v2072, %v2074
        %v2076 = vrot.slane %v2068, %v2075
        %v2078 = vunpack.c.l.s4 1966171168
        %v2079 = vunpack.c.0.s8 %v2078
        %v2080 = vlaneseq
        %v2081 = vshrl.u32 %v2080, 7
        %v2082 = vsub.s32 %v2079, %v2081
        %v2083 = vrot.slane %v2069, %v2082
        %v2084 = vcombine.low %v2076, %v2083
        %v2086 = vunpack.c.l.s4 1966171168
        %v2087 = vunpack.c.0.s8 %v2086
        %v2088 = vlaneseq
        %v2089 = vshrl.u32 %v2088, 7
        %v2090 = vsub.s32 %v2087, %v2089
        %v2091 = vrot.slane %v2084, %v2090
        %s2093 = scalar_lea.vmem [#allocation2], 38
        %2094 = vst.msk [vmem:[%s2093] ss:$8 sm:$0xf] %vm517, %v2091
        %2095 = vst.msk [vmem:[%s2093] ss:$8 sm:$0x0] %vm517, %v2091
        %2096 = vrot.lane.b32.xlu0 %v375, 114
        %v2097 = vpop.permute.xlu0 %2096
        %2098 = vrot.lane.b32.xlu0 %v395, 114
        %v2099 = vpop.permute.xlu0 %2098
        %2100 = vrot.lane.b32.xlu0 %v376, 114
        %v2101 = vpop.permute.xlu0 %2100
        %2102 = vrot.lane.b32.xlu0 %v396, 114
        %v2103 = vpop.permute.xlu0 %2102
        %vm2104 = vcmp.lt.s32.totalorder %v408, 114
        %v2105 = vsel %vm2104, %v2101, %v2103
        %v2106 = vsel %vm2104, %v2099, %v2101
        %v2107 = vsel %vm2104, %v2097, %v2099
        %v2108 = vsel %vm2104, %v2103, %v2097
        %v2113 = vcombine.low %v2107, %v2106
        %v2114 = vcombine.low %v2105, %v2108
        %v2117 = vmul.f32 %v373, %v2113
        %v2118 = vmul.f32 %v374, %v2114
        %v2121 = vcombine.high %v2117, %v2117
        %v2122 = vcombine.high %v2118, %v2118
        %v2125 = vsel %vm430, %v2117, 0.0
        %v2126 = vrot.slane %v2125, 4
        %v2127 = vadd.f32 %v2125, %v2126
        %v2128 = vrot.slane %v2127, 2
        %v2129 = vadd.f32 %v2127, %v2128
        %v2130 = vrot.slane %v2129, 1
        %v2131 = vadd.f32 %v2129, %v2130
        %v2132 = vsel %vm430, %v2121, 0.0
        %v2133 = vrot.slane %v2132, 4
        %v2134 = vadd.f32 %v2132, %v2133
        %v2135 = vrot.slane %v2134, 2
        %v2136 = vadd.f32 %v2134, %v2135
        %v2137 = vrot.slane %v2136, 1
        %v2138 = vadd.f32 %v2136, %v2137
        %v2139 = vsel %vm430, %v2118, 0.0
        %v2140 = vrot.slane %v2139, 4
        %v2141 = vadd.f32 %v2139, %v2140
        %v2142 = vrot.slane %v2141, 2
        %v2143 = vadd.f32 %v2141, %v2142
        %v2144 = vrot.slane %v2143, 1
        %v2145 = vadd.f32 %v2143, %v2144
        %v2146 = vsel %vm430, %v2122, 0.0
        %v2147 = vrot.slane %v2146, 4
        %v2148 = vadd.f32 %v2146, %v2147
        %v2149 = vrot.slane %v2148, 2
        %v2150 = vadd.f32 %v2148, %v2149
        %v2151 = vrot.slane %v2150, 1
        %v2152 = vadd.f32 %v2150, %v2151
        %s2153 = scalar_lea.vmem [#allocation6], 39
        %v2154 = vld [vmem:[%s2153] ss:$8 sm:$0xf]
        %v2156 = vlaneseq
        %v2157 = vshrl.u32 %v2156, 7
        %v2158 = vsub.s32 0, %v2157
        %v2159 = vrot.slane %v2154, %v2158
        %v2160 = vlaneseq
        %v2161 = vshrl.u32 %v2160, 7
        %v2162 = vsub.s32 1, %v2161
        %v2163 = vrot.slane %v2154, %v2162
        %v2164 = vlaneseq
        %v2165 = vshrl.u32 %v2164, 7
        %v2166 = vsub.s32 2, %v2165
        %v2167 = vrot.slane %v2154, %v2166
        %v2168 = vlaneseq
        %v2169 = vshrl.u32 %v2168, 7
        %v2170 = vsub.s32 3, %v2169
        %v2171 = vrot.slane %v2154, %v2170
        %v2176 = vmul.f32 %v2131, %v2159
        %v2177 = vmul.f32 %v2138, %v2163
        %v2178 = vmul.f32 %v2145, %v2167
        %v2179 = vmul.f32 %v2152, %v2171
        %v2184 = vcombine.low %v2176, %v2177
        %v2185 = vcombine.low %v2178, %v2179
        %v2187 = vunpack.c.l.s4 1966171168
        %v2188 = vunpack.c.0.s8 %v2187
        %v2189 = vlaneseq
        %v2190 = vshrl.u32 %v2189, 7
        %v2191 = vsub.s32 %v2188, %v2190
        %v2192 = vrot.slane %v2184, %v2191
        %v2194 = vunpack.c.l.s4 1966171168
        %v2195 = vunpack.c.0.s8 %v2194
        %v2196 = vlaneseq
        %v2197 = vshrl.u32 %v2196, 7
        %v2198 = vsub.s32 %v2195, %v2197
        %v2199 = vrot.slane %v2185, %v2198
        %v2200 = vcombine.low %v2192, %v2199
        %v2202 = vunpack.c.l.s4 1966171168
        %v2203 = vunpack.c.0.s8 %v2202
        %v2204 = vlaneseq
        %v2205 = vshrl.u32 %v2204, 7
        %v2206 = vsub.s32 %v2203, %v2205
        %v2207 = vrot.slane %v2200, %v2206
        %s2209 = scalar_lea.vmem [#allocation2], 39
        %2210 = vst.msk [vmem:[%s2209] ss:$8 sm:$0xf] %vm517, %v2207
        %2211 = vst.msk [vmem:[%s2209] ss:$8 sm:$0x0] %vm517, %v2207
        %2212 = vrot.lane.b32.xlu0 %v375, 113
        %v2213 = vpop.permute.xlu0 %2212
        %2214 = vrot.lane.b32.xlu0 %v395, 113
        %v2215 = vpop.permute.xlu0 %2214
        %2216 = vrot.lane.b32.xlu0 %v376, 113
        %v2217 = vpop.permute.xlu0 %2216
        %2218 = vrot.lane.b32.xlu0 %v396, 113
        %v2219 = vpop.permute.xlu0 %2218
        %vm2220 = vcmp.lt.s32.totalorder %v408, 113
        %v2221 = vsel %vm2220, %v2217, %v2219
        %v2222 = vsel %vm2220, %v2215, %v2217
        %v2223 = vsel %vm2220, %v2213, %v2215
        %v2224 = vsel %vm2220, %v2219, %v2213
        %v2229 = vcombine.low %v2223, %v2222
        %v2230 = vcombine.low %v2221, %v2224
        %v2233 = vmul.f32 %v373, %v2229
        %v2234 = vmul.f32 %v374, %v2230
        %v2237 = vcombine.high %v2233, %v2233
        %v2238 = vcombine.high %v2234, %v2234
        %v2241 = vsel %vm430, %v2233, 0.0
        %v2242 = vrot.slane %v2241, 4
        %v2243 = vadd.f32 %v2241, %v2242
        %v2244 = vrot.slane %v2243, 2
        %v2245 = vadd.f32 %v2243, %v2244
        %v2246 = vrot.slane %v2245, 1
        %v2247 = vadd.f32 %v2245, %v2246
        %v2248 = vsel %vm430, %v2237, 0.0
        %v2249 = vrot.slane %v2248, 4
        %v2250 = vadd.f32 %v2248, %v2249
        %v2251 = vrot.slane %v2250, 2
        %v2252 = vadd.f32 %v2250, %v2251
        %v2253 = vrot.slane %v2252, 1
        %v2254 = vadd.f32 %v2252, %v2253
        %v2255 = vsel %vm430, %v2234, 0.0
        %v2256 = vrot.slane %v2255, 4
        %v2257 = vadd.f32 %v2255, %v2256
        %v2258 = vrot.slane %v2257, 2
        %v2259 = vadd.f32 %v2257, %v2258
        %v2260 = vrot.slane %v2259, 1
        %v2261 = vadd.f32 %v2259, %v2260
        %v2262 = vsel %vm430, %v2238, 0.0
        %v2263 = vrot.slane %v2262, 4
        %v2264 = vadd.f32 %v2262, %v2263
        %v2265 = vrot.slane %v2264, 2
        %v2266 = vadd.f32 %v2264, %v2265
        %v2267 = vrot.slane %v2266, 1
        %v2268 = vadd.f32 %v2266, %v2267
        %s2269 = scalar_lea.vmem [#allocation6], 64
        %v2270 = vld [vmem:[%s2269] ss:$8 sm:$0xf]
        %v2272 = vlaneseq
        %v2273 = vshrl.u32 %v2272, 7
        %v2274 = vsub.s32 0, %v2273
        %v2275 = vrot.slane %v2270, %v2274
        %v2276 = vlaneseq
        %v2277 = vshrl.u32 %v2276, 7
        %v2278 = vsub.s32 1, %v2277
        %v2279 = vrot.slane %v2270, %v2278
        %v2280 = vlaneseq
        %v2281 = vshrl.u32 %v2280, 7
        %v2282 = vsub.s32 2, %v2281
        %v2283 = vrot.slane %v2270, %v2282
        %v2284 = vlaneseq
        %v2285 = vshrl.u32 %v2284, 7
        %v2286 = vsub.s32 3, %v2285
        %v2287 = vrot.slane %v2270, %v2286
        %v2292 = vmul.f32 %v2247, %v2275
        %v2293 = vmul.f32 %v2254, %v2279
        %v2294 = vmul.f32 %v2261, %v2283
        %v2295 = vmul.f32 %v2268, %v2287
        %v2300 = vcombine.low %v2292, %v2293
        %v2301 = vcombine.low %v2294, %v2295
        %v2303 = vunpack.c.l.s4 1966171168
        %v2304 = vunpack.c.0.s8 %v2303
        %v2305 = vlaneseq
        %v2306 = vshrl.u32 %v2305, 7
        %v2307 = vsub.s32 %v2304, %v2306
        %v2308 = vrot.slane %v2300, %v2307
        %v2310 = vunpack.c.l.s4 1966171168
        %v2311 = vunpack.c.0.s8 %v2310
        %v2312 = vlaneseq
        %v2313 = vshrl.u32 %v2312, 7
        %v2314 = vsub.s32 %v2311, %v2313
        %v2315 = vrot.slane %v2301, %v2314
        %v2316 = vcombine.low %v2308, %v2315
        %v2318 = vunpack.c.l.s4 1966171168
        %v2319 = vunpack.c.0.s8 %v2318
        %v2320 = vlaneseq
        %v2321 = vshrl.u32 %v2320, 7
        %v2322 = vsub.s32 %v2319, %v2321
        %v2323 = vrot.slane %v2316, %v2322
        %s2325 = scalar_lea.vmem [#allocation2], 64
        %2326 = vst.msk [vmem:[%s2325] ss:$8 sm:$0xf] %vm517, %v2323
        %2327 = vst.msk [vmem:[%s2325] ss:$8 sm:$0x0] %vm517, %v2323
        %2328 = vrot.lane.b32.xlu0 %v375, 112
        %v2329 = vpop.permute.xlu0 %2328
        %2330 = vrot.lane.b32.xlu0 %v395, 112
        %v2331 = vpop.permute.xlu0 %2330
        %2332 = vrot.lane.b32.xlu0 %v376, 112
        %v2333 = vpop.permute.xlu0 %2332
        %2334 = vrot.lane.b32.xlu0 %v396, 112
        %v2335 = vpop.permute.xlu0 %2334
        %vm2336 = vcmp.lt.s32.totalorder %v408, 112
        %v2337 = vsel %vm2336, %v2333, %v2335
        %v2338 = vsel %vm2336, %v2331, %v2333
        %v2339 = vsel %vm2336, %v2329, %v2331
        %v2340 = vsel %vm2336, %v2335, %v2329
        %v2345 = vcombine.low %v2339, %v2338
        %v2346 = vcombine.low %v2337, %v2340
        %v2349 = vmul.f32 %v373, %v2345
        %v2350 = vmul.f32 %v374, %v2346
        %v2353 = vcombine.high %v2349, %v2349
        %v2354 = vcombine.high %v2350, %v2350
        %v2357 = vsel %vm430, %v2349, 0.0
        %v2358 = vrot.slane %v2357, 4
        %v2359 = vadd.f32 %v2357, %v2358
        %v2360 = vrot.slane %v2359, 2
        %v2361 = vadd.f32 %v2359, %v2360
        %v2362 = vrot.slane %v2361, 1
        %v2363 = vadd.f32 %v2361, %v2362
        %v2364 = vsel %vm430, %v2353, 0.0
        %v2365 = vrot.slane %v2364, 4
        %v2366 = vadd.f32 %v2364, %v2365
        %v2367 = vrot.slane %v2366, 2
        %v2368 = vadd.f32 %v2366, %v2367
        %v2369 = vrot.slane %v2368, 1
        %v2370 = vadd.f32 %v2368, %v2369
        %v2371 = vsel %vm430, %v2350, 0.0
        %v2372 = vrot.slane %v2371, 4
        %v2373 = vadd.f32 %v2371, %v2372
        %v2374 = vrot.slane %v2373, 2
        %v2375 = vadd.f32 %v2373, %v2374
        %v2376 = vrot.slane %v2375, 1
        %v2377 = vadd.f32 %v2375, %v2376
        %v2378 = vsel %vm430, %v2354, 0.0
        %v2379 = vrot.slane %v2378, 4
        %v2380 = vadd.f32 %v2378, %v2379
        %v2381 = vrot.slane %v2380, 2
        %v2382 = vadd.f32 %v2380, %v2381
        %v2383 = vrot.slane %v2382, 1
        %v2384 = vadd.f32 %v2382, %v2383
        %s2385 = scalar_lea.vmem [#allocation6], 65
        %v2386 = vld [vmem:[%s2385] ss:$8 sm:$0xf]
        %v2388 = vlaneseq
        %v2389 = vshrl.u32 %v2388, 7
        %v2390 = vsub.s32 0, %v2389
        %v2391 = vrot.slane %v2386, %v2390
        %v2392 = vlaneseq
        %v2393 = vshrl.u32 %v2392, 7
        %v2394 = vsub.s32 1, %v2393
        %v2395 = vrot.slane %v2386, %v2394
        %v2396 = vlaneseq
        %v2397 = vshrl.u32 %v2396, 7
        %v2398 = vsub.s32 2, %v2397
        %v2399 = vrot.slane %v2386, %v2398
        %v2400 = vlaneseq
        %v2401 = vshrl.u32 %v2400, 7
        %v2402 = vsub.s32 3, %v2401
        %v2403 = vrot.slane %v2386, %v2402
        %v2408 = vmul.f32 %v2363, %v2391
        %v2409 = vmul.f32 %v2370, %v2395
        %v2410 = vmul.f32 %v2377, %v2399
        %v2411 = vmul.f32 %v2384, %v2403
        %v2416 = vcombine.low %v2408, %v2409
        %v2417 = vcombine.low %v2410, %v2411
        %v2419 = vunpack.c.l.s4 1966171168
        %v2420 = vunpack.c.0.s8 %v2419
        %v2421 = vlaneseq
        %v2422 = vshrl.u32 %v2421, 7
        %v2423 = vsub.s32 %v2420, %v2422
        %v2424 = vrot.slane %v2416, %v2423
        %v2426 = vunpack.c.l.s4 1966171168
        %v2427 = vunpack.c.0.s8 %v2426
        %v2428 = vlaneseq
        %v2429 = vshrl.u32 %v2428, 7
        %v2430 = vsub.s32 %v2427, %v2429
        %v2431 = vrot.slane %v2417, %v2430
        %v2432 = vcombine.low %v2424, %v2431
        %v2434 = vunpack.c.l.s4 1966171168
        %v2435 = vunpack.c.0.s8 %v2434
        %v2436 = vlaneseq
        %v2437 = vshrl.u32 %v2436, 7
        %v2438 = vsub.s32 %v2435, %v2437
        %v2439 = vrot.slane %v2432, %v2438
        %s2441 = scalar_lea.vmem [#allocation2], 65
        %2442 = vst.msk [vmem:[%s2441] ss:$8 sm:$0xf] %vm517, %v2439
        %2443 = vst.msk [vmem:[%s2441] ss:$8 sm:$0x0] %vm517, %v2439
        %2444 = vrot.lane.b32.xlu0 %v375, 111
        %v2445 = vpop.permute.xlu0 %2444
        %2446 = vrot.lane.b32.xlu0 %v395, 111
        %v2447 = vpop.permute.xlu0 %2446
        %2448 = vrot.lane.b32.xlu0 %v376, 111
        %v2449 = vpop.permute.xlu0 %2448
        %2450 = vrot.lane.b32.xlu0 %v396, 111
        %v2451 = vpop.permute.xlu0 %2450
        %vm2452 = vcmp.lt.s32.totalorder %v408, 111
        %v2453 = vsel %vm2452, %v2449, %v2451
        %v2454 = vsel %vm2452, %v2447, %v2449
        %v2455 = vsel %vm2452, %v2445, %v2447
        %v2456 = vsel %vm2452, %v2451, %v2445
        %v2461 = vcombine.low %v2455, %v2454
        %v2462 = vcombine.low %v2453, %v2456
        %v2465 = vmul.f32 %v373, %v2461
        %v2466 = vmul.f32 %v374, %v2462
        %v2469 = vcombine.high %v2465, %v2465
        %v2470 = vcombine.high %v2466, %v2466
        %v2473 = vsel %vm430, %v2465, 0.0
        %v2474 = vrot.slane %v2473, 4
        %v2475 = vadd.f32 %v2473, %v2474
        %v2476 = vrot.slane %v2475, 2
        %v2477 = vadd.f32 %v2475, %v2476
        %v2478 = vrot.slane %v2477, 1
        %v2479 = vadd.f32 %v2477, %v2478
        %v2480 = vsel %vm430, %v2469, 0.0
        %v2481 = vrot.slane %v2480, 4
        %v2482 = vadd.f32 %v2480, %v2481
        %v2483 = vrot.slane %v2482, 2
        %v2484 = vadd.f32 %v2482, %v2483
        %v2485 = vrot.slane %v2484, 1
        %v2486 = vadd.f32 %v2484, %v2485
        %v2487 = vsel %vm430, %v2466, 0.0
        %v2488 = vrot.slane %v2487, 4
        %v2489 = vadd.f32 %v2487, %v2488
        %v2490 = vrot.slane %v2489, 2
        %v2491 = vadd.f32 %v2489, %v2490
        %v2492 = vrot.slane %v2491, 1
        %v2493 = vadd.f32 %v2491, %v2492
        %v2494 = vsel %vm430, %v2470, 0.0
        %v2495 = vrot.slane %v2494, 4
        %v2496 = vadd.f32 %v2494, %v2495
        %v2497 = vrot.slane %v2496, 2
        %v2498 = vadd.f32 %v2496, %v2497
        %v2499 = vrot.slane %v2498, 1
        %v2500 = vadd.f32 %v2498, %v2499
        %s2501 = scalar_lea.vmem [#allocation6], 66
        %v2502 = vld [vmem:[%s2501] ss:$8 sm:$0xf]
        %v2504 = vlaneseq
        %v2505 = vshrl.u32 %v2504, 7
        %v2506 = vsub.s32 0, %v2505
        %v2507 = vrot.slane %v2502, %v2506
        %v2508 = vlaneseq
        %v2509 = vshrl.u32 %v2508, 7
        %v2510 = vsub.s32 1, %v2509
        %v2511 = vrot.slane %v2502, %v2510
        %v2512 = vlaneseq
        %v2513 = vshrl.u32 %v2512, 7
        %v2514 = vsub.s32 2, %v2513
        %v2515 = vrot.slane %v2502, %v2514
        %v2516 = vlaneseq
        %v2517 = vshrl.u32 %v2516, 7
        %v2518 = vsub.s32 3, %v2517
        %v2519 = vrot.slane %v2502, %v2518
        %v2524 = vmul.f32 %v2479, %v2507
        %v2525 = vmul.f32 %v2486, %v2511
        %v2526 = vmul.f32 %v2493, %v2515
        %v2527 = vmul.f32 %v2500, %v2519
        %v2532 = vcombine.low %v2524, %v2525
        %v2533 = vcombine.low %v2526, %v2527
        %v2535 = vunpack.c.l.s4 1966171168
        %v2536 = vunpack.c.0.s8 %v2535
        %v2537 = vlaneseq
        %v2538 = vshrl.u32 %v2537, 7
        %v2539 = vsub.s32 %v2536, %v2538
        %v2540 = vrot.slane %v2532, %v2539
        %v2542 = vunpack.c.l.s4 1966171168
        %v2543 = vunpack.c.0.s8 %v2542
        %v2544 = vlaneseq
        %v2545 = vshrl.u32 %v2544, 7
        %v2546 = vsub.s32 %v2543, %v2545
        %v2547 = vrot.slane %v2533, %v2546
        %v2548 = vcombine.low %v2540, %v2547
        %v2550 = vunpack.c.l.s4 1966171168
        %v2551 = vunpack.c.0.s8 %v2550
        %v2552 = vlaneseq
        %v2553 = vshrl.u32 %v2552, 7
        %v2554 = vsub.s32 %v2551, %v2553
        %v2555 = vrot.slane %v2548, %v2554
        %s2557 = scalar_lea.vmem [#allocation2], 66
        %2558 = vst.msk [vmem:[%s2557] ss:$8 sm:$0xf] %vm517, %v2555
        %2559 = vst.msk [vmem:[%s2557] ss:$8 sm:$0x0] %vm517, %v2555
        %2560 = vrot.lane.b32.xlu0 %v375, 110
        %v2561 = vpop.permute.xlu0 %2560
        %2562 = vrot.lane.b32.xlu0 %v395, 110
        %v2563 = vpop.permute.xlu0 %2562
        %2564 = vrot.lane.b32.xlu0 %v376, 110
        %v2565 = vpop.permute.xlu0 %2564
        %2566 = vrot.lane.b32.xlu0 %v396, 110
        %v2567 = vpop.permute.xlu0 %2566
        %vm2568 = vcmp.lt.s32.totalorder %v408, 110
        %v2569 = vsel %vm2568, %v2565, %v2567
        %v2570 = vsel %vm2568, %v2563, %v2565
        %v2571 = vsel %vm2568, %v2561, %v2563
        %v2572 = vsel %vm2568, %v2567, %v2561
        %v2577 = vcombine.low %v2571, %v2570
        %v2578 = vcombine.low %v2569, %v2572
        %v2581 = vmul.f32 %v373, %v2577
        %v2582 = vmul.f32 %v374, %v2578
        %v2585 = vcombine.high %v2581, %v2581
        %v2586 = vcombine.high %v2582, %v2582
        %v2589 = vsel %vm430, %v2581, 0.0
        %v2590 = vrot.slane %v2589, 4
        %v2591 = vadd.f32 %v2589, %v2590
        %v2592 = vrot.slane %v2591, 2
        %v2593 = vadd.f32 %v2591, %v2592
        %v2594 = vrot.slane %v2593, 1
        %v2595 = vadd.f32 %v2593, %v2594
        %v2596 = vsel %vm430, %v2585, 0.0
        %v2597 = vrot.slane %v2596, 4
        %v2598 = vadd.f32 %v2596, %v2597
        %v2599 = vrot.slane %v2598, 2
        %v2600 = vadd.f32 %v2598, %v2599
        %v2601 = vrot.slane %v2600, 1
        %v2602 = vadd.f32 %v2600, %v2601
        %v2603 = vsel %vm430, %v2582, 0.0
        %v2604 = vrot.slane %v2603, 4
        %v2605 = vadd.f32 %v2603, %v2604
        %v2606 = vrot.slane %v2605, 2
        %v2607 = vadd.f32 %v2605, %v2606
        %v2608 = vrot.slane %v2607, 1
        %v2609 = vadd.f32 %v2607, %v2608
        %v2610 = vsel %vm430, %v2586, 0.0
        %v2611 = vrot.slane %v2610, 4
        %v2612 = vadd.f32 %v2610, %v2611
        %v2613 = vrot.slane %v2612, 2
        %v2614 = vadd.f32 %v2612, %v2613
        %v2615 = vrot.slane %v2614, 1
        %v2616 = vadd.f32 %v2614, %v2615
        %s2617 = scalar_lea.vmem [#allocation6], 67
        %v2618 = vld [vmem:[%s2617] ss:$8 sm:$0xf]
        %v2620 = vlaneseq
        %v2621 = vshrl.u32 %v2620, 7
        %v2622 = vsub.s32 0, %v2621
        %v2623 = vrot.slane %v2618, %v2622
        %v2624 = vlaneseq
        %v2625 = vshrl.u32 %v2624, 7
        %v2626 = vsub.s32 1, %v2625
        %v2627 = vrot.slane %v2618, %v2626
        %v2628 = vlaneseq
        %v2629 = vshrl.u32 %v2628, 7
        %v2630 = vsub.s32 2, %v2629
        %v2631 = vrot.slane %v2618, %v2630
        %v2632 = vlaneseq
        %v2633 = vshrl.u32 %v2632, 7
        %v2634 = vsub.s32 3, %v2633
        %v2635 = vrot.slane %v2618, %v2634
        %v2640 = vmul.f32 %v2595, %v2623
        %v2641 = vmul.f32 %v2602, %v2627
        %v2642 = vmul.f32 %v2609, %v2631
        %v2643 = vmul.f32 %v2616, %v2635
        %v2648 = vcombine.low %v2640, %v2641
        %v2649 = vcombine.low %v2642, %v2643
        %v2651 = vunpack.c.l.s4 1966171168
        %v2652 = vunpack.c.0.s8 %v2651
        %v2653 = vlaneseq
        %v2654 = vshrl.u32 %v2653, 7
        %v2655 = vsub.s32 %v2652, %v2654
        %v2656 = vrot.slane %v2648, %v2655
        %v2658 = vunpack.c.l.s4 1966171168
        %v2659 = vunpack.c.0.s8 %v2658
        %v2660 = vlaneseq
        %v2661 = vshrl.u32 %v2660, 7
        %v2662 = vsub.s32 %v2659, %v2661
        %v2663 = vrot.slane %v2649, %v2662
        %v2664 = vcombine.low %v2656, %v2663
        %v2666 = vunpack.c.l.s4 1966171168
        %v2667 = vunpack.c.0.s8 %v2666
        %v2668 = vlaneseq
        %v2669 = vshrl.u32 %v2668, 7
        %v2670 = vsub.s32 %v2667, %v2669
        %v2671 = vrot.slane %v2664, %v2670
        %s2673 = scalar_lea.vmem [#allocation2], 67
        %2674 = vst.msk [vmem:[%s2673] ss:$8 sm:$0xf] %vm517, %v2671
        %2675 = vst.msk [vmem:[%s2673] ss:$8 sm:$0x0] %vm517, %v2671
        %2676 = vrot.lane.b32.xlu0 %v375, 98
        %v2677 = vpop.permute.xlu0 %2676
        %2678 = vrot.lane.b32.xlu0 %v395, 98
        %v2679 = vpop.permute.xlu0 %2678
        %2680 = vrot.lane.b32.xlu0 %v376, 98
        %v2681 = vpop.permute.xlu0 %2680
        %2682 = vrot.lane.b32.xlu0 %v396, 98
        %v2683 = vpop.permute.xlu0 %2682
        %vm2684 = vcmp.lt.s32.totalorder %v408, 98
        %v2685 = vsel %vm2684, %v2681, %v2683
        %v2686 = vsel %vm2684, %v2679, %v2681
        %v2687 = vsel %vm2684, %v2677, %v2679
        %v2688 = vsel %vm2684, %v2683, %v2677
        %v2693 = vcombine.low %v2687, %v2686
        %v2694 = vcombine.low %v2685, %v2688
        %v2697 = vmul.f32 %v373, %v2693
        %v2698 = vmul.f32 %v374, %v2694
        %v2701 = vcombine.high %v2697, %v2697
        %v2702 = vcombine.high %v2698, %v2698
        %v2705 = vsel %vm430, %v2697, 0.0
        %v2706 = vrot.slane %v2705, 4
        %v2707 = vadd.f32 %v2705, %v2706
        %v2708 = vrot.slane %v2707, 2
        %v2709 = vadd.f32 %v2707, %v2708
        %v2710 = vrot.slane %v2709, 1
        %v2711 = vadd.f32 %v2709, %v2710
        %v2712 = vsel %vm430, %v2701, 0.0
        %v2713 = vrot.slane %v2712, 4
        %v2714 = vadd.f32 %v2712, %v2713
        %v2715 = vrot.slane %v2714, 2
        %v2716 = vadd.f32 %v2714, %v2715
        %v2717 = vrot.slane %v2716, 1
        %v2718 = vadd.f32 %v2716, %v2717
        %v2719 = vsel %vm430, %v2698, 0.0
        %v2720 = vrot.slane %v2719, 4
        %v2721 = vadd.f32 %v2719, %v2720
        %v2722 = vrot.slane %v2721, 2
        %v2723 = vadd.f32 %v2721, %v2722
        %v2724 = vrot.slane %v2723, 1
        %v2725 = vadd.f32 %v2723, %v2724
        %v2726 = vsel %vm430, %v2702, 0.0
        %v2727 = vrot.slane %v2726, 4
        %v2728 = vadd.f32 %v2726, %v2727
        %v2729 = vrot.slane %v2728, 2
        %v2730 = vadd.f32 %v2728, %v2729
        %v2731 = vrot.slane %v2730, 1
        %v2732 = vadd.f32 %v2730, %v2731
        %s2733 = scalar_lea.vmem [#allocation6], 68
        %v2734 = vld [vmem:[%s2733] ss:$8 sm:$0xf]
        %v2736 = vlaneseq
        %v2737 = vshrl.u32 %v2736, 7
        %v2738 = vsub.s32 0, %v2737
        %v2739 = vrot.slane %v2734, %v2738
        %v2740 = vlaneseq
        %v2741 = vshrl.u32 %v2740, 7
        %v2742 = vsub.s32 1, %v2741
        %v2743 = vrot.slane %v2734, %v2742
        %v2744 = vlaneseq
        %v2745 = vshrl.u32 %v2744, 7
        %v2746 = vsub.s32 2, %v2745
        %v2747 = vrot.slane %v2734, %v2746
        %v2748 = vlaneseq
        %v2749 = vshrl.u32 %v2748, 7
        %v2750 = vsub.s32 3, %v2749
        %v2751 = vrot.slane %v2734, %v2750
        %v2756 = vmul.f32 %v2711, %v2739
        %v2757 = vmul.f32 %v2718, %v2743
        %v2758 = vmul.f32 %v2725, %v2747
        %v2759 = vmul.f32 %v2732, %v2751
        %v2764 = vcombine.low %v2756, %v2757
        %v2765 = vcombine.low %v2758, %v2759
        %v2767 = vunpack.c.l.s4 1966171168
        %v2768 = vunpack.c.0.s8 %v2767
        %v2769 = vlaneseq
        %v2770 = vshrl.u32 %v2769, 7
        %v2771 = vsub.s32 %v2768, %v2770
        %v2772 = vrot.slane %v2764, %v2771
        %v2774 = vunpack.c.l.s4 1966171168
        %v2775 = vunpack.c.0.s8 %v2774
        %v2776 = vlaneseq
        %v2777 = vshrl.u32 %v2776, 7
        %v2778 = vsub.s32 %v2775, %v2777
        %v2779 = vrot.slane %v2765, %v2778
        %v2780 = vcombine.low %v2772, %v2779
        %v2782 = vunpack.c.l.s4 1966171168
        %v2783 = vunpack.c.0.s8 %v2782
        %v2784 = vlaneseq
        %v2785 = vshrl.u32 %v2784, 7
        %v2786 = vsub.s32 %v2783, %v2785
        %v2787 = vrot.slane %v2780, %v2786
        %s2789 = scalar_lea.vmem [#allocation2], 68
        %2790 = vst.msk [vmem:[%s2789] ss:$8 sm:$0xf] %vm517, %v2787
        %2791 = vst.msk [vmem:[%s2789] ss:$8 sm:$0x0] %vm517, %v2787
        %2792 = vrot.lane.b32.xlu0 %v375, 97
        %v2793 = vpop.permute.xlu0 %2792
        %2794 = vrot.lane.b32.xlu0 %v395, 97
        %v2795 = vpop.permute.xlu0 %2794
        %2796 = vrot.lane.b32.xlu0 %v376, 97
        %v2797 = vpop.permute.xlu0 %2796
        %2798 = vrot.lane.b32.xlu0 %v396, 97
        %v2799 = vpop.permute.xlu0 %2798
        %vm2800 = vcmp.lt.s32.totalorder %v408, 97
        %v2801 = vsel %vm2800, %v2797, %v2799
        %v2802 = vsel %vm2800, %v2795, %v2797
        %v2803 = vsel %vm2800, %v2793, %v2795
        %v2804 = vsel %vm2800, %v2799, %v2793
        %v2809 = vcombine.low %v2803, %v2802
        %v2810 = vcombine.low %v2801, %v2804
        %v2813 = vmul.f32 %v373, %v2809
        %v2814 = vmul.f32 %v374, %v2810
        %v2817 = vcombine.high %v2813, %v2813
        %v2818 = vcombine.high %v2814, %v2814
        %v2821 = vsel %vm430, %v2813, 0.0
        %v2822 = vrot.slane %v2821, 4
        %v2823 = vadd.f32 %v2821, %v2822
        %v2824 = vrot.slane %v2823, 2
        %v2825 = vadd.f32 %v2823, %v2824
        %v2826 = vrot.slane %v2825, 1
        %v2827 = vadd.f32 %v2825, %v2826
        %v2828 = vsel %vm430, %v2817, 0.0
        %v2829 = vrot.slane %v2828, 4
        %v2830 = vadd.f32 %v2828, %v2829
        %v2831 = vrot.slane %v2830, 2
        %v2832 = vadd.f32 %v2830, %v2831
        %v2833 = vrot.slane %v2832, 1
        %v2834 = vadd.f32 %v2832, %v2833
        %v2835 = vsel %vm430, %v2814, 0.0
        %v2836 = vrot.slane %v2835, 4
        %v2837 = vadd.f32 %v2835, %v2836
        %v2838 = vrot.slane %v2837, 2
        %v2839 = vadd.f32 %v2837, %v2838
        %v2840 = vrot.slane %v2839, 1
        %v2841 = vadd.f32 %v2839, %v2840
        %v2842 = vsel %vm430, %v2818, 0.0
        %v2843 = vrot.slane %v2842, 4
        %v2844 = vadd.f32 %v2842, %v2843
        %v2845 = vrot.slane %v2844, 2
        %v2846 = vadd.f32 %v2844, %v2845
        %v2847 = vrot.slane %v2846, 1
        %v2848 = vadd.f32 %v2846, %v2847
        %s2849 = scalar_lea.vmem [#allocation6], 69
        %v2850 = vld [vmem:[%s2849] ss:$8 sm:$0xf]
        %v2852 = vlaneseq
        %v2853 = vshrl.u32 %v2852, 7
        %v2854 = vsub.s32 0, %v2853
        %v2855 = vrot.slane %v2850, %v2854
        %v2856 = vlaneseq
        %v2857 = vshrl.u32 %v2856, 7
        %v2858 = vsub.s32 1, %v2857
        %v2859 = vrot.slane %v2850, %v2858
        %v2860 = vlaneseq
        %v2861 = vshrl.u32 %v2860, 7
        %v2862 = vsub.s32 2, %v2861
        %v2863 = vrot.slane %v2850, %v2862
        %v2864 = vlaneseq
        %v2865 = vshrl.u32 %v2864, 7
        %v2866 = vsub.s32 3, %v2865
        %v2867 = vrot.slane %v2850, %v2866
        %v2872 = vmul.f32 %v2827, %v2855
        %v2873 = vmul.f32 %v2834, %v2859
        %v2874 = vmul.f32 %v2841, %v2863
        %v2875 = vmul.f32 %v2848, %v2867
        %v2880 = vcombine.low %v2872, %v2873
        %v2881 = vcombine.low %v2874, %v2875
        %v2883 = vunpack.c.l.s4 1966171168
        %v2884 = vunpack.c.0.s8 %v2883
        %v2885 = vlaneseq
        %v2886 = vshrl.u32 %v2885, 7
        %v2887 = vsub.s32 %v2884, %v2886
        %v2888 = vrot.slane %v2880, %v2887
        %v2890 = vunpack.c.l.s4 1966171168
        %v2891 = vunpack.c.0.s8 %v2890
        %v2892 = vlaneseq
        %v2893 = vshrl.u32 %v2892, 7
        %v2894 = vsub.s32 %v2891, %v2893
        %v2895 = vrot.slane %v2881, %v2894
        %v2896 = vcombine.low %v2888, %v2895
        %v2898 = vunpack.c.l.s4 1966171168
        %v2899 = vunpack.c.0.s8 %v2898
        %v2900 = vlaneseq
        %v2901 = vshrl.u32 %v2900, 7
        %v2902 = vsub.s32 %v2899, %v2901
        %v2903 = vrot.slane %v2896, %v2902
        %s2905 = scalar_lea.vmem [#allocation2], 69
        %2906 = vst.msk [vmem:[%s2905] ss:$8 sm:$0xf] %vm517, %v2903
        %2907 = vst.msk [vmem:[%s2905] ss:$8 sm:$0x0] %vm517, %v2903
        %2908 = vrot.lane.b32.xlu0 %v375, 96
        %v2909 = vpop.permute.xlu0 %2908
        %2910 = vrot.lane.b32.xlu0 %v395, 96
        %v2911 = vpop.permute.xlu0 %2910
        %2912 = vrot.lane.b32.xlu0 %v376, 96
        %v2913 = vpop.permute.xlu0 %2912
        %2914 = vrot.lane.b32.xlu0 %v396, 96
        %v2915 = vpop.permute.xlu0 %2914
        %vm2916 = vcmp.lt.s32.totalorder %v408, 96
        %v2917 = vsel %vm2916, %v2913, %v2915
        %v2918 = vsel %vm2916, %v2911, %v2913
        %v2919 = vsel %vm2916, %v2909, %v2911
        %v2920 = vsel %vm2916, %v2915, %v2909
        %v2925 = vcombine.low %v2919, %v2918
        %v2926 = vcombine.low %v2917, %v2920
        %v2929 = vmul.f32 %v373, %v2925
        %v2930 = vmul.f32 %v374, %v2926
        %v2933 = vcombine.high %v2929, %v2929
        %v2934 = vcombine.high %v2930, %v2930
        %v2937 = vsel %vm430, %v2929, 0.0
        %v2938 = vrot.slane %v2937, 4
        %v2939 = vadd.f32 %v2937, %v2938
        %v2940 = vrot.slane %v2939, 2
        %v2941 = vadd.f32 %v2939, %v2940
        %v2942 = vrot.slane %v2941, 1
        %v2943 = vadd.f32 %v2941, %v2942
        %v2944 = vsel %vm430, %v2933, 0.0
        %v2945 = vrot.slane %v2944, 4
        %v2946 = vadd.f32 %v2944, %v2945
        %v2947 = vrot.slane %v2946, 2
        %v2948 = vadd.f32 %v2946, %v2947
        %v2949 = vrot.slane %v2948, 1
        %v2950 = vadd.f32 %v2948, %v2949
        %v2951 = vsel %vm430, %v2930, 0.0
        %v2952 = vrot.slane %v2951, 4
        %v2953 = vadd.f32 %v2951, %v2952
        %v2954 = vrot.slane %v2953, 2
        %v2955 = vadd.f32 %v2953, %v2954
        %v2956 = vrot.slane %v2955, 1
        %v2957 = vadd.f32 %v2955, %v2956
        %v2958 = vsel %vm430, %v2934, 0.0
        %v2959 = vrot.slane %v2958, 4
        %v2960 = vadd.f32 %v2958, %v2959
        %v2961 = vrot.slane %v2960, 2
        %v2962 = vadd.f32 %v2960, %v2961
        %v2963 = vrot.slane %v2962, 1
        %v2964 = vadd.f32 %v2962, %v2963
        %s2965 = scalar_lea.vmem [#allocation6], 70
        %v2966 = vld [vmem:[%s2965] ss:$8 sm:$0xf]
        %v2968 = vlaneseq
        %v2969 = vshrl.u32 %v2968, 7
        %v2970 = vsub.s32 0, %v2969
        %v2971 = vrot.slane %v2966, %v2970
        %v2972 = vlaneseq
        %v2973 = vshrl.u32 %v2972, 7
        %v2974 = vsub.s32 1, %v2973
        %v2975 = vrot.slane %v2966, %v2974
        %v2976 = vlaneseq
        %v2977 = vshrl.u32 %v2976, 7
        %v2978 = vsub.s32 2, %v2977
        %v2979 = vrot.slane %v2966, %v2978
        %v2980 = vlaneseq
        %v2981 = vshrl.u32 %v2980, 7
        %v2982 = vsub.s32 3, %v2981
        %v2983 = vrot.slane %v2966, %v2982
        %v2988 = vmul.f32 %v2943, %v2971
        %v2989 = vmul.f32 %v2950, %v2975
        %v2990 = vmul.f32 %v2957, %v2979
        %v2991 = vmul.f32 %v2964, %v2983
        %v2996 = vcombine.low %v2988, %v2989
        %v2997 = vcombine.low %v2990, %v2991
        %v2999 = vunpack.c.l.s4 1966171168
        %v3000 = vunpack.c.0.s8 %v2999
        %v3001 = vlaneseq
        %v3002 = vshrl.u32 %v3001, 7
        %v3003 = vsub.s32 %v3000, %v3002
        %v3004 = vrot.slane %v2996, %v3003
        %v3006 = vunpack.c.l.s4 1966171168
        %v3007 = vunpack.c.0.s8 %v3006
        %v3008 = vlaneseq
        %v3009 = vshrl.u32 %v3008, 7
        %v3010 = vsub.s32 %v3007, %v3009
        %v3011 = vrot.slane %v2997, %v3010
        %v3012 = vcombine.low %v3004, %v3011
        %v3014 = vunpack.c.l.s4 1966171168
        %v3015 = vunpack.c.0.s8 %v3014
        %v3016 = vlaneseq
        %v3017 = vshrl.u32 %v3016, 7
        %v3018 = vsub.s32 %v3015, %v3017
        %v3019 = vrot.slane %v3012, %v3018
        %s3021 = scalar_lea.vmem [#allocation2], 70
        %3022 = vst.msk [vmem:[%s3021] ss:$8 sm:$0xf] %vm517, %v3019
        %3023 = vst.msk [vmem:[%s3021] ss:$8 sm:$0x0] %vm517, %v3019
        %3024 = vrot.lane.b32.xlu0 %v375, 95
        %v3025 = vpop.permute.xlu0 %3024
        %3026 = vrot.lane.b32.xlu0 %v395, 95
        %v3027 = vpop.permute.xlu0 %3026
        %3028 = vrot.lane.b32.xlu0 %v376, 95
        %v3029 = vpop.permute.xlu0 %3028
        %3030 = vrot.lane.b32.xlu0 %v396, 95
        %v3031 = vpop.permute.xlu0 %3030
        %vm3032 = vcmp.lt.s32.totalorder %v408, 95
        %v3033 = vsel %vm3032, %v3029, %v3031
        %v3034 = vsel %vm3032, %v3027, %v3029
        %v3035 = vsel %vm3032, %v3025, %v3027
        %v3036 = vsel %vm3032, %v3031, %v3025
        %v3041 = vcombine.low %v3035, %v3034
        %v3042 = vcombine.low %v3033, %v3036
        %v3045 = vmul.f32 %v373, %v3041
        %v3046 = vmul.f32 %v374, %v3042
        %v3049 = vcombine.high %v3045, %v3045
        %v3050 = vcombine.high %v3046, %v3046
        %v3053 = vsel %vm430, %v3045, 0.0
        %v3054 = vrot.slane %v3053, 4
        %v3055 = vadd.f32 %v3053, %v3054
        %v3056 = vrot.slane %v3055, 2
        %v3057 = vadd.f32 %v3055, %v3056
        %v3058 = vrot.slane %v3057, 1
        %v3059 = vadd.f32 %v3057, %v3058
        %v3060 = vsel %vm430, %v3049, 0.0
        %v3061 = vrot.slane %v3060, 4
        %v3062 = vadd.f32 %v3060, %v3061
        %v3063 = vrot.slane %v3062, 2
        %v3064 = vadd.f32 %v3062, %v3063
        %v3065 = vrot.slane %v3064, 1
        %v3066 = vadd.f32 %v3064, %v3065
        %v3067 = vsel %vm430, %v3046, 0.0
        %v3068 = vrot.slane %v3067, 4
        %v3069 = vadd.f32 %v3067, %v3068
        %v3070 = vrot.slane %v3069, 2
        %v3071 = vadd.f32 %v3069, %v3070
        %v3072 = vrot.slane %v3071, 1
        %v3073 = vadd.f32 %v3071, %v3072
        %v3074 = vsel %vm430, %v3050, 0.0
        %v3075 = vrot.slane %v3074, 4
        %v3076 = vadd.f32 %v3074, %v3075
        %v3077 = vrot.slane %v3076, 2
        %v3078 = vadd.f32 %v3076, %v3077
        %v3079 = vrot.slane %v3078, 1
        %v3080 = vadd.f32 %v3078, %v3079
        %s3081 = scalar_lea.vmem [#allocation6], 71
        %v3082 = vld [vmem:[%s3081] ss:$8 sm:$0xf]
        %v3084 = vlaneseq
        %v3085 = vshrl.u32 %v3084, 7
        %v3086 = vsub.s32 0, %v3085
        %v3087 = vrot.slane %v3082, %v3086
        %v3088 = vlaneseq
        %v3089 = vshrl.u32 %v3088, 7
        %v3090 = vsub.s32 1, %v3089
        %v3091 = vrot.slane %v3082, %v3090
        %v3092 = vlaneseq
        %v3093 = vshrl.u32 %v3092, 7
        %v3094 = vsub.s32 2, %v3093
        %v3095 = vrot.slane %v3082, %v3094
        %v3096 = vlaneseq
        %v3097 = vshrl.u32 %v3096, 7
        %v3098 = vsub.s32 3, %v3097
        %v3099 = vrot.slane %v3082, %v3098
        %v3104 = vmul.f32 %v3059, %v3087
        %v3105 = vmul.f32 %v3066, %v3091
        %v3106 = vmul.f32 %v3073, %v3095
        %v3107 = vmul.f32 %v3080, %v3099
        %v3112 = vcombine.low %v3104, %v3105
        %v3113 = vcombine.low %v3106, %v3107
        %v3115 = vunpack.c.l.s4 1966171168
        %v3116 = vunpack.c.0.s8 %v3115
        %v3117 = vlaneseq
        %v3118 = vshrl.u32 %v3117, 7
        %v3119 = vsub.s32 %v3116, %v3118
        %v3120 = vrot.slane %v3112, %v3119
        %v3122 = vunpack.c.l.s4 1966171168
        %v3123 = vunpack.c.0.s8 %v3122
        %v3124 = vlaneseq
        %v3125 = vshrl.u32 %v3124, 7
        %v3126 = vsub.s32 %v3123, %v3125
        %v3127 = vrot.slane %v3113, %v3126
        %v3128 = vcombine.low %v3120, %v3127
        %v3130 = vunpack.c.l.s4 1966171168
        %v3131 = vunpack.c.0.s8 %v3130
        %v3132 = vlaneseq
        %v3133 = vshrl.u32 %v3132, 7
        %v3134 = vsub.s32 %v3131, %v3133
        %v3135 = vrot.slane %v3128, %v3134
        %s3137 = scalar_lea.vmem [#allocation2], 71
        %3138 = vst.msk [vmem:[%s3137] ss:$8 sm:$0xf] %vm517, %v3135
        %3139 = vst.msk [vmem:[%s3137] ss:$8 sm:$0x0] %vm517, %v3135
        %3140 = vrot.lane.b32.xlu0 %v375, 94
        %v3141 = vpop.permute.xlu0 %3140
        %3142 = vrot.lane.b32.xlu0 %v395, 94
        %v3143 = vpop.permute.xlu0 %3142
        %3144 = vrot.lane.b32.xlu0 %v376, 94
        %v3145 = vpop.permute.xlu0 %3144
        %3146 = vrot.lane.b32.xlu0 %v396, 94
        %v3147 = vpop.permute.xlu0 %3146
        %vm3148 = vcmp.lt.s32.totalorder %v408, 94
        %v3149 = vsel %vm3148, %v3145, %v3147
        %v3150 = vsel %vm3148, %v3143, %v3145
        %v3151 = vsel %vm3148, %v3141, %v3143
        %v3152 = vsel %vm3148, %v3147, %v3141
        %v3157 = vcombine.low %v3151, %v3150
        %v3158 = vcombine.low %v3149, %v3152
        %v3161 = vmul.f32 %v373, %v3157
        %v3162 = vmul.f32 %v374, %v3158
        %v3165 = vcombine.high %v3161, %v3161
        %v3166 = vcombine.high %v3162, %v3162
        %v3169 = vsel %vm430, %v3161, 0.0
        %v3170 = vrot.slane %v3169, 4
        %v3171 = vadd.f32 %v3169, %v3170
        %v3172 = vrot.slane %v3171, 2
        %v3173 = vadd.f32 %v3171, %v3172
        %v3174 = vrot.slane %v3173, 1
        %v3175 = vadd.f32 %v3173, %v3174
        %v3176 = vsel %vm430, %v3165, 0.0
        %v3177 = vrot.slane %v3176, 4
        %v3178 = vadd.f32 %v3176, %v3177
        %v3179 = vrot.slane %v3178, 2
        %v3180 = vadd.f32 %v3178, %v3179
        %v3181 = vrot.slane %v3180, 1
        %v3182 = vadd.f32 %v3180, %v3181
        %v3183 = vsel %vm430, %v3162, 0.0
        %v3184 = vrot.slane %v3183, 4
        %v3185 = vadd.f32 %v3183, %v3184
        %v3186 = vrot.slane %v3185, 2
        %v3187 = vadd.f32 %v3185, %v3186
        %v3188 = vrot.slane %v3187, 1
        %v3189 = vadd.f32 %v3187, %v3188
        %v3190 = vsel %vm430, %v3166, 0.0
        %v3191 = vrot.slane %v3190, 4
        %v3192 = vadd.f32 %v3190, %v3191
        %v3193 = vrot.slane %v3192, 2
        %v3194 = vadd.f32 %v3192, %v3193
        %v3195 = vrot.slane %v3194, 1
        %v3196 = vadd.f32 %v3194, %v3195
        %s3197 = scalar_lea.vmem [#allocation6], 96
        %v3198 = vld [vmem:[%s3197] ss:$8 sm:$0xf]
        %v3200 = vlaneseq
        %v3201 = vshrl.u32 %v3200, 7
        %v3202 = vsub.s32 0, %v3201
        %v3203 = vrot.slane %v3198, %v3202
        %v3204 = vlaneseq
        %v3205 = vshrl.u32 %v3204, 7
        %v3206 = vsub.s32 1, %v3205
        %v3207 = vrot.slane %v3198, %v3206
        %v3208 = vlaneseq
        %v3209 = vshrl.u32 %v3208, 7
        %v3210 = vsub.s32 2, %v3209
        %v3211 = vrot.slane %v3198, %v3210
        %v3212 = vlaneseq
        %v3213 = vshrl.u32 %v3212, 7
        %v3214 = vsub.s32 3, %v3213
        %v3215 = vrot.slane %v3198, %v3214
        %v3220 = vmul.f32 %v3175, %v3203
        %v3221 = vmul.f32 %v3182, %v3207
        %v3222 = vmul.f32 %v3189, %v3211
        %v3223 = vmul.f32 %v3196, %v3215
        %v3228 = vcombine.low %v3220, %v3221
        %v3229 = vcombine.low %v3222, %v3223
        %v3231 = vunpack.c.l.s4 1966171168
        %v3232 = vunpack.c.0.s8 %v3231
        %v3233 = vlaneseq
        %v3234 = vshrl.u32 %v3233, 7
        %v3235 = vsub.s32 %v3232, %v3234
        %v3236 = vrot.slane %v3228, %v3235
        %v3238 = vunpack.c.l.s4 1966171168
        %v3239 = vunpack.c.0.s8 %v3238
        %v3240 = vlaneseq
        %v3241 = vshrl.u32 %v3240, 7
        %v3242 = vsub.s32 %v3239, %v3241
        %v3243 = vrot.slane %v3229, %v3242
        %v3244 = vcombine.low %v3236, %v3243
        %v3246 = vunpack.c.l.s4 1966171168
        %v3247 = vunpack.c.0.s8 %v3246
        %v3248 = vlaneseq
        %v3249 = vshrl.u32 %v3248, 7
        %v3250 = vsub.s32 %v3247, %v3249
        %v3251 = vrot.slane %v3244, %v3250
        %s3253 = scalar_lea.vmem [#allocation2], 96
        %3254 = vst.msk [vmem:[%s3253] ss:$8 sm:$0xf] %vm517, %v3251
        %3255 = vst.msk [vmem:[%s3253] ss:$8 sm:$0x0] %vm517, %v3251
        %v3256 = vld [vmem:[#allocation2] sm:$0xff]
        %v3257 = vld [vmem:[#allocation2 + $0x8] sm:$0xff]
        %v3258 = vld [vmem:[#allocation2 + $0x10] sm:$0xff]
        %v3259 = vld [vmem:[#allocation2 + $0x18] sm:$0xff]
        %v3260 = vld [vmem:[#allocation2 + $0x20] sm:$0xff]
        %v3261 = vld [vmem:[#allocation2 + $0x28] sm:$0xff]
        %v3262 = vld [vmem:[#allocation2 + $0x30] sm:$0xff]
        %v3263 = vld [vmem:[#allocation2 + $0x38] sm:$0xff]
        %v3264 = vld [vmem:[#allocation2 + $0x40] sm:$0xff]
        %v3265 = vld [vmem:[#allocation2 + $0x48] sm:$0xff]
        %v3266 = vld [vmem:[#allocation2 + $0x50] sm:$0xff]
        %v3267 = vld [vmem:[#allocation2 + $0x58] sm:$0xff]
        %v3268 = vld [vmem:[#allocation2 + $0x60] sm:$0xff]
        %v3269 = vld [vmem:[#allocation2 + $0x68] sm:$0xff]
        %v3270 = vld [vmem:[#allocation2 + $0x70] sm:$0xff]
        %v3271 = vld [vmem:[#allocation2 + $0x78] sm:$0xff]
        %v3272 = vld [vmem:[#allocation9] sm:$0xff]
        %v3273 = vld [vmem:[#allocation9 + $0x8] sm:$0xff]
        %v3274 = vld [vmem:[#allocation9 + $0x10] sm:$0xff]
        %v3275 = vld [vmem:[#allocation9 + $0x18] sm:$0xff]
        %v3276 = vld [vmem:[#allocation9 + $0x20] sm:$0xff]
        %v3277 = vld [vmem:[#allocation9 + $0x28] sm:$0xff]
        %v3278 = vld [vmem:[#allocation9 + $0x30] sm:$0xff]
        %v3279 = vld [vmem:[#allocation9 + $0x38] sm:$0xff]
        %v3280 = vld [vmem:[#allocation9 + $0x40] sm:$0xff]
        %v3281 = vld [vmem:[#allocation9 + $0x48] sm:$0xff]
        %v3282 = vld [vmem:[#allocation9 + $0x50] sm:$0xff]
        %v3283 = vld [vmem:[#allocation9 + $0x58] sm:$0xff]
        %v3284 = vld [vmem:[#allocation9 + $0x60] sm:$0xff]
        %v3285 = vld [vmem:[#allocation9 + $0x68] sm:$0xff]
        %v3286 = vld [vmem:[#allocation9 + $0x70] sm:$0xff]
        %v3287 = vld [vmem:[#allocation9 + $0x78] sm:$0xff]
        %v3288 = vld [vmem:[#allocation9 + $0x80] sm:$0xff]
        %v3289 = vld [vmem:[#allocation9 + $0x88] sm:$0xff]
        %v3290 = vld [vmem:[#allocation9 + $0x90] sm:$0xff]
        %v3291 = vld [vmem:[#allocation9 + $0x98] sm:$0xff]
        %v3292 = vld [vmem:[#allocation9 + $0xa0] sm:$0xff]
        %v3293 = vld [vmem:[#allocation9 + $0xa8] sm:$0xff]
        %v3294 = vld [vmem:[#allocation9 + $0xb0] sm:$0xff]
        %v3295 = vld [vmem:[#allocation9 + $0xb8] sm:$0xff]
        %3296 = vrot.lane.b32.xlu0 %v3256, 17
        %v3297 = vpop.permute.xlu0 %3296
        %3298 = vrot.lane.b32.xlu0 %v3260, 17
        %v3299 = vpop.permute.xlu0 %3298
        %3300 = vrot.lane.b32.xlu0 %v3264, 17
        %v3301 = vpop.permute.xlu0 %3300
        %3302 = vrot.lane.b32.xlu0 %v3268, 17
        %v3303 = vpop.permute.xlu0 %3302
        %3304 = vrot.lane.b32.xlu0 %v3257, 17
        %v3305 = vpop.permute.xlu0 %3304
        %3306 = vrot.lane.b32.xlu0 %v3261, 17
        %v3307 = vpop.permute.xlu0 %3306
        %3308 = vrot.lane.b32.xlu0 %v3265, 17
        %v3309 = vpop.permute.xlu0 %3308
        %3310 = vrot.lane.b32.xlu0 %v3269, 17
        %v3311 = vpop.permute.xlu0 %3310
        %3312 = vrot.lane.b32.xlu0 %v3258, 17
        %v3313 = vpop.permute.xlu0 %3312
        %3314 = vrot.lane.b32.xlu0 %v3262, 17
        %v3315 = vpop.permute.xlu0 %3314
        %3316 = vrot.lane.b32.xlu0 %v3266, 17
        %v3317 = vpop.permute.xlu0 %3316
        %3318 = vrot.lane.b32.xlu0 %v3270, 17
        %v3319 = vpop.permute.xlu0 %3318
        %3320 = vrot.lane.b32.xlu0 %v3259, 17
        %v3321 = vpop.permute.xlu0 %3320
        %3322 = vrot.lane.b32.xlu0 %v3263, 17
        %v3323 = vpop.permute.xlu0 %3322
        %3324 = vrot.lane.b32.xlu0 %v3267, 17
        %v3325 = vpop.permute.xlu0 %3324
        %3326 = vrot.lane.b32.xlu0 %v3271, 17
        %v3327 = vpop.permute.xlu0 %3326
        %v3328 = vsel %vm1108, %v3313, %v3321
        %v3329 = vsel %vm1108, %v3315, %v3323
        %v3330 = vsel %vm1108, %v3317, %v3325
        %v3331 = vsel %vm1108, %v3319, %v3327
        %v3332 = vsel %vm1108, %v3305, %v3313
        %v3333 = vsel %vm1108, %v3307, %v3315
        %v3334 = vsel %vm1108, %v3309, %v3317
        %v3335 = vsel %vm1108, %v3311, %v3319
        %v3336 = vsel %vm1108, %v3297, %v3305
        %v3337 = vsel %vm1108, %v3299, %v3307
        %v3338 = vsel %vm1108, %v3301, %v3309
        %v3339 = vsel %vm1108, %v3303, %v3311
        %v3340 = vsel %vm1108, %v3321, %v3297
        %v3341 = vsel %vm1108, %v3323, %v3299
        %v3342 = vsel %vm1108, %v3325, %v3301
        %v3343 = vsel %vm1108, %v3327, %v3303
        %v3344 = vld [vmem:[#allocation8] ss:$8 sm:$0xf]
        %v3346 = vlaneseq
        %v3347 = vshrl.u32 %v3346, 7
        %v3348 = vsub.s32 0, %v3347
        %v3349 = vrot.slane %v3344, %v3348
        %v3350 = vlaneseq
        %v3351 = vshrl.u32 %v3350, 7
        %v3352 = vsub.s32 1, %v3351
        %v3353 = vrot.slane %v3344, %v3352
        %v3354 = vlaneseq
        %v3355 = vshrl.u32 %v3354, 7
        %v3356 = vsub.s32 2, %v3355
        %v3357 = vrot.slane %v3344, %v3356
        %v3358 = vlaneseq
        %v3359 = vshrl.u32 %v3358, 7
        %v3360 = vsub.s32 3, %v3359
        %v3361 = vrot.slane %v3344, %v3360
        %v3366 = vmul.f32 %v3340, %v3349
        %v3367 = vmul.f32 %v3336, %v3353
        %v3368 = vmul.f32 %v3332, %v3357
        %v3369 = vmul.f32 %v3328, %v3361
        %v3370 = vmul.f32 %v3341, %v3349
        %v3371 = vmul.f32 %v3337, %v3353
        %v3372 = vmul.f32 %v3333, %v3357
        %v3373 = vmul.f32 %v3329, %v3361
        %v3374 = vmul.f32 %v3342, %v3349
        %v3375 = vmul.f32 %v3338, %v3353
        %v3376 = vmul.f32 %v3334, %v3357
        %v3377 = vmul.f32 %v3330, %v3361
        %v3378 = vmul.f32 %v3343, %v3349
        %v3379 = vmul.f32 %v3339, %v3353
        %v3380 = vmul.f32 %v3335, %v3357
        %v3381 = vmul.f32 %v3331, %v3361
        %3382 = vrot.lane.b32.xlu0 %v3256, 16
        %v3383 = vpop.permute.xlu0 %3382
        %3384 = vrot.lane.b32.xlu0 %v3260, 16
        %v3385 = vpop.permute.xlu0 %3384
        %3386 = vrot.lane.b32.xlu0 %v3264, 16
        %v3387 = vpop.permute.xlu0 %3386
        %3388 = vrot.lane.b32.xlu0 %v3268, 16
        %v3389 = vpop.permute.xlu0 %3388
        %3390 = vrot.lane.b32.xlu0 %v3257, 16
        %v3391 = vpop.permute.xlu0 %3390
        %3392 = vrot.lane.b32.xlu0 %v3261, 16
        %v3393 = vpop.permute.xlu0 %3392
        %3394 = vrot.lane.b32.xlu0 %v3265, 16
        %v3395 = vpop.permute.xlu0 %3394
        %3396 = vrot.lane.b32.xlu0 %v3269, 16
        %v3397 = vpop.permute.xlu0 %3396
        %3398 = vrot.lane.b32.xlu0 %v3258, 16
        %v3399 = vpop.permute.xlu0 %3398
        %3400 = vrot.lane.b32.xlu0 %v3262, 16
        %v3401 = vpop.permute.xlu0 %3400
        %3402 = vrot.lane.b32.xlu0 %v3266, 16
        %v3403 = vpop.permute.xlu0 %3402
        %3404 = vrot.lane.b32.xlu0 %v3270, 16
        %v3405 = vpop.permute.xlu0 %3404
        %3406 = vrot.lane.b32.xlu0 %v3259, 16
        %v3407 = vpop.permute.xlu0 %3406
        %3408 = vrot.lane.b32.xlu0 %v3263, 16
        %v3409 = vpop.permute.xlu0 %3408
        %3410 = vrot.lane.b32.xlu0 %v3267, 16
        %v3411 = vpop.permute.xlu0 %3410
        %3412 = vrot.lane.b32.xlu0 %v3271, 16
        %v3413 = vpop.permute.xlu0 %3412
        %v3414 = vsel %vm1224, %v3399, %v3407
        %v3415 = vsel %vm1224, %v3401, %v3409
        %v3416 = vsel %vm1224, %v3403, %v3411
        %v3417 = vsel %vm1224, %v3405, %v3413
        %v3418 = vsel %vm1224, %v3391, %v3399
        %v3419 = vsel %vm1224, %v3393, %v3401
        %v3420 = vsel %vm1224, %v3395, %v3403
        %v3421 = vsel %vm1224, %v3397, %v3405
        %v3422 = vsel %vm1224, %v3383, %v3391
        %v3423 = vsel %vm1224, %v3385, %v3393
        %v3424 = vsel %vm1224, %v3387, %v3395
        %v3425 = vsel %vm1224, %v3389, %v3397
        %v3426 = vsel %vm1224, %v3407, %v3383
        %v3427 = vsel %vm1224, %v3409, %v3385
        %v3428 = vsel %vm1224, %v3411, %v3387
        %v3429 = vsel %vm1224, %v3413, %v3389
        %s3430 = scalar_lea.vmem [#allocation8], 1
        %v3431 = vld [vmem:[%s3430] ss:$8 sm:$0xf]
        %v3433 = vlaneseq
        %v3434 = vshrl.u32 %v3433, 7
        %v3435 = vsub.s32 0, %v3434
        %v3436 = vrot.slane %v3431, %v3435
        %v3437 = vlaneseq
        %v3438 = vshrl.u32 %v3437, 7
        %v3439 = vsub.s32 1, %v3438
        %v3440 = vrot.slane %v3431, %v3439
        %v3441 = vlaneseq
        %v3442 = vshrl.u32 %v3441, 7
        %v3443 = vsub.s32 2, %v3442
        %v3444 = vrot.slane %v3431, %v3443
        %v3445 = vlaneseq
        %v3446 = vshrl.u32 %v3445, 7
        %v3447 = vsub.s32 3, %v3446
        %v3448 = vrot.slane %v3431, %v3447
        %v3453 = vmul.f32 %v3426, %v3436
        %v3454 = vmul.f32 %v3422, %v3440
        %v3455 = vmul.f32 %v3418, %v3444
        %v3456 = vmul.f32 %v3414, %v3448
        %v3457 = vmul.f32 %v3427, %v3436
        %v3458 = vmul.f32 %v3423, %v3440
        %v3459 = vmul.f32 %v3419, %v3444
        %v3460 = vmul.f32 %v3415, %v3448
        %v3461 = vmul.f32 %v3428, %v3436
        %v3462 = vmul.f32 %v3424, %v3440
        %v3463 = vmul.f32 %v3420, %v3444
        %v3464 = vmul.f32 %v3416, %v3448
        %v3465 = vmul.f32 %v3429, %v3436
        %v3466 = vmul.f32 %v3425, %v3440
        %v3467 = vmul.f32 %v3421, %v3444
        %v3468 = vmul.f32 %v3417, %v3448
        %3469 = vrot.lane.b32.xlu0 %v3256, 15
        %v3470 = vpop.permute.xlu0 %3469
        %3471 = vrot.lane.b32.xlu0 %v3260, 15
        %v3472 = vpop.permute.xlu0 %3471
        %3473 = vrot.lane.b32.xlu0 %v3264, 15
        %v3474 = vpop.permute.xlu0 %3473
        %3475 = vrot.lane.b32.xlu0 %v3268, 15
        %v3476 = vpop.permute.xlu0 %3475
        %3477 = vrot.lane.b32.xlu0 %v3257, 15
        %v3478 = vpop.permute.xlu0 %3477
        %3479 = vrot.lane.b32.xlu0 %v3261, 15
        %v3480 = vpop.permute.xlu0 %3479
        %3481 = vrot.lane.b32.xlu0 %v3265, 15
        %v3482 = vpop.permute.xlu0 %3481
        %3483 = vrot.lane.b32.xlu0 %v3269, 15
        %v3484 = vpop.permute.xlu0 %3483
        %3485 = vrot.lane.b32.xlu0 %v3258, 15
        %v3486 = vpop.permute.xlu0 %3485
        %3487 = vrot.lane.b32.xlu0 %v3262, 15
        %v3488 = vpop.permute.xlu0 %3487
        %3489 = vrot.lane.b32.xlu0 %v3266, 15
        %v3490 = vpop.permute.xlu0 %3489
        %3491 = vrot.lane.b32.xlu0 %v3270, 15
        %v3492 = vpop.permute.xlu0 %3491
        %3493 = vrot.lane.b32.xlu0 %v3259, 15
        %v3494 = vpop.permute.xlu0 %3493
        %3495 = vrot.lane.b32.xlu0 %v3263, 15
        %v3496 = vpop.permute.xlu0 %3495
        %3497 = vrot.lane.b32.xlu0 %v3267, 15
        %v3498 = vpop.permute.xlu0 %3497
        %3499 = vrot.lane.b32.xlu0 %v3271, 15
        %v3500 = vpop.permute.xlu0 %3499
        %v3501 = vsel %vm1340, %v3486, %v3494
        %v3502 = vsel %vm1340, %v3488, %v3496
        %v3503 = vsel %vm1340, %v3490, %v3498
        %v3504 = vsel %vm1340, %v3492, %v3500
        %v3505 = vsel %vm1340, %v3478, %v3486
        %v3506 = vsel %vm1340, %v3480, %v3488
        %v3507 = vsel %vm1340, %v3482, %v3490
        %v3508 = vsel %vm1340, %v3484, %v3492
        %v3509 = vsel %vm1340, %v3470, %v3478
        %v3510 = vsel %vm1340, %v3472, %v3480
        %v3511 = vsel %vm1340, %v3474, %v3482
        %v3512 = vsel %vm1340, %v3476, %v3484
        %v3513 = vsel %vm1340, %v3494, %v3470
        %v3514 = vsel %vm1340, %v3496, %v3472
        %v3515 = vsel %vm1340, %v3498, %v3474
        %v3516 = vsel %vm1340, %v3500, %v3476
        %s3517 = scalar_lea.vmem [#allocation8], 2
        %v3518 = vld [vmem:[%s3517] ss:$8 sm:$0xf]
        %v3520 = vlaneseq
        %v3521 = vshrl.u32 %v3520, 7
        %v3522 = vsub.s32 0, %v3521
        %v3523 = vrot.slane %v3518, %v3522
        %v3524 = vlaneseq
        %v3525 = vshrl.u32 %v3524, 7
        %v3526 = vsub.s32 1, %v3525
        %v3527 = vrot.slane %v3518, %v3526
        %v3528 = vlaneseq
        %v3529 = vshrl.u32 %v3528, 7
        %v3530 = vsub.s32 2, %v3529
        %v3531 = vrot.slane %v3518, %v3530
        %v3532 = vlaneseq
        %v3533 = vshrl.u32 %v3532, 7
        %v3534 = vsub.s32 3, %v3533
        %v3535 = vrot.slane %v3518, %v3534
        %v3540 = vmul.f32 %v3513, %v3523
        %v3541 = vmul.f32 %v3509, %v3527
        %v3542 = vmul.f32 %v3505, %v3531
        %v3543 = vmul.f32 %v3501, %v3535
        %v3544 = vmul.f32 %v3514, %v3523
        %v3545 = vmul.f32 %v3510, %v3527
        %v3546 = vmul.f32 %v3506, %v3531
        %v3547 = vmul.f32 %v3502, %v3535
        %v3548 = vmul.f32 %v3515, %v3523
        %v3549 = vmul.f32 %v3511, %v3527
        %v3550 = vmul.f32 %v3507, %v3531
        %v3551 = vmul.f32 %v3503, %v3535
        %v3552 = vmul.f32 %v3516, %v3523
        %v3553 = vmul.f32 %v3512, %v3527
        %v3554 = vmul.f32 %v3508, %v3531
        %v3555 = vmul.f32 %v3504, %v3535
        %3556 = vrot.lane.b32.xlu0 %v3256, 1
        %v3557 = vpop.permute.xlu0 %3556
        %3558 = vrot.lane.b32.xlu0 %v3260, 1
        %v3559 = vpop.permute.xlu0 %3558
        %3560 = vrot.lane.b32.xlu0 %v3264, 1
        %v3561 = vpop.permute.xlu0 %3560
        %3562 = vrot.lane.b32.xlu0 %v3268, 1
        %v3563 = vpop.permute.xlu0 %3562
        %3564 = vrot.lane.b32.xlu0 %v3257, 1
        %v3565 = vpop.permute.xlu0 %3564
        %3566 = vrot.lane.b32.xlu0 %v3261, 1
        %v3567 = vpop.permute.xlu0 %3566
        %3568 = vrot.lane.b32.xlu0 %v3265, 1
        %v3569 = vpop.permute.xlu0 %3568
        %3570 = vrot.lane.b32.xlu0 %v3269, 1
        %v3571 = vpop.permute.xlu0 %3570
        %3572 = vrot.lane.b32.xlu0 %v3258, 1
        %v3573 = vpop.permute.xlu0 %3572
        %3574 = vrot.lane.b32.xlu0 %v3262, 1
        %v3575 = vpop.permute.xlu0 %3574
        %3576 = vrot.lane.b32.xlu0 %v3266, 1
        %v3577 = vpop.permute.xlu0 %3576
        %3578 = vrot.lane.b32.xlu0 %v3270, 1
        %v3579 = vpop.permute.xlu0 %3578
        %3580 = vrot.lane.b32.xlu0 %v3259, 1
        %v3581 = vpop.permute.xlu0 %3580
        %3582 = vrot.lane.b32.xlu0 %v3263, 1
        %v3583 = vpop.permute.xlu0 %3582
        %3584 = vrot.lane.b32.xlu0 %v3267, 1
        %v3585 = vpop.permute.xlu0 %3584
        %3586 = vrot.lane.b32.xlu0 %v3271, 1
        %v3587 = vpop.permute.xlu0 %3586
        %v3588 = vsel %vm1688, %v3573, %v3581
        %v3589 = vsel %vm1688, %v3575, %v3583
        %v3590 = vsel %vm1688, %v3577, %v3585
        %v3591 = vsel %vm1688, %v3579, %v3587
        %v3592 = vsel %vm1688, %v3565, %v3573
        %v3593 = vsel %vm1688, %v3567, %v3575
        %v3594 = vsel %vm1688, %v3569, %v3577
        %v3595 = vsel %vm1688, %v3571, %v3579
        %v3596 = vsel %vm1688, %v3557, %v3565
        %v3597 = vsel %vm1688, %v3559, %v3567
        %v3598 = vsel %vm1688, %v3561, %v3569
        %v3599 = vsel %vm1688, %v3563, %v3571
        %v3600 = vsel %vm1688, %v3581, %v3557
        %v3601 = vsel %vm1688, %v3583, %v3559
        %v3602 = vsel %vm1688, %v3585, %v3561
        %v3603 = vsel %vm1688, %v3587, %v3563
        %s3604 = scalar_lea.vmem [#allocation8], 3
        %v3605 = vld [vmem:[%s3604] ss:$8 sm:$0xf]
        %v3607 = vlaneseq
        %v3608 = vshrl.u32 %v3607, 7
        %v3609 = vsub.s32 0, %v3608
        %v3610 = vrot.slane %v3605, %v3609
        %v3611 = vlaneseq
        %v3612 = vshrl.u32 %v3611, 7
        %v3613 = vsub.s32 1, %v3612
        %v3614 = vrot.slane %v3605, %v3613
        %v3615 = vlaneseq
        %v3616 = vshrl.u32 %v3615, 7
        %v3617 = vsub.s32 2, %v3616
        %v3618 = vrot.slane %v3605, %v3617
        %v3619 = vlaneseq
        %v3620 = vshrl.u32 %v3619, 7
        %v3621 = vsub.s32 3, %v3620
        %v3622 = vrot.slane %v3605, %v3621
        %v3627 = vmul.f32 %v3600, %v3610
        %v3628 = vmul.f32 %v3596, %v3614
        %v3629 = vmul.f32 %v3592, %v3618
        %v3630 = vmul.f32 %v3588, %v3622
        %v3631 = vmul.f32 %v3601, %v3610
        %v3632 = vmul.f32 %v3597, %v3614
        %v3633 = vmul.f32 %v3593, %v3618
        %v3634 = vmul.f32 %v3589, %v3622
        %v3635 = vmul.f32 %v3602, %v3610
        %v3636 = vmul.f32 %v3598, %v3614
        %v3637 = vmul.f32 %v3594, %v3618
        %v3638 = vmul.f32 %v3590, %v3622
        %v3639 = vmul.f32 %v3603, %v3610
        %v3640 = vmul.f32 %v3599, %v3614
        %v3641 = vmul.f32 %v3595, %v3618
        %v3642 = vmul.f32 %v3591, %v3622
        %3643 = vrot.lane.b32.xlu0 %v3256, 127
        %v3644 = vpop.permute.xlu0 %3643
        %3645 = vrot.lane.b32.xlu0 %v3260, 127
        %v3646 = vpop.permute.xlu0 %3645
        %3647 = vrot.lane.b32.xlu0 %v3264, 127
        %v3648 = vpop.permute.xlu0 %3647
        %3649 = vrot.lane.b32.xlu0 %v3268, 127
        %v3650 = vpop.permute.xlu0 %3649
        %3651 = vrot.lane.b32.xlu0 %v3257, 127
        %v3652 = vpop.permute.xlu0 %3651
        %3653 = vrot.lane.b32.xlu0 %v3261, 127
        %v3654 = vpop.permute.xlu0 %3653
        %3655 = vrot.lane.b32.xlu0 %v3265, 127
        %v3656 = vpop.permute.xlu0 %3655
        %3657 = vrot.lane.b32.xlu0 %v3269, 127
        %v3658 = vpop.permute.xlu0 %3657
        %3659 = vrot.lane.b32.xlu0 %v3258, 127
        %v3660 = vpop.permute.xlu0 %3659
        %3661 = vrot.lane.b32.xlu0 %v3262, 127
        %v3662 = vpop.permute.xlu0 %3661
        %3663 = vrot.lane.b32.xlu0 %v3266, 127
        %v3664 = vpop.permute.xlu0 %3663
        %3665 = vrot.lane.b32.xlu0 %v3270, 127
        %v3666 = vpop.permute.xlu0 %3665
        %3667 = vrot.lane.b32.xlu0 %v3259, 127
        %v3668 = vpop.permute.xlu0 %3667
        %3669 = vrot.lane.b32.xlu0 %v3263, 127
        %v3670 = vpop.permute.xlu0 %3669
        %3671 = vrot.lane.b32.xlu0 %v3267, 127
        %v3672 = vpop.permute.xlu0 %3671
        %3673 = vrot.lane.b32.xlu0 %v3271, 127
        %v3674 = vpop.permute.xlu0 %3673
        %v3675 = vsel %vm1872, %v3660, %v3668
        %v3676 = vsel %vm1872, %v3662, %v3670
        %v3677 = vsel %vm1872, %v3664, %v3672
        %v3678 = vsel %vm1872, %v3666, %v3674
        %v3679 = vsel %vm1872, %v3652, %v3660
        %v3680 = vsel %vm1872, %v3654, %v3662
        %v3681 = vsel %vm1872, %v3656, %v3664
        %v3682 = vsel %vm1872, %v3658, %v3666
        %v3683 = vsel %vm1872, %v3644, %v3652
        %v3684 = vsel %vm1872, %v3646, %v3654
        %v3685 = vsel %vm1872, %v3648, %v3656
        %v3686 = vsel %vm1872, %v3650, %v3658
        %v3687 = vsel %vm1872, %v3668, %v3644
        %v3688 = vsel %vm1872, %v3670, %v3646
        %v3689 = vsel %vm1872, %v3672, %v3648
        %v3690 = vsel %vm1872, %v3674, %v3650
        %s3691 = scalar_lea.vmem [#allocation8], 5
        %v3692 = vld [vmem:[%s3691] ss:$8 sm:$0xf]
        %v3694 = vlaneseq
        %v3695 = vshrl.u32 %v3694, 7
        %v3696 = vsub.s32 0, %v3695
        %v3697 = vrot.slane %v3692, %v3696
        %v3698 = vlaneseq
        %v3699 = vshrl.u32 %v3698, 7
        %v3700 = vsub.s32 1, %v3699
        %v3701 = vrot.slane %v3692, %v3700
        %v3702 = vlaneseq
        %v3703 = vshrl.u32 %v3702, 7
        %v3704 = vsub.s32 2, %v3703
        %v3705 = vrot.slane %v3692, %v3704
        %v3706 = vlaneseq
        %v3707 = vshrl.u32 %v3706, 7
        %v3708 = vsub.s32 3, %v3707
        %v3709 = vrot.slane %v3692, %v3708
        %v3714 = vmul.f32 %v3683, %v3697
        %v3715 = vmul.f32 %v3679, %v3701
        %v3716 = vmul.f32 %v3675, %v3705
        %v3717 = vmul.f32 %v3687, %v3709
        %v3718 = vmul.f32 %v3684, %v3697
        %v3719 = vmul.f32 %v3680, %v3701
        %v3720 = vmul.f32 %v3676, %v3705
        %v3721 = vmul.f32 %v3688, %v3709
        %v3722 = vmul.f32 %v3685, %v3697
        %v3723 = vmul.f32 %v3681, %v3701
        %v3724 = vmul.f32 %v3677, %v3705
        %v3725 = vmul.f32 %v3689, %v3709
        %v3726 = vmul.f32 %v3686, %v3697
        %v3727 = vmul.f32 %v3682, %v3701
        %v3728 = vmul.f32 %v3678, %v3705
        %v3729 = vmul.f32 %v3690, %v3709
        %3730 = vrot.lane.b32.xlu0 %v3256, 113
        %v3731 = vpop.permute.xlu0 %3730
        %3732 = vrot.lane.b32.xlu0 %v3260, 113
        %v3733 = vpop.permute.xlu0 %3732
        %3734 = vrot.lane.b32.xlu0 %v3264, 113
        %v3735 = vpop.permute.xlu0 %3734
        %3736 = vrot.lane.b32.xlu0 %v3268, 113
        %v3737 = vpop.permute.xlu0 %3736
        %3738 = vrot.lane.b32.xlu0 %v3257, 113
        %v3739 = vpop.permute.xlu0 %3738
        %3740 = vrot.lane.b32.xlu0 %v3261, 113
        %v3741 = vpop.permute.xlu0 %3740
        %3742 = vrot.lane.b32.xlu0 %v3265, 113
        %v3743 = vpop.permute.xlu0 %3742
        %3744 = vrot.lane.b32.xlu0 %v3269, 113
        %v3745 = vpop.permute.xlu0 %3744
        %3746 = vrot.lane.b32.xlu0 %v3258, 113
        %v3747 = vpop.permute.xlu0 %3746
        %3748 = vrot.lane.b32.xlu0 %v3262, 113
        %v3749 = vpop.permute.xlu0 %3748
        %3750 = vrot.lane.b32.xlu0 %v3266, 113
        %v3751 = vpop.permute.xlu0 %3750
        %3752 = vrot.lane.b32.xlu0 %v3270, 113
        %v3753 = vpop.permute.xlu0 %3752
        %3754 = vrot.lane.b32.xlu0 %v3259, 113
        %v3755 = vpop.permute.xlu0 %3754
        %3756 = vrot.lane.b32.xlu0 %v3263, 113
        %v3757 = vpop.permute.xlu0 %3756
        %3758 = vrot.lane.b32.xlu0 %v3267, 113
        %v3759 = vpop.permute.xlu0 %3758
        %3760 = vrot.lane.b32.xlu0 %v3271, 113
        %v3761 = vpop.permute.xlu0 %3760
        %v3762 = vsel %vm2220, %v3747, %v3755
        %v3763 = vsel %vm2220, %v3749, %v3757
        %v3764 = vsel %vm2220, %v3751, %v3759
        %v3765 = vsel %vm2220, %v3753, %v3761
        %v3766 = vsel %vm2220, %v3739, %v3747
        %v3767 = vsel %vm2220, %v3741, %v3749
        %v3768 = vsel %vm2220, %v3743, %v3751
        %v3769 = vsel %vm2220, %v3745, %v3753
        %v3770 = vsel %vm2220, %v3731, %v3739
        %v3771 = vsel %vm2220, %v3733, %v3741
        %v3772 = vsel %vm2220, %v3735, %v3743
        %v3773 = vsel %vm2220, %v3737, %v3745
        %v3774 = vsel %vm2220, %v3755, %v3731
        %v3775 = vsel %vm2220, %v3757, %v3733
        %v3776 = vsel %vm2220, %v3759, %v3735
        %v3777 = vsel %vm2220, %v3761, %v3737
        %s3778 = scalar_lea.vmem [#allocation8], 6
        %v3779 = vld [vmem:[%s3778] ss:$8 sm:$0xf]
        %v3781 = vlaneseq
        %v3782 = vshrl.u32 %v3781, 7
        %v3783 = vsub.s32 0, %v3782
        %v3784 = vrot.slane %v3779, %v3783
        %v3785 = vlaneseq
        %v3786 = vshrl.u32 %v3785, 7
        %v3787 = vsub.s32 1, %v3786
        %v3788 = vrot.slane %v3779, %v3787
        %v3789 = vlaneseq
        %v3790 = vshrl.u32 %v3789, 7
        %v3791 = vsub.s32 2, %v3790
        %v3792 = vrot.slane %v3779, %v3791
        %v3793 = vlaneseq
        %v3794 = vshrl.u32 %v3793, 7
        %v3795 = vsub.s32 3, %v3794
        %v3796 = vrot.slane %v3779, %v3795
        %v3801 = vmul.f32 %v3770, %v3784
        %v3802 = vmul.f32 %v3766, %v3788
        %v3803 = vmul.f32 %v3762, %v3792
        %v3804 = vmul.f32 %v3774, %v3796
        %v3805 = vmul.f32 %v3771, %v3784
        %v3806 = vmul.f32 %v3767, %v3788
        %v3807 = vmul.f32 %v3763, %v3792
        %v3808 = vmul.f32 %v3775, %v3796
        %v3809 = vmul.f32 %v3772, %v3784
        %v3810 = vmul.f32 %v3768, %v3788
        %v3811 = vmul.f32 %v3764, %v3792
        %v3812 = vmul.f32 %v3776, %v3796
        %v3813 = vmul.f32 %v3773, %v3784
        %v3814 = vmul.f32 %v3769, %v3788
        %v3815 = vmul.f32 %v3765, %v3792
        %v3816 = vmul.f32 %v3777, %v3796
        %3817 = vrot.lane.b32.xlu0 %v3256, 112
        %v3818 = vpop.permute.xlu0 %3817
        %3819 = vrot.lane.b32.xlu0 %v3260, 112
        %v3820 = vpop.permute.xlu0 %3819
        %3821 = vrot.lane.b32.xlu0 %v3264, 112
        %v3822 = vpop.permute.xlu0 %3821
        %3823 = vrot.lane.b32.xlu0 %v3268, 112
        %v3824 = vpop.permute.xlu0 %3823
        %3825 = vrot.lane.b32.xlu0 %v3257, 112
        %v3826 = vpop.permute.xlu0 %3825
        %3827 = vrot.lane.b32.xlu0 %v3261, 112
        %v3828 = vpop.permute.xlu0 %3827
        %3829 = vrot.lane.b32.xlu0 %v3265, 112
        %v3830 = vpop.permute.xlu0 %3829
        %3831 = vrot.lane.b32.xlu0 %v3269, 112
        %v3832 = vpop.permute.xlu0 %3831
        %3833 = vrot.lane.b32.xlu0 %v3258, 112
        %v3834 = vpop.permute.xlu0 %3833
        %3835 = vrot.lane.b32.xlu0 %v3262, 112
        %v3836 = vpop.permute.xlu0 %3835
        %3837 = vrot.lane.b32.xlu0 %v3266, 112
        %v3838 = vpop.permute.xlu0 %3837
        %3839 = vrot.lane.b32.xlu0 %v3270, 112
        %v3840 = vpop.permute.xlu0 %3839
        %3841 = vrot.lane.b32.xlu0 %v3259, 112
        %v3842 = vpop.permute.xlu0 %3841
        %3843 = vrot.lane.b32.xlu0 %v3263, 112
        %v3844 = vpop.permute.xlu0 %3843
        %3845 = vrot.lane.b32.xlu0 %v3267, 112
        %v3846 = vpop.permute.xlu0 %3845
        %3847 = vrot.lane.b32.xlu0 %v3271, 112
        %v3848 = vpop.permute.xlu0 %3847
        %v3849 = vsel %vm2336, %v3834, %v3842
        %v3850 = vsel %vm2336, %v3836, %v3844
        %v3851 = vsel %vm2336, %v3838, %v3846
        %v3852 = vsel %vm2336, %v3840, %v3848
        %v3853 = vsel %vm2336, %v3826, %v3834
        %v3854 = vsel %vm2336, %v3828, %v3836
        %v3855 = vsel %vm2336, %v3830, %v3838
        %v3856 = vsel %vm2336, %v3832, %v3840
        %v3857 = vsel %vm2336, %v3818, %v3826
        %v3858 = vsel %vm2336, %v3820, %v3828
        %v3859 = vsel %vm2336, %v3822, %v3830
        %v3860 = vsel %vm2336, %v3824, %v3832
        %v3861 = vsel %vm2336, %v3842, %v3818
        %v3862 = vsel %vm2336, %v3844, %v3820
        %v3863 = vsel %vm2336, %v3846, %v3822
        %v3864 = vsel %vm2336, %v3848, %v3824
        %s3865 = scalar_lea.vmem [#allocation8], 7
        %v3866 = vld [vmem:[%s3865] ss:$8 sm:$0xf]
        %v3868 = vlaneseq
        %v3869 = vshrl.u32 %v3868, 7
        %v3870 = vsub.s32 0, %v3869
        %v3871 = vrot.slane %v3866, %v3870
        %v3872 = vlaneseq
        %v3873 = vshrl.u32 %v3872, 7
        %v3874 = vsub.s32 1, %v3873
        %v3875 = vrot.slane %v3866, %v3874
        %v3876 = vlaneseq
        %v3877 = vshrl.u32 %v3876, 7
        %v3878 = vsub.s32 2, %v3877
        %v3879 = vrot.slane %v3866, %v3878
        %v3880 = vlaneseq
        %v3881 = vshrl.u32 %v3880, 7
        %v3882 = vsub.s32 3, %v3881
        %v3883 = vrot.slane %v3866, %v3882
        %v3888 = vmul.f32 %v3857, %v3871
        %v3889 = vmul.f32 %v3853, %v3875
        %v3890 = vmul.f32 %v3849, %v3879
        %v3891 = vmul.f32 %v3861, %v3883
        %v3892 = vmul.f32 %v3858, %v3871
        %v3893 = vmul.f32 %v3854, %v3875
        %v3894 = vmul.f32 %v3850, %v3879
        %v3895 = vmul.f32 %v3862, %v3883
        %v3896 = vmul.f32 %v3859, %v3871
        %v3897 = vmul.f32 %v3855, %v3875
        %v3898 = vmul.f32 %v3851, %v3879
        %v3899 = vmul.f32 %v3863, %v3883
        %v3900 = vmul.f32 %v3860, %v3871
        %v3901 = vmul.f32 %v3856, %v3875
        %v3902 = vmul.f32 %v3852, %v3879
        %v3903 = vmul.f32 %v3864, %v3883
        %3904 = vrot.lane.b32.xlu0 %v3256, 111
        %v3905 = vpop.permute.xlu0 %3904
        %3906 = vrot.lane.b32.xlu0 %v3260, 111
        %v3907 = vpop.permute.xlu0 %3906
        %3908 = vrot.lane.b32.xlu0 %v3264, 111
        %v3909 = vpop.permute.xlu0 %3908
        %3910 = vrot.lane.b32.xlu0 %v3268, 111
        %v3911 = vpop.permute.xlu0 %3910
        %3912 = vrot.lane.b32.xlu0 %v3257, 111
        %v3913 = vpop.permute.xlu0 %3912
        %3914 = vrot.lane.b32.xlu0 %v3261, 111
        %v3915 = vpop.permute.xlu0 %3914
        %3916 = vrot.lane.b32.xlu0 %v3265, 111
        %v3917 = vpop.permute.xlu0 %3916
        %3918 = vrot.lane.b32.xlu0 %v3269, 111
        %v3919 = vpop.permute.xlu0 %3918
        %3920 = vrot.lane.b32.xlu0 %v3258, 111
        %v3921 = vpop.permute.xlu0 %3920
        %3922 = vrot.lane.b32.xlu0 %v3262, 111
        %v3923 = vpop.permute.xlu0 %3922
        %3924 = vrot.lane.b32.xlu0 %v3266, 111
        %v3925 = vpop.permute.xlu0 %3924
        %3926 = vrot.lane.b32.xlu0 %v3270, 111
        %v3927 = vpop.permute.xlu0 %3926
        %3928 = vrot.lane.b32.xlu0 %v3259, 111
        %v3929 = vpop.permute.xlu0 %3928
        %3930 = vrot.lane.b32.xlu0 %v3263, 111
        %v3931 = vpop.permute.xlu0 %3930
        %3932 = vrot.lane.b32.xlu0 %v3267, 111
        %v3933 = vpop.permute.xlu0 %3932
        %3934 = vrot.lane.b32.xlu0 %v3271, 111
        %v3935 = vpop.permute.xlu0 %3934
        %v3936 = vsel %vm2452, %v3921, %v3929
        %v3937 = vsel %vm2452, %v3923, %v3931
        %v3938 = vsel %vm2452, %v3925, %v3933
        %v3939 = vsel %vm2452, %v3927, %v3935
        %v3940 = vsel %vm2452, %v3913, %v3921
        %v3941 = vsel %vm2452, %v3915, %v3923
        %v3942 = vsel %vm2452, %v3917, %v3925
        %v3943 = vsel %vm2452, %v3919, %v3927
        %v3944 = vsel %vm2452, %v3905, %v3913
        %v3945 = vsel %vm2452, %v3907, %v3915
        %v3946 = vsel %vm2452, %v3909, %v3917
        %v3947 = vsel %vm2452, %v3911, %v3919
        %v3948 = vsel %vm2452, %v3929, %v3905
        %v3949 = vsel %vm2452, %v3931, %v3907
        %v3950 = vsel %vm2452, %v3933, %v3909
        %v3951 = vsel %vm2452, %v3935, %v3911
        %s3952 = scalar_lea.vmem [#allocation8], 32
        %v3953 = vld [vmem:[%s3952] ss:$8 sm:$0xf]
        %v3955 = vlaneseq
        %v3956 = vshrl.u32 %v3955, 7
        %v3957 = vsub.s32 0, %v3956
        %v3958 = vrot.slane %v3953, %v3957
        %v3959 = vlaneseq
        %v3960 = vshrl.u32 %v3959, 7
        %v3961 = vsub.s32 1, %v3960
        %v3962 = vrot.slane %v3953, %v3961
        %v3963 = vlaneseq
        %v3964 = vshrl.u32 %v3963, 7
        %v3965 = vsub.s32 2, %v3964
        %v3966 = vrot.slane %v3953, %v3965
        %v3967 = vlaneseq
        %v3968 = vshrl.u32 %v3967, 7
        %v3969 = vsub.s32 3, %v3968
        %v3970 = vrot.slane %v3953, %v3969
        %v3975 = vmul.f32 %v3944, %v3958
        %v3976 = vmul.f32 %v3940, %v3962
        %v3977 = vmul.f32 %v3936, %v3966
        %v3978 = vmul.f32 %v3948, %v3970
        %v3979 = vmul.f32 %v3945, %v3958
        %v3980 = vmul.f32 %v3941, %v3962
        %v3981 = vmul.f32 %v3937, %v3966
        %v3982 = vmul.f32 %v3949, %v3970
        %v3983 = vmul.f32 %v3946, %v3958
        %v3984 = vmul.f32 %v3942, %v3962
        %v3985 = vmul.f32 %v3938, %v3966
        %v3986 = vmul.f32 %v3950, %v3970
        %v3987 = vmul.f32 %v3947, %v3958
        %v3988 = vmul.f32 %v3943, %v3962
        %v3989 = vmul.f32 %v3939, %v3966
        %v3990 = vmul.f32 %v3951, %v3970
        %vm3991 = vcmask 261120
        %v3993 = vsel %vm3991, %v3274, 0
        %v3996 = vsel %vm3991, %v3277, 0
        %v3999 = vsel %vm3991, %v3280, 0
        %v4002 = vsel %vm3991, %v3283, 0
        %v4005 = vsel %vm3991, %v3286, 0
        %v4008 = vsel %vm3991, %v3289, 0
        %v4011 = vsel %vm3991, %v3292, 0
        %v4014 = vsel %vm3991, %v3295, 0
        %4016 = vmatprep.subr.mxu0 %v3640
        %4017 = vmatpush1.msra.mxu0 %v3639
        %4018 = vmatprep.subr.mxu0 %v3636
        %4019 = vmatpush1.msra.mxu0 %v3635
        %4020 = vmatprep.subr.mxu0 %v3632
        %4021 = vmatpush1.msra.mxu0 %v3631
        %4022 = vmatprep.subr.mxu0 %v3628
        %4023 = vmatpush1.msra.mxu0 %v3627
        %4024 = vmatprep.subr.mxu0 %v3553
        %4025 = vmatpush1.msra.mxu0 %v3552
        %4026 = vmatprep.subr.mxu0 %v3549
        %4027 = vmatpush1.msra.mxu0 %v3548
        %4028 = vmatprep.subr.mxu0 %v3545
        %4029 = vmatpush1.msra.mxu0 %v3544
        %4030 = vmatprep.subr.mxu0 %v3541
        %4031 = vmatpush1.msra.mxu0 %v3540
        %4032 = vmatprep.subr.mxu0 %v3466
        %4033 = vmatpush1.msra.mxu0 %v3465
        %4034 = vmatprep.subr.mxu0 %v3462
        %4035 = vmatpush1.msra.mxu0 %v3461
        %4036 = vmatprep.subr.mxu0 %v3458
        %4037 = vmatpush1.msra.mxu0 %v3457
        %4038 = vmatprep.subr.mxu0 %v3454
        %4039 = vmatpush1.msra.mxu0 %v3453
        %4040 = vmatprep.subr.mxu0 %v3379
        %4041 = vmatpush1.msra.mxu0 %v3378
        %4042 = vmatprep.subr.mxu0 %v3375
        %4043 = vmatpush1.msra.mxu0 %v3374
        %4044 = vmatprep.subr.mxu0 %v3371
        %4045 = vmatpush1.msra.mxu0 %v3370
        %4046 = vmatprep.subr.mxu0 %v3367
        %4047 = vmatpush1.msra.mxu0 %v3366
        %4048 = vmatprep.subr.mxu0 %v3901
        %4049 = vmatpush2.msra.mxu0 %v3900
        %4050 = vmatprep.subr.mxu0 %v3897
        %4051 = vmatpush2.msra.mxu0 %v3896
        %4052 = vmatprep.subr.mxu0 %v3893
        %4053 = vmatpush2.msra.mxu0 %v3892
        %4054 = vmatprep.subr.mxu0 %v3889
        %4055 = vmatpush2.msra.mxu0 %v3888
        %4056 = vmatprep.subr.mxu0 %v3814
        %4057 = vmatpush2.msra.mxu0 %v3813
        %4058 = vmatprep.subr.mxu0 %v3810
        %4059 = vmatpush2.msra.mxu0 %v3809
        %4060 = vmatprep.subr.mxu0 %v3806
        %4061 = vmatpush2.msra.mxu0 %v3805
        %4062 = vmatprep.subr.mxu0 %v3802
        %4063 = vmatpush2.msra.mxu0 %v3801
        %4064 = vmatprep.subr.mxu0 %v3727
        %4065 = vmatpush2.msra.mxu0 %v3726
        %4066 = vmatprep.subr.mxu0 %v3723
        %4067 = vmatpush2.msra.mxu0 %v3722
        %4068 = vmatprep.subr.mxu0 %v3719
        %4069 = vmatpush2.msra.mxu0 %v3718
        %4070 = vmatprep.subr.mxu0 %v3715
        %4071 = vmatpush2.msra.mxu0 %v3714
        %4072 = vmatprep.subr.mxu0 %v3269
        %4073 = vmatpush2.msra.mxu0 %v3268
        %4074 = vmatprep.subr.mxu0 %v3265
        %4075 = vmatpush2.msra.mxu0 %v3264
        %4076 = vmatprep.subr.mxu0 %v3261
        %4077 = vmatpush2.msra.mxu0 %v3260
        %4078 = vmatprep.subr.mxu0 %v3257
        %4079 = vmatpush2.msra.mxu0 %v3256
        %4080 = vmatprep.mubr.f32.mxu0 %v3273
        %4081 = vmatmul.mubr.f32.gmra.mxu0 %v3272
        %v4082 = vpop.f32.mrf.mxu0
        %v4083 = vadd.f32 0.0, %v4082
        %v4084 = vpop.f32.mrf.mxu0
        %v4085 = vadd.f32 0.0, %v4084
        %4086 = vmatprep.mubr.f32.mxu0 %v3276
        %4087 = vmatmul.mubr.f32.gmra.mxu0 %v3275
        %v4088 = vpop.f32.mrf.mxu0
        %v4089 = vadd.f32 0.0, %v4088
        %v4090 = vpop.f32.mrf.mxu0
        %v4091 = vadd.f32 0.0, %v4090
        %4092 = vmatprep.mubr.f32.mxu0 %v3279
        %4093 = vmatmul.mubr.f32.gmra.mxu0 %v3278
        %v4094 = vpop.f32.mrf.mxu0
        %v4095 = vadd.f32 0.0, %v4094
        %v4096 = vpop.f32.mrf.mxu0
        %v4097 = vadd.f32 0.0, %v4096
        %4098 = vmatprep.mubr.f32.mxu0 %v3282
        %4099 = vmatmul.mubr.f32.gmra.mxu0 %v3281
        %v4100 = vpop.f32.mrf.mxu0
        %v4101 = vadd.f32 0.0, %v4100
        %v4102 = vpop.f32.mrf.mxu0
        %v4103 = vadd.f32 0.0, %v4102
        %4104 = vmatprep.mubr.f32.mxu0 %v3285
        %4105 = vmatmul.mubr.f32.gmra.mxu0 %v3284
        %v4106 = vpop.f32.mrf.mxu0
        %v4107 = vadd.f32 0.0, %v4106
        %v4108 = vpop.f32.mrf.mxu0
        %v4109 = vadd.f32 0.0, %v4108
        %4110 = vmatprep.mubr.f32.mxu0 %v3288
        %4111 = vmatmul.mubr.f32.gmra.mxu0 %v3287
        %v4112 = vpop.f32.mrf.mxu0
        %v4113 = vadd.f32 0.0, %v4112
        %v4114 = vpop.f32.mrf.mxu0
        %v4115 = vadd.f32 0.0, %v4114
        %4116 = vmatprep.mubr.f32.mxu0 %v3291
        %4117 = vmatmul.mubr.f32.gmra.mxu0 %v3290
        %v4118 = vpop.f32.mrf.mxu0
        %v4119 = vadd.f32 0.0, %v4118
        %v4120 = vpop.f32.mrf.mxu0
        %v4121 = vadd.f32 0.0, %v4120
        %4122 = vmatprep.mubr.f32.mxu0 %v3294
        %4123 = vmatmul.mubr.f32.gmra.mxu0 %v3293
        %v4124 = vpop.f32.mrf.mxu0
        %v4125 = vadd.f32 0.0, %v4124
        %v4126 = vpop.f32.mrf.mxu0
        %v4127 = vadd.f32 0.0, %v4126
        %4128 = vdwg.mxu0
        %4129 = vmatprep.subr.mxu0 0.0
        %4130 = vmatpush1.msra.mxu0 0.0
        %4131 = vmatprep.subr.mxu0 0.0
        %4132 = vmatpush1.msra.mxu0 0.0
        %4133 = vmatprep.subr.mxu0 0.0
        %4134 = vmatpush1.msra.mxu0 0.0
        %4135 = vmatprep.subr.mxu0 0.0
        %4136 = vmatpush1.msra.mxu0 0.0
        %4137 = vmatprep.subr.mxu0 0.0
        %4138 = vmatpush1.msra.mxu0 0.0
        %4139 = vmatprep.subr.mxu0 0.0
        %4140 = vmatpush1.msra.mxu0 0.0
        %4141 = vmatprep.subr.mxu0 0.0
        %4142 = vmatpush1.msra.mxu0 0.0
        %4143 = vmatprep.subr.mxu0 0.0
        %4144 = vmatpush1.msra.mxu0 0.0
        %4145 = vmatprep.subr.mxu0 0.0
        %4146 = vmatpush1.msra.mxu0 0.0
        %4147 = vmatprep.subr.mxu0 0.0
        %4148 = vmatpush1.msra.mxu0 0.0
        %4149 = vmatprep.subr.mxu0 0.0
        %4150 = vmatpush1.msra.mxu0 0.0
        %4151 = vmatprep.subr.mxu0 0.0
        %4152 = vmatpush1.msra.mxu0 0.0
        %4153 = vmatprep.subr.mxu0 %v3988
        %4154 = vmatpush1.msra.mxu0 %v3987
        %4155 = vmatprep.subr.mxu0 %v3984
        %4156 = vmatpush1.msra.mxu0 %v3983
        %4157 = vmatprep.subr.mxu0 %v3980
        %4158 = vmatpush1.msra.mxu0 %v3979
        %4159 = vmatprep.subr.mxu0 %v3976
        %4160 = vmatpush1.msra.mxu0 %v3975
        %4161 = vmatprep.subr.mxu0 0.0
        %4162 = vmatpush2.msra.mxu0 0.0
        %4163 = vmatprep.subr.mxu0 0.0
        %4164 = vmatpush2.msra.mxu0 0.0
        %4165 = vmatprep.subr.mxu0 0.0
        %4166 = vmatpush2.msra.mxu0 0.0
        %4167 = vmatprep.subr.mxu0 0.0
        %4168 = vmatpush2.msra.mxu0 0.0
        %4169 = vmatprep.subr.mxu0 0.0
        %4170 = vmatpush2.msra.mxu0 0.0
        %4171 = vmatprep.subr.mxu0 0.0
        %4172 = vmatpush2.msra.mxu0 0.0
        %4173 = vmatprep.subr.mxu0 0.0
        %4174 = vmatpush2.msra.mxu0 0.0
        %4175 = vmatprep.subr.mxu0 0.0
        %4176 = vmatpush2.msra.mxu0 0.0
        %4177 = vmatprep.subr.mxu0 0.0
        %4178 = vmatpush2.msra.mxu0 0.0
        %4179 = vmatprep.subr.mxu0 0.0
        %4180 = vmatpush2.msra.mxu0 0.0
        %4181 = vmatprep.subr.mxu0 0.0
        %4182 = vmatpush2.msra.mxu0 0.0
        %4183 = vmatprep.subr.mxu0 0.0
        %4184 = vmatpush2.msra.mxu0 0.0
        %4185 = vmatprep.subr.mxu0 0.0
        %4186 = vmatpush2.msra.mxu0 0.0
        %4187 = vmatprep.subr.mxu0 0.0
        %4188 = vmatpush2.msra.mxu0 0.0
        %4189 = vmatprep.subr.mxu0 0.0
        %4190 = vmatpush2.msra.mxu0 0.0
        %4191 = vmatprep.subr.mxu0 0.0
        %4192 = vmatpush2.msra.mxu0 0.0
        %4193 = vmatprep.mubr.f32.mxu0 0.0
        %4194 = vmatmul.mubr.f32.gmra.mxu0 %v3993
        %v4195 = vpop.f32.mrf.mxu0
        %v4196 = vadd.f32 %v4083, %v4195
        %v4197 = vpop.f32.mrf.mxu0
        %v4198 = vadd.f32 %v4085, %v4197
        %4199 = vmatprep.mubr.f32.mxu0 0.0
        %4200 = vmatmul.mubr.f32.gmra.mxu0 %v3996
        %v4201 = vpop.f32.mrf.mxu0
        %v4202 = vadd.f32 %v4089, %v4201
        %v4203 = vpop.f32.mrf.mxu0
        %v4204 = vadd.f32 %v4091, %v4203
        %4205 = vmatprep.mubr.f32.mxu0 0.0
        %4206 = vmatmul.mubr.f32.gmra.mxu0 %v3999
        %v4207 = vpop.f32.mrf.mxu0
        %v4208 = vadd.f32 %v4095, %v4207
        %v4209 = vpop.f32.mrf.mxu0
        %v4210 = vadd.f32 %v4097, %v4209
        %4211 = vmatprep.mubr.f32.mxu0 0.0
        %4212 = vmatmul.mubr.f32.gmra.mxu0 %v4002
        %v4213 = vpop.f32.mrf.mxu0
        %v4214 = vadd.f32 %v4101, %v4213
        %v4215 = vpop.f32.mrf.mxu0
        %v4216 = vadd.f32 %v4103, %v4215
        %4217 = vmatprep.mubr.f32.mxu0 0.0
        %4218 = vmatmul.mubr.f32.gmra.mxu0 %v4005
        %v4219 = vpop.f32.mrf.mxu0
        %v4220 = vadd.f32 %v4107, %v4219
        %v4221 = vpop.f32.mrf.mxu0
        %v4222 = vadd.f32 %v4109, %v4221
        %4223 = vmatprep.mubr.f32.mxu0 0.0
        %4224 = vmatmul.mubr.f32.gmra.mxu0 %v4008
        %v4225 = vpop.f32.mrf.mxu0
        %v4226 = vadd.f32 %v4113, %v4225
        %v4227 = vpop.f32.mrf.mxu0
        %v4228 = vadd.f32 %v4115, %v4227
        %4229 = vmatprep.mubr.f32.mxu0 0.0
        %4230 = vmatmul.mubr.f32.gmra.mxu0 %v4011
        %v4231 = vpop.f32.mrf.mxu0
        %v4232 = vadd.f32 %v4119, %v4231
        %v4233 = vpop.f32.mrf.mxu0
        %v4234 = vadd.f32 %v4121, %v4233
        %4235 = vmatprep.mubr.f32.mxu0 0.0
        %4236 = vmatmul.mubr.f32.gmra.mxu0 %v4014
        %v4237 = vpop.f32.mrf.mxu0
        %v4238 = vadd.f32 %v4125, %v4237
        %v4239 = vpop.f32.mrf.mxu0
        %v4240 = vadd.f32 %v4127, %v4239
        %4241 = vdwg.mxu0
        %4242 = vmatprep.subr.mxu0 %v3642
        %4243 = vmatpush1.msra.mxu0 %v3641
        %4244 = vmatprep.subr.mxu0 %v3638
        %4245 = vmatpush1.msra.mxu0 %v3637
        %4246 = vmatprep.subr.mxu0 %v3634
        %4247 = vmatpush1.msra.mxu0 %v3633
        %4248 = vmatprep.subr.mxu0 %v3630
        %4249 = vmatpush1.msra.mxu0 %v3629
        %4250 = vmatprep.subr.mxu0 %v3555
        %4251 = vmatpush1.msra.mxu0 %v3554
        %4252 = vmatprep.subr.mxu0 %v3551
        %4253 = vmatpush1.msra.mxu0 %v3550
        %4254 = vmatprep.subr.mxu0 %v3547
        %4255 = vmatpush1.msra.mxu0 %v3546
        %4256 = vmatprep.subr.mxu0 %v3543
        %4257 = vmatpush1.msra.mxu0 %v3542
        %4258 = vmatprep.subr.mxu0 %v3468
        %4259 = vmatpush1.msra.mxu0 %v3467
        %4260 = vmatprep.subr.mxu0 %v3464
        %4261 = vmatpush1.msra.mxu0 %v3463
        %4262 = vmatprep.subr.mxu0 %v3460
        %4263 = vmatpush1.msra.mxu0 %v3459
        %4264 = vmatprep.subr.mxu0 %v3456
        %4265 = vmatpush1.msra.mxu0 %v3455
        %4266 = vmatprep.subr.mxu0 %v3381
        %4267 = vmatpush1.msra.mxu0 %v3380
        %4268 = vmatprep.subr.mxu0 %v3377
        %4269 = vmatpush1.msra.mxu0 %v3376
        %4270 = vmatprep.subr.mxu0 %v3373
        %4271 = vmatpush1.msra.mxu0 %v3372
        %4272 = vmatprep.subr.mxu0 %v3369
        %4273 = vmatpush1.msra.mxu0 %v3368
        %4274 = vmatprep.subr.mxu0 %v3903
        %4275 = vmatpush2.msra.mxu0 %v3902
        %4276 = vmatprep.subr.mxu0 %v3899
        %4277 = vmatpush2.msra.mxu0 %v3898
        %4278 = vmatprep.subr.mxu0 %v3895
        %4279 = vmatpush2.msra.mxu0 %v3894
        %4280 = vmatprep.subr.mxu0 %v3891
        %4281 = vmatpush2.msra.mxu0 %v3890
        %4282 = vmatprep.subr.mxu0 %v3816
        %4283 = vmatpush2.msra.mxu0 %v3815
        %4284 = vmatprep.subr.mxu0 %v3812
        %4285 = vmatpush2.msra.mxu0 %v3811
        %4286 = vmatprep.subr.mxu0 %v3808
        %4287 = vmatpush2.msra.mxu0 %v3807
        %4288 = vmatprep.subr.mxu0 %v3804
        %4289 = vmatpush2.msra.mxu0 %v3803
        %4290 = vmatprep.subr.mxu0 %v3729
        %4291 = vmatpush2.msra.mxu0 %v3728
        %4292 = vmatprep.subr.mxu0 %v3725
        %4293 = vmatpush2.msra.mxu0 %v3724
        %4294 = vmatprep.subr.mxu0 %v3721
        %4295 = vmatpush2.msra.mxu0 %v3720
        %4296 = vmatprep.subr.mxu0 %v3717
        %4297 = vmatpush2.msra.mxu0 %v3716
        %4298 = vmatprep.subr.mxu0 %v3271
        %4299 = vmatpush2.msra.mxu0 %v3270
        %4300 = vmatprep.subr.mxu0 %v3267
        %4301 = vmatpush2.msra.mxu0 %v3266
        %4302 = vmatprep.subr.mxu0 %v3263
        %4303 = vmatpush2.msra.mxu0 %v3262
        %4304 = vmatprep.subr.mxu0 %v3259
        %4305 = vmatpush2.msra.mxu0 %v3258
        %4306 = vmatprep.mubr.f32.mxu0 %v3273
        %4307 = vmatmul.mubr.f32.gmra.mxu0 %v3272
        %v4308 = vpop.f32.mrf.mxu0
        %v4309 = vadd.f32 0.0, %v4308
        %v4310 = vpop.f32.mrf.mxu0
        %v4311 = vadd.f32 0.0, %v4310
        %4312 = vmatprep.mubr.f32.mxu0 %v3276
        %4313 = vmatmul.mubr.f32.gmra.mxu0 %v3275
        %v4314 = vpop.f32.mrf.mxu0
        %v4315 = vadd.f32 0.0, %v4314
        %v4316 = vpop.f32.mrf.mxu0
        %v4317 = vadd.f32 0.0, %v4316
        %4318 = vmatprep.mubr.f32.mxu0 %v3279
        %4319 = vmatmul.mubr.f32.gmra.mxu0 %v3278
        %v4320 = vpop.f32.mrf.mxu0
        %v4321 = vadd.f32 0.0, %v4320
        %v4322 = vpop.f32.mrf.mxu0
        %v4323 = vadd.f32 0.0, %v4322
        %4324 = vmatprep.mubr.f32.mxu0 %v3282
        %4325 = vmatmul.mubr.f32.gmra.mxu0 %v3281
        %v4326 = vpop.f32.mrf.mxu0
        %v4327 = vadd.f32 0.0, %v4326
        %v4328 = vpop.f32.mrf.mxu0
        %v4329 = vadd.f32 0.0, %v4328
        %4330 = vmatprep.mubr.f32.mxu0 %v3285
        %4331 = vmatmul.mubr.f32.gmra.mxu0 %v3284
        %v4332 = vpop.f32.mrf.mxu0
        %v4333 = vadd.f32 0.0, %v4332
        %v4334 = vpop.f32.mrf.mxu0
        %v4335 = vadd.f32 0.0, %v4334
        %4336 = vmatprep.mubr.f32.mxu0 %v3288
        %4337 = vmatmul.mubr.f32.gmra.mxu0 %v3287
        %v4338 = vpop.f32.mrf.mxu0
        %v4339 = vadd.f32 0.0, %v4338
        %v4340 = vpop.f32.mrf.mxu0
        %v4341 = vadd.f32 0.0, %v4340
        %4342 = vmatprep.mubr.f32.mxu0 %v3291
        %4343 = vmatmul.mubr.f32.gmra.mxu0 %v3290
        %v4344 = vpop.f32.mrf.mxu0
        %v4345 = vadd.f32 0.0, %v4344
        %v4346 = vpop.f32.mrf.mxu0
        %v4347 = vadd.f32 0.0, %v4346
        %4348 = vmatprep.mubr.f32.mxu0 %v3294
        %4349 = vmatmul.mubr.f32.gmra.mxu0 %v3293
        %v4350 = vpop.f32.mrf.mxu0
        %v4351 = vadd.f32 0.0, %v4350
        %v4352 = vpop.f32.mrf.mxu0
        %v4353 = vadd.f32 0.0, %v4352
        %4354 = vdwg.mxu0
        %4355 = vmatprep.subr.mxu0 0.0
        %4356 = vmatpush1.msra.mxu0 0.0
        %4357 = vmatprep.subr.mxu0 0.0
        %4358 = vmatpush1.msra.mxu0 0.0
        %4359 = vmatprep.subr.mxu0 0.0
        %4360 = vmatpush1.msra.mxu0 0.0
        %4361 = vmatprep.subr.mxu0 0.0
        %4362 = vmatpush1.msra.mxu0 0.0
        %4363 = vmatprep.subr.mxu0 0.0
        %4364 = vmatpush1.msra.mxu0 0.0
        %4365 = vmatprep.subr.mxu0 0.0
        %4366 = vmatpush1.msra.mxu0 0.0
        %4367 = vmatprep.subr.mxu0 0.0
        %4368 = vmatpush1.msra.mxu0 0.0
        %4369 = vmatprep.subr.mxu0 0.0
        %4370 = vmatpush1.msra.mxu0 0.0
        %4371 = vmatprep.subr.mxu0 0.0
        %4372 = vmatpush1.msra.mxu0 0.0
        %4373 = vmatprep.subr.mxu0 0.0
        %4374 = vmatpush1.msra.mxu0 0.0
        %4375 = vmatprep.subr.mxu0 0.0
        %4376 = vmatpush1.msra.mxu0 0.0
        %4377 = vmatprep.subr.mxu0 0.0
        %4378 = vmatpush1.msra.mxu0 0.0
        %4379 = vmatprep.subr.mxu0 %v3990
        %4380 = vmatpush1.msra.mxu0 %v3989
        %4381 = vmatprep.subr.mxu0 %v3986
        %4382 = vmatpush1.msra.mxu0 %v3985
        %4383 = vmatprep.subr.mxu0 %v3982
        %4384 = vmatpush1.msra.mxu0 %v3981
        %4385 = vmatprep.subr.mxu0 %v3978
        %4386 = vmatpush1.msra.mxu0 %v3977
        %4387 = vmatprep.subr.mxu0 0.0
        %4388 = vmatpush2.msra.mxu0 0.0
        %4389 = vmatprep.subr.mxu0 0.0
        %4390 = vmatpush2.msra.mxu0 0.0
        %4391 = vmatprep.subr.mxu0 0.0
        %4392 = vmatpush2.msra.mxu0 0.0
        %4393 = vmatprep.subr.mxu0 0.0
        %4394 = vmatpush2.msra.mxu0 0.0
        %4395 = vmatprep.subr.mxu0 0.0
        %4396 = vmatpush2.msra.mxu0 0.0
        %4397 = vmatprep.subr.mxu0 0.0
        %4398 = vmatpush2.msra.mxu0 0.0
        %4399 = vmatprep.subr.mxu0 0.0
        %4400 = vmatpush2.msra.mxu0 0.0
        %4401 = vmatprep.subr.mxu0 0.0
        %4402 = vmatpush2.msra.mxu0 0.0
        %4403 = vmatprep.subr.mxu0 0.0
        %4404 = vmatpush2.msra.mxu0 0.0
        %4405 = vmatprep.subr.mxu0 0.0
        %4406 = vmatpush2.msra.mxu0 0.0
        %4407 = vmatprep.subr.mxu0 0.0
        %4408 = vmatpush2.msra.mxu0 0.0
        %4409 = vmatprep.subr.mxu0 0.0
        %4410 = vmatpush2.msra.mxu0 0.0
        %4411 = vmatprep.subr.mxu0 0.0
        %4412 = vmatpush2.msra.mxu0 0.0
        %4413 = vmatprep.subr.mxu0 0.0
        %4414 = vmatpush2.msra.mxu0 0.0
        %4415 = vmatprep.subr.mxu0 0.0
        %4416 = vmatpush2.msra.mxu0 0.0
        %4417 = vmatprep.subr.mxu0 0.0
        %4418 = vmatpush2.msra.mxu0 0.0
        %4419 = vmatprep.mubr.f32.mxu0 0.0
        %4420 = vmatmul.mubr.f32.gmra.mxu0 %v3993
        %v4421 = vpop.f32.mrf.mxu0
        %v4422 = vadd.f32 %v4309, %v4421
        %v4423 = vpop.f32.mrf.mxu0
        %v4424 = vadd.f32 %v4311, %v4423
        %4425 = vmatprep.mubr.f32.mxu0 0.0
        %4426 = vmatmul.mubr.f32.gmra.mxu0 %v3996
        %v4427 = vpop.f32.mrf.mxu0
        %v4428 = vadd.f32 %v4315, %v4427
        %v4429 = vpop.f32.mrf.mxu0
        %v4430 = vadd.f32 %v4317, %v4429
        %4431 = vmatprep.mubr.f32.mxu0 0.0
        %4432 = vmatmul.mubr.f32.gmra.mxu0 %v3999
        %v4433 = vpop.f32.mrf.mxu0
        %v4434 = vadd.f32 %v4321, %v4433
        %v4435 = vpop.f32.mrf.mxu0
        %v4436 = vadd.f32 %v4323, %v4435
        %4437 = vmatprep.mubr.f32.mxu0 0.0
        %4438 = vmatmul.mubr.f32.gmra.mxu0 %v4002
        %v4439 = vpop.f32.mrf.mxu0
        %v4440 = vadd.f32 %v4327, %v4439
        %v4441 = vpop.f32.mrf.mxu0
        %v4442 = vadd.f32 %v4329, %v4441
        %4443 = vmatprep.mubr.f32.mxu0 0.0
        %4444 = vmatmul.mubr.f32.gmra.mxu0 %v4005
        %v4445 = vpop.f32.mrf.mxu0
        %v4446 = vadd.f32 %v4333, %v4445
        %v4447 = vpop.f32.mrf.mxu0
        %v4448 = vadd.f32 %v4335, %v4447
        %4449 = vmatprep.mubr.f32.mxu0 0.0
        %4450 = vmatmul.mubr.f32.gmra.mxu0 %v4008
        %v4451 = vpop.f32.mrf.mxu0
        %v4452 = vadd.f32 %v4339, %v4451
        %v4453 = vpop.f32.mrf.mxu0
        %v4454 = vadd.f32 %v4341, %v4453
        %4455 = vmatprep.mubr.f32.mxu0 0.0
        %4456 = vmatmul.mubr.f32.gmra.mxu0 %v4011
        %v4457 = vpop.f32.mrf.mxu0
        %v4458 = vadd.f32 %v4345, %v4457
        %v4459 = vpop.f32.mrf.mxu0
        %v4460 = vadd.f32 %v4347, %v4459
        %4461 = vmatprep.mubr.f32.mxu0 0.0
        %4462 = vmatmul.mubr.f32.gmra.mxu0 %v4014
        %v4463 = vpop.f32.mrf.mxu0
        %v4464 = vadd.f32 %v4351, %v4463
        %v4465 = vpop.f32.mrf.mxu0
        %v4466 = vadd.f32 %v4353, %v4465
        %4467 = vdwg.mxu0
        %v4468 = vld [vmem:[%s6] sm:$0xff]
        %v4469 = vld [vmem:[%s6 + $0x8] sm:$0xff]
        %v4470 = vld [vmem:[%s6 + $0x10] sm:$0xff]
        %v4471 = vld [vmem:[%s6 + $0x18] sm:$0xff]
        %4473 = vset.pattern.permute.xlu0 0
        %4474 = vperm.xlu0 %4473, %v4468
        %v4475 = vpop.permute.xlu0 %4474
        %4478 = vset.pattern.permute.xlu0 0
        %4479 = vperm.xlu0 %4478, %v4469
        %v4480 = vpop.permute.xlu0 %4479
        %4483 = vset.pattern.permute.xlu0 0
        %4484 = vperm.xlu0 %4483, %v4470
        %v4485 = vpop.permute.xlu0 %4484
        %4488 = vset.pattern.permute.xlu0 0
        %4489 = vperm.xlu0 %4488, %v4471
        %v4490 = vpop.permute.xlu0 %4489
        %v4492 = vadd.f32 %v4196, %v4475
        %v4493 = vadd.f32 %v4198, %v4475
        %v4494 = vadd.f32 %v4422, %v4475
        %v4495 = vadd.f32 %v4424, %v4475
        %v4496 = vadd.f32 %v4202, %v4480
        %v4497 = vadd.f32 %v4204, %v4480
        %v4498 = vadd.f32 %v4428, %v4480
        %v4499 = vadd.f32 %v4430, %v4480
        %v4500 = vadd.f32 %v4208, %v4485
        %v4501 = vadd.f32 %v4210, %v4485
        %v4502 = vadd.f32 %v4434, %v4485
        %v4503 = vadd.f32 %v4436, %v4485
        %v4504 = vadd.f32 %v4214, %v4490
        %v4505 = vadd.f32 %v4216, %v4490
        %v4506 = vadd.f32 %v4440, %v4490
        %v4507 = vadd.f32 %v4442, %v4490
        %v4508 = vmax.f32 %v4492, 0.0
        %v4509 = vmax.f32 %v4493, 0.0
        %v4510 = vmax.f32 %v4494, 0.0
        %v4511 = vmax.f32 %v4495, 0.0
        %v4512 = vmax.f32 %v4496, 0.0
        %v4513 = vmax.f32 %v4497, 0.0
        %v4514 = vmax.f32 %v4498, 0.0
        %v4515 = vmax.f32 %v4499, 0.0
        %v4516 = vmax.f32 %v4500, 0.0
        %v4517 = vmax.f32 %v4501, 0.0
        %v4518 = vmax.f32 %v4502, 0.0
        %v4519 = vmax.f32 %v4503, 0.0
        %v4520 = vmax.f32 %v4504, 0.0
        %v4521 = vmax.f32 %v4505, 0.0
        %v4522 = vmax.f32 %v4506, 0.0
        %v4523 = vmax.f32 %v4507, 0.0
        %v4524 = vld [vmem:[#allocation11] sm:$0xff]
        %v4525 = vld [vmem:[#allocation11 + $0x8] sm:$0xff]
        %v4526 = vld [vmem:[#allocation11 + $0x10] sm:$0xff]
        %v4527 = vld [vmem:[#allocation11 + $0x18] sm:$0xff]
        %v4528 = vld [vmem:[#allocation11 + $0x20] sm:$0xff]
        %v4529 = vld [vmem:[#allocation11 + $0x28] sm:$0xff]
        %v4530 = vld [vmem:[#allocation11 + $0x30] sm:$0xff]
        %v4531 = vld [vmem:[#allocation11 + $0x38] sm:$0xff]
        %v4532 = vld [vmem:[#allocation11 + $0x40] sm:$0xff]
        %v4533 = vld [vmem:[#allocation11 + $0x48] sm:$0xff]
        %v4534 = vld [vmem:[#allocation11 + $0x50] sm:$0xff]
        %v4535 = vld [vmem:[#allocation11 + $0x58] sm:$0xff]
        %4536 = vrot.lane.b32.xlu0 %v4508, 17
        %v4537 = vpop.permute.xlu0 %4536
        %4538 = vrot.lane.b32.xlu0 %v4512, 17
        %v4539 = vpop.permute.xlu0 %4538
        %4540 = vrot.lane.b32.xlu0 %v4516, 17
        %v4541 = vpop.permute.xlu0 %4540
        %4542 = vrot.lane.b32.xlu0 %v4520, 17
        %v4543 = vpop.permute.xlu0 %4542
        %4544 = vrot.lane.b32.xlu0 %v4509, 17
        %v4545 = vpop.permute.xlu0 %4544
        %4546 = vrot.lane.b32.xlu0 %v4513, 17
        %v4547 = vpop.permute.xlu0 %4546
        %4548 = vrot.lane.b32.xlu0 %v4517, 17
        %v4549 = vpop.permute.xlu0 %4548
        %4550 = vrot.lane.b32.xlu0 %v4521, 17
        %v4551 = vpop.permute.xlu0 %4550
        %4552 = vrot.lane.b32.xlu0 %v4510, 17
        %v4553 = vpop.permute.xlu0 %4552
        %4554 = vrot.lane.b32.xlu0 %v4514, 17
        %v4555 = vpop.permute.xlu0 %4554
        %4556 = vrot.lane.b32.xlu0 %v4518, 17
        %v4557 = vpop.permute.xlu0 %4556
        %4558 = vrot.lane.b32.xlu0 %v4522, 17
        %v4559 = vpop.permute.xlu0 %4558
        %4560 = vrot.lane.b32.xlu0 %v4511, 17
        %v4561 = vpop.permute.xlu0 %4560
        %4562 = vrot.lane.b32.xlu0 %v4515, 17
        %v4563 = vpop.permute.xlu0 %4562
        %4564 = vrot.lane.b32.xlu0 %v4519, 17
        %v4565 = vpop.permute.xlu0 %4564
        %4566 = vrot.lane.b32.xlu0 %v4523, 17
        %v4567 = vpop.permute.xlu0 %4566
        %v4568 = vsel %vm1108, %v4553, %v4561
        %v4569 = vsel %vm1108, %v4555, %v4563
        %v4570 = vsel %vm1108, %v4557, %v4565
        %v4571 = vsel %vm1108, %v4559, %v4567
        %v4572 = vsel %vm1108, %v4545, %v4553
        %v4573 = vsel %vm1108, %v4547, %v4555
        %v4574 = vsel %vm1108, %v4549, %v4557
        %v4575 = vsel %vm1108, %v4551, %v4559
        %v4576 = vsel %vm1108, %v4537, %v4545
        %v4577 = vsel %vm1108, %v4539, %v4547
        %v4578 = vsel %vm1108, %v4541, %v4549
        %v4579 = vsel %vm1108, %v4543, %v4551
        %v4580 = vsel %vm1108, %v4561, %v4537
        %v4581 = vsel %vm1108, %v4563, %v4539
        %v4582 = vsel %vm1108, %v4565, %v4541
        %v4583 = vsel %vm1108, %v4567, %v4543
        %v4584 = vmul.f32 %v4580, %v3349
        %v4585 = vmul.f32 %v4576, %v3353
        %v4586 = vmul.f32 %v4572, %v3357
        %v4587 = vmul.f32 %v4568, %v3361
        %v4588 = vmul.f32 %v4581, %v3349
        %v4589 = vmul.f32 %v4577, %v3353
        %v4590 = vmul.f32 %v4573, %v3357
        %v4591 = vmul.f32 %v4569, %v3361
        %v4592 = vmul.f32 %v4582, %v3349
        %v4593 = vmul.f32 %v4578, %v3353
        %v4594 = vmul.f32 %v4574, %v3357
        %v4595 = vmul.f32 %v4570, %v3361
        %v4596 = vmul.f32 %v4583, %v3349
        %v4597 = vmul.f32 %v4579, %v3353
        %v4598 = vmul.f32 %v4575, %v3357
        %v4599 = vmul.f32 %v4571, %v3361
        %4600 = vrot.lane.b32.xlu0 %v4508, 16
        %v4601 = vpop.permute.xlu0 %4600
        %4602 = vrot.lane.b32.xlu0 %v4512, 16
        %v4603 = vpop.permute.xlu0 %4602
        %4604 = vrot.lane.b32.xlu0 %v4516, 16
        %v4605 = vpop.permute.xlu0 %4604
        %4606 = vrot.lane.b32.xlu0 %v4520, 16
        %v4607 = vpop.permute.xlu0 %4606
        %4608 = vrot.lane.b32.xlu0 %v4509, 16
        %v4609 = vpop.permute.xlu0 %4608
        %4610 = vrot.lane.b32.xlu0 %v4513, 16
        %v4611 = vpop.permute.xlu0 %4610
        %4612 = vrot.lane.b32.xlu0 %v4517, 16
        %v4613 = vpop.permute.xlu0 %4612
        %4614 = vrot.lane.b32.xlu0 %v4521, 16
        %v4615 = vpop.permute.xlu0 %4614
        %4616 = vrot.lane.b32.xlu0 %v4510, 16
        %v4617 = vpop.permute.xlu0 %4616
        %4618 = vrot.lane.b32.xlu0 %v4514, 16
        %v4619 = vpop.permute.xlu0 %4618
        %4620 = vrot.lane.b32.xlu0 %v4518, 16
        %v4621 = vpop.permute.xlu0 %4620
        %4622 = vrot.lane.b32.xlu0 %v4522, 16
        %v4623 = vpop.permute.xlu0 %4622
        %4624 = vrot.lane.b32.xlu0 %v4511, 16
        %v4625 = vpop.permute.xlu0 %4624
        %4626 = vrot.lane.b32.xlu0 %v4515, 16
        %v4627 = vpop.permute.xlu0 %4626
        %4628 = vrot.lane.b32.xlu0 %v4519, 16
        %v4629 = vpop.permute.xlu0 %4628
        %4630 = vrot.lane.b32.xlu0 %v4523, 16
        %v4631 = vpop.permute.xlu0 %4630
        %v4632 = vsel %vm1224, %v4617, %v4625
        %v4633 = vsel %vm1224, %v4619, %v4627
        %v4634 = vsel %vm1224, %v4621, %v4629
        %v4635 = vsel %vm1224, %v4623, %v4631
        %v4636 = vsel %vm1224, %v4609, %v4617
        %v4637 = vsel %vm1224, %v4611, %v4619
        %v4638 = vsel %vm1224, %v4613, %v4621
        %v4639 = vsel %vm1224, %v4615, %v4623
        %v4640 = vsel %vm1224, %v4601, %v4609
        %v4641 = vsel %vm1224, %v4603, %v4611
        %v4642 = vsel %vm1224, %v4605, %v4613
        %v4643 = vsel %vm1224, %v4607, %v4615
        %v4644 = vsel %vm1224, %v4625, %v4601
        %v4645 = vsel %vm1224, %v4627, %v4603
        %v4646 = vsel %vm1224, %v4629, %v4605
        %v4647 = vsel %vm1224, %v4631, %v4607
        %v4648 = vmul.f32 %v4644, %v3436
        %v4649 = vmul.f32 %v4640, %v3440
        %v4650 = vmul.f32 %v4636, %v3444
        %v4651 = vmul.f32 %v4632, %v3448
        %v4652 = vmul.f32 %v4645, %v3436
        %v4653 = vmul.f32 %v4641, %v3440
        %v4654 = vmul.f32 %v4637, %v3444
        %v4655 = vmul.f32 %v4633, %v3448
        %v4656 = vmul.f32 %v4646, %v3436
        %v4657 = vmul.f32 %v4642, %v3440
        %v4658 = vmul.f32 %v4638, %v3444
        %v4659 = vmul.f32 %v4634, %v3448
        %v4660 = vmul.f32 %v4647, %v3436
        %v4661 = vmul.f32 %v4643, %v3440
        %v4662 = vmul.f32 %v4639, %v3444
        %v4663 = vmul.f32 %v4635, %v3448
        %4664 = vrot.lane.b32.xlu0 %v4508, 15
        %v4665 = vpop.permute.xlu0 %4664
        %4666 = vrot.lane.b32.xlu0 %v4512, 15
        %v4667 = vpop.permute.xlu0 %4666
        %4668 = vrot.lane.b32.xlu0 %v4516, 15
        %v4669 = vpop.permute.xlu0 %4668
        %4670 = vrot.lane.b32.xlu0 %v4520, 15
        %v4671 = vpop.permute.xlu0 %4670
        %4672 = vrot.lane.b32.xlu0 %v4509, 15
        %v4673 = vpop.permute.xlu0 %4672
        %4674 = vrot.lane.b32.xlu0 %v4513, 15
        %v4675 = vpop.permute.xlu0 %4674
        %4676 = vrot.lane.b32.xlu0 %v4517, 15
        %v4677 = vpop.permute.xlu0 %4676
        %4678 = vrot.lane.b32.xlu0 %v4521, 15
        %v4679 = vpop.permute.xlu0 %4678
        %4680 = vrot.lane.b32.xlu0 %v4510, 15
        %v4681 = vpop.permute.xlu0 %4680
        %4682 = vrot.lane.b32.xlu0 %v4514, 15
        %v4683 = vpop.permute.xlu0 %4682
        %4684 = vrot.lane.b32.xlu0 %v4518, 15
        %v4685 = vpop.permute.xlu0 %4684
        %4686 = vrot.lane.b32.xlu0 %v4522, 15
        %v4687 = vpop.permute.xlu0 %4686
        %4688 = vrot.lane.b32.xlu0 %v4511, 15
        %v4689 = vpop.permute.xlu0 %4688
        %4690 = vrot.lane.b32.xlu0 %v4515, 15
        %v4691 = vpop.permute.xlu0 %4690
        %4692 = vrot.lane.b32.xlu0 %v4519, 15
        %v4693 = vpop.permute.xlu0 %4692
        %4694 = vrot.lane.b32.xlu0 %v4523, 15
        %v4695 = vpop.permute.xlu0 %4694
        %v4696 = vsel %vm1340, %v4681, %v4689
        %v4697 = vsel %vm1340, %v4683, %v4691
        %v4698 = vsel %vm1340, %v4685, %v4693
        %v4699 = vsel %vm1340, %v4687, %v4695
        %v4700 = vsel %vm1340, %v4673, %v4681
        %v4701 = vsel %vm1340, %v4675, %v4683
        %v4702 = vsel %vm1340, %v4677, %v4685
        %v4703 = vsel %vm1340, %v4679, %v4687
        %v4704 = vsel %vm1340, %v4665, %v4673
        %v4705 = vsel %vm1340, %v4667, %v4675
        %v4706 = vsel %vm1340, %v4669, %v4677
        %v4707 = vsel %vm1340, %v4671, %v4679
        %v4708 = vsel %vm1340, %v4689, %v4665
        %v4709 = vsel %vm1340, %v4691, %v4667
        %v4710 = vsel %vm1340, %v4693, %v4669
        %v4711 = vsel %vm1340, %v4695, %v4671
        %v4712 = vmul.f32 %v4708, %v3523
        %v4713 = vmul.f32 %v4704, %v3527
        %v4714 = vmul.f32 %v4700, %v3531
        %v4715 = vmul.f32 %v4696, %v3535
        %v4716 = vmul.f32 %v4709, %v3523
        %v4717 = vmul.f32 %v4705, %v3527
        %v4718 = vmul.f32 %v4701, %v3531
        %v4719 = vmul.f32 %v4697, %v3535
        %v4720 = vmul.f32 %v4710, %v3523
        %v4721 = vmul.f32 %v4706, %v3527
        %v4722 = vmul.f32 %v4702, %v3531
        %v4723 = vmul.f32 %v4698, %v3535
        %v4724 = vmul.f32 %v4711, %v3523
        %v4725 = vmul.f32 %v4707, %v3527
        %v4726 = vmul.f32 %v4703, %v3531
        %v4727 = vmul.f32 %v4699, %v3535
        %4728 = vrot.lane.b32.xlu0 %v4508, 1
        %v4729 = vpop.permute.xlu0 %4728
        %4730 = vrot.lane.b32.xlu0 %v4512, 1
        %v4731 = vpop.permute.xlu0 %4730
        %4732 = vrot.lane.b32.xlu0 %v4516, 1
        %v4733 = vpop.permute.xlu0 %4732
        %4734 = vrot.lane.b32.xlu0 %v4520, 1
        %v4735 = vpop.permute.xlu0 %4734
        %4736 = vrot.lane.b32.xlu0 %v4509, 1
        %v4737 = vpop.permute.xlu0 %4736
        %4738 = vrot.lane.b32.xlu0 %v4513, 1
        %v4739 = vpop.permute.xlu0 %4738
        %4740 = vrot.lane.b32.xlu0 %v4517, 1
        %v4741 = vpop.permute.xlu0 %4740
        %4742 = vrot.lane.b32.xlu0 %v4521, 1
        %v4743 = vpop.permute.xlu0 %4742
        %4744 = vrot.lane.b32.xlu0 %v4510, 1
        %v4745 = vpop.permute.xlu0 %4744
        %4746 = vrot.lane.b32.xlu0 %v4514, 1
        %v4747 = vpop.permute.xlu0 %4746
        %4748 = vrot.lane.b32.xlu0 %v4518, 1
        %v4749 = vpop.permute.xlu0 %4748
        %4750 = vrot.lane.b32.xlu0 %v4522, 1
        %v4751 = vpop.permute.xlu0 %4750
        %4752 = vrot.lane.b32.xlu0 %v4511, 1
        %v4753 = vpop.permute.xlu0 %4752
        %4754 = vrot.lane.b32.xlu0 %v4515, 1
        %v4755 = vpop.permute.xlu0 %4754
        %4756 = vrot.lane.b32.xlu0 %v4519, 1
        %v4757 = vpop.permute.xlu0 %4756
        %4758 = vrot.lane.b32.xlu0 %v4523, 1
        %v4759 = vpop.permute.xlu0 %4758
        %v4760 = vsel %vm1688, %v4745, %v4753
        %v4761 = vsel %vm1688, %v4747, %v4755
        %v4762 = vsel %vm1688, %v4749, %v4757
        %v4763 = vsel %vm1688, %v4751, %v4759
        %v4764 = vsel %vm1688, %v4737, %v4745
        %v4765 = vsel %vm1688, %v4739, %v4747
        %v4766 = vsel %vm1688, %v4741, %v4749
        %v4767 = vsel %vm1688, %v4743, %v4751
        %v4768 = vsel %vm1688, %v4729, %v4737
        %v4769 = vsel %vm1688, %v4731, %v4739
        %v4770 = vsel %vm1688, %v4733, %v4741
        %v4771 = vsel %vm1688, %v4735, %v4743
        %v4772 = vsel %vm1688, %v4753, %v4729
        %v4773 = vsel %vm1688, %v4755, %v4731
        %v4774 = vsel %vm1688, %v4757, %v4733
        %v4775 = vsel %vm1688, %v4759, %v4735
        %v4776 = vmul.f32 %v4772, %v3610
        %v4777 = vmul.f32 %v4768, %v3614
        %v4778 = vmul.f32 %v4764, %v3618
        %v4779 = vmul.f32 %v4760, %v3622
        %v4780 = vmul.f32 %v4773, %v3610
        %v4781 = vmul.f32 %v4769, %v3614
        %v4782 = vmul.f32 %v4765, %v3618
        %v4783 = vmul.f32 %v4761, %v3622
        %v4784 = vmul.f32 %v4774, %v3610
        %v4785 = vmul.f32 %v4770, %v3614
        %v4786 = vmul.f32 %v4766, %v3618
        %v4787 = vmul.f32 %v4762, %v3622
        %v4788 = vmul.f32 %v4775, %v3610
        %v4789 = vmul.f32 %v4771, %v3614
        %v4790 = vmul.f32 %v4767, %v3618
        %v4791 = vmul.f32 %v4763, %v3622
        %4792 = vrot.lane.b32.xlu0 %v4508, 127
        %v4793 = vpop.permute.xlu0 %4792
        %4794 = vrot.lane.b32.xlu0 %v4512, 127
        %v4795 = vpop.permute.xlu0 %4794
        %4796 = vrot.lane.b32.xlu0 %v4516, 127
        %v4797 = vpop.permute.xlu0 %4796
        %4798 = vrot.lane.b32.xlu0 %v4520, 127
        %v4799 = vpop.permute.xlu0 %4798
        %4800 = vrot.lane.b32.xlu0 %v4509, 127
        %v4801 = vpop.permute.xlu0 %4800
        %4802 = vrot.lane.b32.xlu0 %v4513, 127
        %v4803 = vpop.permute.xlu0 %4802
        %4804 = vrot.lane.b32.xlu0 %v4517, 127
        %v4805 = vpop.permute.xlu0 %4804
        %4806 = vrot.lane.b32.xlu0 %v4521, 127
        %v4807 = vpop.permute.xlu0 %4806
        %4808 = vrot.lane.b32.xlu0 %v4510, 127
        %v4809 = vpop.permute.xlu0 %4808
        %4810 = vrot.lane.b32.xlu0 %v4514, 127
        %v4811 = vpop.permute.xlu0 %4810
        %4812 = vrot.lane.b32.xlu0 %v4518, 127
        %v4813 = vpop.permute.xlu0 %4812
        %4814 = vrot.lane.b32.xlu0 %v4522, 127
        %v4815 = vpop.permute.xlu0 %4814
        %4816 = vrot.lane.b32.xlu0 %v4511, 127
        %v4817 = vpop.permute.xlu0 %4816
        %4818 = vrot.lane.b32.xlu0 %v4515, 127
        %v4819 = vpop.permute.xlu0 %4818
        %4820 = vrot.lane.b32.xlu0 %v4519, 127
        %v4821 = vpop.permute.xlu0 %4820
        %4822 = vrot.lane.b32.xlu0 %v4523, 127
        %v4823 = vpop.permute.xlu0 %4822
        %v4824 = vsel %vm1872, %v4809, %v4817
        %v4825 = vsel %vm1872, %v4811, %v4819
        %v4826 = vsel %vm1872, %v4813, %v4821
        %v4827 = vsel %vm1872, %v4815, %v4823
        %v4828 = vsel %vm1872, %v4801, %v4809
        %v4829 = vsel %vm1872, %v4803, %v4811
        %v4830 = vsel %vm1872, %v4805, %v4813
        %v4831 = vsel %vm1872, %v4807, %v4815
        %v4832 = vsel %vm1872, %v4793, %v4801
        %v4833 = vsel %vm1872, %v4795, %v4803
        %v4834 = vsel %vm1872, %v4797, %v4805
        %v4835 = vsel %vm1872, %v4799, %v4807
        %v4836 = vsel %vm1872, %v4817, %v4793
        %v4837 = vsel %vm1872, %v4819, %v4795
        %v4838 = vsel %vm1872, %v4821, %v4797
        %v4839 = vsel %vm1872, %v4823, %v4799
        %v4840 = vmul.f32 %v4832, %v3697
        %v4841 = vmul.f32 %v4828, %v3701
        %v4842 = vmul.f32 %v4824, %v3705
        %v4843 = vmul.f32 %v4836, %v3709
        %v4844 = vmul.f32 %v4833, %v3697
        %v4845 = vmul.f32 %v4829, %v3701
        %v4846 = vmul.f32 %v4825, %v3705
        %v4847 = vmul.f32 %v4837, %v3709
        %v4848 = vmul.f32 %v4834, %v3697
        %v4849 = vmul.f32 %v4830, %v3701
        %v4850 = vmul.f32 %v4826, %v3705
        %v4851 = vmul.f32 %v4838, %v3709
        %v4852 = vmul.f32 %v4835, %v3697
        %v4853 = vmul.f32 %v4831, %v3701
        %v4854 = vmul.f32 %v4827, %v3705
        %v4855 = vmul.f32 %v4839, %v3709
        %4856 = vrot.lane.b32.xlu0 %v4508, 113
        %v4857 = vpop.permute.xlu0 %4856
        %4858 = vrot.lane.b32.xlu0 %v4512, 113
        %v4859 = vpop.permute.xlu0 %4858
        %4860 = vrot.lane.b32.xlu0 %v4516, 113
        %v4861 = vpop.permute.xlu0 %4860
        %4862 = vrot.lane.b32.xlu0 %v4520, 113
        %v4863 = vpop.permute.xlu0 %4862
        %4864 = vrot.lane.b32.xlu0 %v4509, 113
        %v4865 = vpop.permute.xlu0 %4864
        %4866 = vrot.lane.b32.xlu0 %v4513, 113
        %v4867 = vpop.permute.xlu0 %4866
        %4868 = vrot.lane.b32.xlu0 %v4517, 113
        %v4869 = vpop.permute.xlu0 %4868
        %4870 = vrot.lane.b32.xlu0 %v4521, 113
        %v4871 = vpop.permute.xlu0 %4870
        %4872 = vrot.lane.b32.xlu0 %v4510, 113
        %v4873 = vpop.permute.xlu0 %4872
        %4874 = vrot.lane.b32.xlu0 %v4514, 113
        %v4875 = vpop.permute.xlu0 %4874
        %4876 = vrot.lane.b32.xlu0 %v4518, 113
        %v4877 = vpop.permute.xlu0 %4876
        %4878 = vrot.lane.b32.xlu0 %v4522, 113
        %v4879 = vpop.permute.xlu0 %4878
        %4880 = vrot.lane.b32.xlu0 %v4511, 113
        %v4881 = vpop.permute.xlu0 %4880
        %4882 = vrot.lane.b32.xlu0 %v4515, 113
        %v4883 = vpop.permute.xlu0 %4882
        %4884 = vrot.lane.b32.xlu0 %v4519, 113
        %v4885 = vpop.permute.xlu0 %4884
        %4886 = vrot.lane.b32.xlu0 %v4523, 113
        %v4887 = vpop.permute.xlu0 %4886
        %v4888 = vsel %vm2220, %v4873, %v4881
        %v4889 = vsel %vm2220, %v4875, %v4883
        %v4890 = vsel %vm2220, %v4877, %v4885
        %v4891 = vsel %vm2220, %v4879, %v4887
        %v4892 = vsel %vm2220, %v4865, %v4873
        %v4893 = vsel %vm2220, %v4867, %v4875
        %v4894 = vsel %vm2220, %v4869, %v4877
        %v4895 = vsel %vm2220, %v4871, %v4879
        %v4896 = vsel %vm2220, %v4857, %v4865
        %v4897 = vsel %vm2220, %v4859, %v4867
        %v4898 = vsel %vm2220, %v4861, %v4869
        %v4899 = vsel %vm2220, %v4863, %v4871
        %v4900 = vsel %vm2220, %v4881, %v4857
        %v4901 = vsel %vm2220, %v4883, %v4859
        %v4902 = vsel %vm2220, %v4885, %v4861
        %v4903 = vsel %vm2220, %v4887, %v4863
        %v4904 = vmul.f32 %v4896, %v3784
        %v4905 = vmul.f32 %v4892, %v3788
        %v4906 = vmul.f32 %v4888, %v3792
        %v4907 = vmul.f32 %v4900, %v3796
        %v4908 = vmul.f32 %v4897, %v3784
        %v4909 = vmul.f32 %v4893, %v3788
        %v4910 = vmul.f32 %v4889, %v3792
        %v4911 = vmul.f32 %v4901, %v3796
        %v4912 = vmul.f32 %v4898, %v3784
        %v4913 = vmul.f32 %v4894, %v3788
        %v4914 = vmul.f32 %v4890, %v3792
        %v4915 = vmul.f32 %v4902, %v3796
        %v4916 = vmul.f32 %v4899, %v3784
        %v4917 = vmul.f32 %v4895, %v3788
        %v4918 = vmul.f32 %v4891, %v3792
        %v4919 = vmul.f32 %v4903, %v3796
        %4920 = vrot.lane.b32.xlu0 %v4508, 112
        %v4921 = vpop.permute.xlu0 %4920
        %4922 = vrot.lane.b32.xlu0 %v4512, 112
        %v4923 = vpop.permute.xlu0 %4922
        %4924 = vrot.lane.b32.xlu0 %v4516, 112
        %v4925 = vpop.permute.xlu0 %4924
        %4926 = vrot.lane.b32.xlu0 %v4520, 112
        %v4927 = vpop.permute.xlu0 %4926
        %4928 = vrot.lane.b32.xlu0 %v4509, 112
        %v4929 = vpop.permute.xlu0 %4928
        %4930 = vrot.lane.b32.xlu0 %v4513, 112
        %v4931 = vpop.permute.xlu0 %4930
        %4932 = vrot.lane.b32.xlu0 %v4517, 112
        %v4933 = vpop.permute.xlu0 %4932
        %4934 = vrot.lane.b32.xlu0 %v4521, 112
        %v4935 = vpop.permute.xlu0 %4934
        %4936 = vrot.lane.b32.xlu0 %v4510, 112
        %v4937 = vpop.permute.xlu0 %4936
        %4938 = vrot.lane.b32.xlu0 %v4514, 112
        %v4939 = vpop.permute.xlu0 %4938
        %4940 = vrot.lane.b32.xlu0 %v4518, 112
        %v4941 = vpop.permute.xlu0 %4940
        %4942 = vrot.lane.b32.xlu0 %v4522, 112
        %v4943 = vpop.permute.xlu0 %4942
        %4944 = vrot.lane.b32.xlu0 %v4511, 112
        %v4945 = vpop.permute.xlu0 %4944
        %4946 = vrot.lane.b32.xlu0 %v4515, 112
        %v4947 = vpop.permute.xlu0 %4946
        %4948 = vrot.lane.b32.xlu0 %v4519, 112
        %v4949 = vpop.permute.xlu0 %4948
        %4950 = vrot.lane.b32.xlu0 %v4523, 112
        %v4951 = vpop.permute.xlu0 %4950
        %v4952 = vsel %vm2336, %v4937, %v4945
        %v4953 = vsel %vm2336, %v4939, %v4947
        %v4954 = vsel %vm2336, %v4941, %v4949
        %v4955 = vsel %vm2336, %v4943, %v4951
        %v4956 = vsel %vm2336, %v4929, %v4937
        %v4957 = vsel %vm2336, %v4931, %v4939
        %v4958 = vsel %vm2336, %v4933, %v4941
        %v4959 = vsel %vm2336, %v4935, %v4943
        %v4960 = vsel %vm2336, %v4921, %v4929
        %v4961 = vsel %vm2336, %v4923, %v4931
        %v4962 = vsel %vm2336, %v4925, %v4933
        %v4963 = vsel %vm2336, %v4927, %v4935
        %v4964 = vsel %vm2336, %v4945, %v4921
        %v4965 = vsel %vm2336, %v4947, %v4923
        %v4966 = vsel %vm2336, %v4949, %v4925
        %v4967 = vsel %vm2336, %v4951, %v4927
        %v4968 = vmul.f32 %v4960, %v3871
        %v4969 = vmul.f32 %v4956, %v3875
        %v4970 = vmul.f32 %v4952, %v3879
        %v4971 = vmul.f32 %v4964, %v3883
        %v4972 = vmul.f32 %v4961, %v3871
        %v4973 = vmul.f32 %v4957, %v3875
        %v4974 = vmul.f32 %v4953, %v3879
        %v4975 = vmul.f32 %v4965, %v3883
        %v4976 = vmul.f32 %v4962, %v3871
        %v4977 = vmul.f32 %v4958, %v3875
        %v4978 = vmul.f32 %v4954, %v3879
        %v4979 = vmul.f32 %v4966, %v3883
        %v4980 = vmul.f32 %v4963, %v3871
        %v4981 = vmul.f32 %v4959, %v3875
        %v4982 = vmul.f32 %v4955, %v3879
        %v4983 = vmul.f32 %v4967, %v3883
        %4984 = vrot.lane.b32.xlu0 %v4508, 111
        %v4985 = vpop.permute.xlu0 %4984
        %4986 = vrot.lane.b32.xlu0 %v4512, 111
        %v4987 = vpop.permute.xlu0 %4986
        %4988 = vrot.lane.b32.xlu0 %v4516, 111
        %v4989 = vpop.permute.xlu0 %4988
        %4990 = vrot.lane.b32.xlu0 %v4520, 111
        %v4991 = vpop.permute.xlu0 %4990
        %4992 = vrot.lane.b32.xlu0 %v4509, 111
        %v4993 = vpop.permute.xlu0 %4992
        %4994 = vrot.lane.b32.xlu0 %v4513, 111
        %v4995 = vpop.permute.xlu0 %4994
        %4996 = vrot.lane.b32.xlu0 %v4517, 111
        %v4997 = vpop.permute.xlu0 %4996
        %4998 = vrot.lane.b32.xlu0 %v4521, 111
        %v4999 = vpop.permute.xlu0 %4998
        %5000 = vrot.lane.b32.xlu0 %v4510, 111
        %v5001 = vpop.permute.xlu0 %5000
        %5002 = vrot.lane.b32.xlu0 %v4514, 111
        %v5003 = vpop.permute.xlu0 %5002
        %5004 = vrot.lane.b32.xlu0 %v4518, 111
        %v5005 = vpop.permute.xlu0 %5004
        %5006 = vrot.lane.b32.xlu0 %v4522, 111
        %v5007 = vpop.permute.xlu0 %5006
        %5008 = vrot.lane.b32.xlu0 %v4511, 111
        %v5009 = vpop.permute.xlu0 %5008
        %5010 = vrot.lane.b32.xlu0 %v4515, 111
        %v5011 = vpop.permute.xlu0 %5010
        %5012 = vrot.lane.b32.xlu0 %v4519, 111
        %v5013 = vpop.permute.xlu0 %5012
        %5014 = vrot.lane.b32.xlu0 %v4523, 111
        %v5015 = vpop.permute.xlu0 %5014
        %v5016 = vsel %vm2452, %v5001, %v5009
        %v5017 = vsel %vm2452, %v5003, %v5011
        %v5018 = vsel %vm2452, %v5005, %v5013
        %v5019 = vsel %vm2452, %v5007, %v5015
        %v5020 = vsel %vm2452, %v4993, %v5001
        %v5021 = vsel %vm2452, %v4995, %v5003
        %v5022 = vsel %vm2452, %v4997, %v5005
        %v5023 = vsel %vm2452, %v4999, %v5007
        %v5024 = vsel %vm2452, %v4985, %v4993
        %v5025 = vsel %vm2452, %v4987, %v4995
        %v5026 = vsel %vm2452, %v4989, %v4997
        %v5027 = vsel %vm2452, %v4991, %v4999
        %v5028 = vsel %vm2452, %v5009, %v4985
        %v5029 = vsel %vm2452, %v5011, %v4987
        %v5030 = vsel %vm2452, %v5013, %v4989
        %v5031 = vsel %vm2452, %v5015, %v4991
        %v5032 = vmul.f32 %v5024, %v3958
        %v5033 = vmul.f32 %v5020, %v3962
        %v5034 = vmul.f32 %v5016, %v3966
        %v5035 = vmul.f32 %v5028, %v3970
        %v5036 = vmul.f32 %v5025, %v3958
        %v5037 = vmul.f32 %v5021, %v3962
        %v5038 = vmul.f32 %v5017, %v3966
        %v5039 = vmul.f32 %v5029, %v3970
        %v5040 = vmul.f32 %v5026, %v3958
        %v5041 = vmul.f32 %v5022, %v3962
        %v5042 = vmul.f32 %v5018, %v3966
        %v5043 = vmul.f32 %v5030, %v3970
        %v5044 = vmul.f32 %v5027, %v3958
        %v5045 = vmul.f32 %v5023, %v3962
        %v5046 = vmul.f32 %v5019, %v3966
        %v5047 = vmul.f32 %v5031, %v3970
        %v5049 = vsel %vm3991, %v4526, 0
        %v5052 = vsel %vm3991, %v4529, 0
        %v5055 = vsel %vm3991, %v4532, 0
        %v5058 = vsel %vm3991, %v4535, 0
        %5060 = vmatprep.subr.mxu0 %v4789
        %5061 = vmatpush1.msra.mxu0 %v4788
        %5062 = vmatprep.subr.mxu0 %v4785
        %5063 = vmatpush1.msra.mxu0 %v4784
        %5064 = vmatprep.subr.mxu0 %v4781
        %5065 = vmatpush1.msra.mxu0 %v4780
        %5066 = vmatprep.subr.mxu0 %v4777
        %5067 = vmatpush1.msra.mxu0 %v4776
        %5068 = vmatprep.subr.mxu0 %v4725
        %5069 = vmatpush1.msra.mxu0 %v4724
        %5070 = vmatprep.subr.mxu0 %v4721
        %5071 = vmatpush1.msra.mxu0 %v4720
        %5072 = vmatprep.subr.mxu0 %v4717
        %5073 = vmatpush1.msra.mxu0 %v4716
        %5074 = vmatprep.subr.mxu0 %v4713
        %5075 = vmatpush1.msra.mxu0 %v4712
        %5076 = vmatprep.subr.mxu0 %v4661
        %5077 = vmatpush1.msra.mxu0 %v4660
        %5078 = vmatprep.subr.mxu0 %v4657
        %5079 = vmatpush1.msra.mxu0 %v4656
        %5080 = vmatprep.subr.mxu0 %v4653
        %5081 = vmatpush1.msra.mxu0 %v4652
        %5082 = vmatprep.subr.mxu0 %v4649
        %5083 = vmatpush1.msra.mxu0 %v4648
        %5084 = vmatprep.subr.mxu0 %v4597
        %5085 = vmatpush1.msra.mxu0 %v4596
        %5086 = vmatprep.subr.mxu0 %v4593
        %5087 = vmatpush1.msra.mxu0 %v4592
        %5088 = vmatprep.subr.mxu0 %v4589
        %5089 = vmatpush1.msra.mxu0 %v4588
        %5090 = vmatprep.subr.mxu0 %v4585
        %5091 = vmatpush1.msra.mxu0 %v4584
        %5092 = vmatprep.subr.mxu0 %v4981
        %5093 = vmatpush2.msra.mxu0 %v4980
        %5094 = vmatprep.subr.mxu0 %v4977
        %5095 = vmatpush2.msra.mxu0 %v4976
        %5096 = vmatprep.subr.mxu0 %v4973
        %5097 = vmatpush2.msra.mxu0 %v4972
        %5098 = vmatprep.subr.mxu0 %v4969
        %5099 = vmatpush2.msra.mxu0 %v4968
        %5100 = vmatprep.subr.mxu0 %v4917
        %5101 = vmatpush2.msra.mxu0 %v4916
        %5102 = vmatprep.subr.mxu0 %v4913
        %5103 = vmatpush2.msra.mxu0 %v4912
        %5104 = vmatprep.subr.mxu0 %v4909
        %5105 = vmatpush2.msra.mxu0 %v4908
        %5106 = vmatprep.subr.mxu0 %v4905
        %5107 = vmatpush2.msra.mxu0 %v4904
        %5108 = vmatprep.subr.mxu0 %v4853
        %5109 = vmatpush2.msra.mxu0 %v4852
        %5110 = vmatprep.subr.mxu0 %v4849
        %5111 = vmatpush2.msra.mxu0 %v4848
        %5112 = vmatprep.subr.mxu0 %v4845
        %5113 = vmatpush2.msra.mxu0 %v4844
        %5114 = vmatprep.subr.mxu0 %v4841
        %5115 = vmatpush2.msra.mxu0 %v4840
        %5116 = vmatprep.subr.mxu0 %v4521
        %5117 = vmatpush2.msra.mxu0 %v4520
        %5118 = vmatprep.subr.mxu0 %v4517
        %5119 = vmatpush2.msra.mxu0 %v4516
        %5120 = vmatprep.subr.mxu0 %v4513
        %5121 = vmatpush2.msra.mxu0 %v4512
        %5122 = vmatprep.subr.mxu0 %v4509
        %5123 = vmatpush2.msra.mxu0 %v4508
        %5124 = vmatprep.mubr.f32.mxu0 %v4525
        %5125 = vmatmul.mubr.f32.gmra.mxu0 %v4524
        %v5126 = vpop.f32.mrf.mxu0
        %v5127 = vadd.f32 %v4220, %v5126
        %v5128 = vpop.f32.mrf.mxu0
        %v5129 = vadd.f32 %v4222, %v5128
        %5130 = vmatprep.mubr.f32.mxu0 %v4528
        %5131 = vmatmul.mubr.f32.gmra.mxu0 %v4527
        %v5132 = vpop.f32.mrf.mxu0
        %v5133 = vadd.f32 %v4226, %v5132
        %v5134 = vpop.f32.mrf.mxu0
        %v5135 = vadd.f32 %v4228, %v5134
        %5136 = vmatprep.mubr.f32.mxu0 %v4531
        %5137 = vmatmul.mubr.f32.gmra.mxu0 %v4530
        %v5138 = vpop.f32.mrf.mxu0
        %v5139 = vadd.f32 %v4232, %v5138
        %v5140 = vpop.f32.mrf.mxu0
        %v5141 = vadd.f32 %v4234, %v5140
        %5142 = vmatprep.mubr.f32.mxu0 %v4534
        %5143 = vmatmul.mubr.f32.gmra.mxu0 %v4533
        %v5144 = vpop.f32.mrf.mxu0
        %v5145 = vadd.f32 %v4238, %v5144
        %v5146 = vpop.f32.mrf.mxu0
        %v5147 = vadd.f32 %v4240, %v5146
        %5148 = vdwg.mxu0
        %5149 = vmatprep.subr.mxu0 0.0
        %5150 = vmatpush1.msra.mxu0 0.0
        %5151 = vmatprep.subr.mxu0 0.0
        %5152 = vmatpush1.msra.mxu0 0.0
        %5153 = vmatprep.subr.mxu0 0.0
        %5154 = vmatpush1.msra.mxu0 0.0
        %5155 = vmatprep.subr.mxu0 0.0
        %5156 = vmatpush1.msra.mxu0 0.0
        %5157 = vmatprep.subr.mxu0 0.0
        %5158 = vmatpush1.msra.mxu0 0.0
        %5159 = vmatprep.subr.mxu0 0.0
        %5160 = vmatpush1.msra.mxu0 0.0
        %5161 = vmatprep.subr.mxu0 0.0
        %5162 = vmatpush1.msra.mxu0 0.0
        %5163 = vmatprep.subr.mxu0 0.0
        %5164 = vmatpush1.msra.mxu0 0.0
        %5165 = vmatprep.subr.mxu0 0.0
        %5166 = vmatpush1.msra.mxu0 0.0
        %5167 = vmatprep.subr.mxu0 0.0
        %5168 = vmatpush1.msra.mxu0 0.0
        %5169 = vmatprep.subr.mxu0 0.0
        %5170 = vmatpush1.msra.mxu0 0.0
        %5171 = vmatprep.subr.mxu0 0.0
        %5172 = vmatpush1.msra.mxu0 0.0
        %5173 = vmatprep.subr.mxu0 %v5045
        %5174 = vmatpush1.msra.mxu0 %v5044
        %5175 = vmatprep.subr.mxu0 %v5041
        %5176 = vmatpush1.msra.mxu0 %v5040
        %5177 = vmatprep.subr.mxu0 %v5037
        %5178 = vmatpush1.msra.mxu0 %v5036
        %5179 = vmatprep.subr.mxu0 %v5033
        %5180 = vmatpush1.msra.mxu0 %v5032
        %5181 = vmatprep.subr.mxu0 0.0
        %5182 = vmatpush2.msra.mxu0 0.0
        %5183 = vmatprep.subr.mxu0 0.0
        %5184 = vmatpush2.msra.mxu0 0.0
        %5185 = vmatprep.subr.mxu0 0.0
        %5186 = vmatpush2.msra.mxu0 0.0
        %5187 = vmatprep.subr.mxu0 0.0
        %5188 = vmatpush2.msra.mxu0 0.0
        %5189 = vmatprep.subr.mxu0 0.0
        %5190 = vmatpush2.msra.mxu0 0.0
        %5191 = vmatprep.subr.mxu0 0.0
        %5192 = vmatpush2.msra.mxu0 0.0
        %5193 = vmatprep.subr.mxu0 0.0
        %5194 = vmatpush2.msra.mxu0 0.0
        %5195 = vmatprep.subr.mxu0 0.0
        %5196 = vmatpush2.msra.mxu0 0.0
        %5197 = vmatprep.subr.mxu0 0.0
        %5198 = vmatpush2.msra.mxu0 0.0
        %5199 = vmatprep.subr.mxu0 0.0
        %5200 = vmatpush2.msra.mxu0 0.0
        %5201 = vmatprep.subr.mxu0 0.0
        %5202 = vmatpush2.msra.mxu0 0.0
        %5203 = vmatprep.subr.mxu0 0.0
        %5204 = vmatpush2.msra.mxu0 0.0
        %5205 = vmatprep.subr.mxu0 0.0
        %5206 = vmatpush2.msra.mxu0 0.0
        %5207 = vmatprep.subr.mxu0 0.0
        %5208 = vmatpush2.msra.mxu0 0.0
        %5209 = vmatprep.subr.mxu0 0.0
        %5210 = vmatpush2.msra.mxu0 0.0
        %5211 = vmatprep.subr.mxu0 0.0
        %5212 = vmatpush2.msra.mxu0 0.0
        %5213 = vmatprep.mubr.f32.mxu0 0.0
        %5214 = vmatmul.mubr.f32.gmra.mxu0 %v5049
        %v5215 = vpop.f32.mrf.mxu0
        %v5216 = vadd.f32 %v5127, %v5215
        %v5217 = vpop.f32.mrf.mxu0
        %v5218 = vadd.f32 %v5129, %v5217
        %5219 = vmatprep.mubr.f32.mxu0 0.0
        %5220 = vmatmul.mubr.f32.gmra.mxu0 %v5052
        %v5221 = vpop.f32.mrf.mxu0
        %v5222 = vadd.f32 %v5133, %v5221
        %v5223 = vpop.f32.mrf.mxu0
        %v5224 = vadd.f32 %v5135, %v5223
        %5225 = vmatprep.mubr.f32.mxu0 0.0
        %5226 = vmatmul.mubr.f32.gmra.mxu0 %v5055
        %v5227 = vpop.f32.mrf.mxu0
        %v5228 = vadd.f32 %v5139, %v5227
        %v5229 = vpop.f32.mrf.mxu0
        %v5230 = vadd.f32 %v5141, %v5229
        %5231 = vmatprep.mubr.f32.mxu0 0.0
        %5232 = vmatmul.mubr.f32.gmra.mxu0 %v5058
        %v5233 = vpop.f32.mrf.mxu0
        %v5234 = vadd.f32 %v5145, %v5233
        %v5235 = vpop.f32.mrf.mxu0
        %v5236 = vadd.f32 %v5147, %v5235
        %5237 = vdwg.mxu0
        %5238 = vmatprep.subr.mxu0 %v4791
        %5239 = vmatpush1.msra.mxu0 %v4790
        %5240 = vmatprep.subr.mxu0 %v4787
        %5241 = vmatpush1.msra.mxu0 %v4786
        %5242 = vmatprep.subr.mxu0 %v4783
        %5243 = vmatpush1.msra.mxu0 %v4782
        %5244 = vmatprep.subr.mxu0 %v4779
        %5245 = vmatpush1.msra.mxu0 %v4778
        %5246 = vmatprep.subr.mxu0 %v4727
        %5247 = vmatpush1.msra.mxu0 %v4726
        %5248 = vmatprep.subr.mxu0 %v4723
        %5249 = vmatpush1.msra.mxu0 %v4722
        %5250 = vmatprep.subr.mxu0 %v4719
        %5251 = vmatpush1.msra.mxu0 %v4718
        %5252 = vmatprep.subr.mxu0 %v4715
        %5253 = vmatpush1.msra.mxu0 %v4714
        %5254 = vmatprep.subr.mxu0 %v4663
        %5255 = vmatpush1.msra.mxu0 %v4662
        %5256 = vmatprep.subr.mxu0 %v4659
        %5257 = vmatpush1.msra.mxu0 %v4658
        %5258 = vmatprep.subr.mxu0 %v4655
        %5259 = vmatpush1.msra.mxu0 %v4654
        %5260 = vmatprep.subr.mxu0 %v4651
        %5261 = vmatpush1.msra.mxu0 %v4650
        %5262 = vmatprep.subr.mxu0 %v4599
        %5263 = vmatpush1.msra.mxu0 %v4598
        %5264 = vmatprep.subr.mxu0 %v4595
        %5265 = vmatpush1.msra.mxu0 %v4594
        %5266 = vmatprep.subr.mxu0 %v4591
        %5267 = vmatpush1.msra.mxu0 %v4590
        %5268 = vmatprep.subr.mxu0 %v4587
        %5269 = vmatpush1.msra.mxu0 %v4586
        %5270 = vmatprep.subr.mxu0 %v4983
        %5271 = vmatpush2.msra.mxu0 %v4982
        %5272 = vmatprep.subr.mxu0 %v4979
        %5273 = vmatpush2.msra.mxu0 %v4978
        %5274 = vmatprep.subr.mxu0 %v4975
        %5275 = vmatpush2.msra.mxu0 %v4974
        %5276 = vmatprep.subr.mxu0 %v4971
        %5277 = vmatpush2.msra.mxu0 %v4970
        %5278 = vmatprep.subr.mxu0 %v4919
        %5279 = vmatpush2.msra.mxu0 %v4918
        %5280 = vmatprep.subr.mxu0 %v4915
        %5281 = vmatpush2.msra.mxu0 %v4914
        %5282 = vmatprep.subr.mxu0 %v4911
        %5283 = vmatpush2.msra.mxu0 %v4910
        %5284 = vmatprep.subr.mxu0 %v4907
        %5285 = vmatpush2.msra.mxu0 %v4906
        %5286 = vmatprep.subr.mxu0 %v4855
        %5287 = vmatpush2.msra.mxu0 %v4854
        %5288 = vmatprep.subr.mxu0 %v4851
        %5289 = vmatpush2.msra.mxu0 %v4850
        %5290 = vmatprep.subr.mxu0 %v4847
        %5291 = vmatpush2.msra.mxu0 %v4846
        %5292 = vmatprep.subr.mxu0 %v4843
        %5293 = vmatpush2.msra.mxu0 %v4842
        %5294 = vmatprep.subr.mxu0 %v4523
        %5295 = vmatpush2.msra.mxu0 %v4522
        %5296 = vmatprep.subr.mxu0 %v4519
        %5297 = vmatpush2.msra.mxu0 %v4518
        %5298 = vmatprep.subr.mxu0 %v4515
        %5299 = vmatpush2.msra.mxu0 %v4514
        %5300 = vmatprep.subr.mxu0 %v4511
        %5301 = vmatpush2.msra.mxu0 %v4510
        %5302 = vmatprep.mubr.f32.mxu0 %v4525
        %5303 = vmatmul.mubr.f32.gmra.mxu0 %v4524
        %v5304 = vpop.f32.mrf.mxu0
        %v5305 = vadd.f32 %v4446, %v5304
        %v5306 = vpop.f32.mrf.mxu0
        %v5307 = vadd.f32 %v4448, %v5306
        %5308 = vmatprep.mubr.f32.mxu0 %v4528
        %5309 = vmatmul.mubr.f32.gmra.mxu0 %v4527
        %v5310 = vpop.f32.mrf.mxu0
        %v5311 = vadd.f32 %v4452, %v5310
        %v5312 = vpop.f32.mrf.mxu0
        %v5313 = vadd.f32 %v4454, %v5312
        %5314 = vmatprep.mubr.f32.mxu0 %v4531
        %5315 = vmatmul.mubr.f32.gmra.mxu0 %v4530
        %v5316 = vpop.f32.mrf.mxu0
        %v5317 = vadd.f32 %v4458, %v5316
        %v5318 = vpop.f32.mrf.mxu0
        %v5319 = vadd.f32 %v4460, %v5318
        %5320 = vmatprep.mubr.f32.mxu0 %v4534
        %5321 = vmatmul.mubr.f32.gmra.mxu0 %v4533
        %v5322 = vpop.f32.mrf.mxu0
        %v5323 = vadd.f32 %v4464, %v5322
        %v5324 = vpop.f32.mrf.mxu0
        %v5325 = vadd.f32 %v4466, %v5324
        %5326 = vdwg.mxu0
        %5327 = vmatprep.subr.mxu0 0.0
        %5328 = vmatpush1.msra.mxu0 0.0
        %5329 = vmatprep.subr.mxu0 0.0
        %5330 = vmatpush1.msra.mxu0 0.0
        %5331 = vmatprep.subr.mxu0 0.0
        %5332 = vmatpush1.msra.mxu0 0.0
        %5333 = vmatprep.subr.mxu0 0.0
        %5334 = vmatpush1.msra.mxu0 0.0
        %5335 = vmatprep.subr.mxu0 0.0
        %5336 = vmatpush1.msra.mxu0 0.0
        %5337 = vmatprep.subr.mxu0 0.0
        %5338 = vmatpush1.msra.mxu0 0.0
        %5339 = vmatprep.subr.mxu0 0.0
        %5340 = vmatpush1.msra.mxu0 0.0
        %5341 = vmatprep.subr.mxu0 0.0
        %5342 = vmatpush1.msra.mxu0 0.0
        %5343 = vmatprep.subr.mxu0 0.0
        %5344 = vmatpush1.msra.mxu0 0.0
        %5345 = vmatprep.subr.mxu0 0.0
        %5346 = vmatpush1.msra.mxu0 0.0
        %5347 = vmatprep.subr.mxu0 0.0
        %5348 = vmatpush1.msra.mxu0 0.0
        %5349 = vmatprep.subr.mxu0 0.0
        %5350 = vmatpush1.msra.mxu0 0.0
        %5351 = vmatprep.subr.mxu0 %v5047
        %5352 = vmatpush1.msra.mxu0 %v5046
        %5353 = vmatprep.subr.mxu0 %v5043
        %5354 = vmatpush1.msra.mxu0 %v5042
        %5355 = vmatprep.subr.mxu0 %v5039
        %5356 = vmatpush1.msra.mxu0 %v5038
        %5357 = vmatprep.subr.mxu0 %v5035
        %5358 = vmatpush1.msra.mxu0 %v5034
        %5359 = vmatprep.subr.mxu0 0.0
        %5360 = vmatpush2.msra.mxu0 0.0
        %5361 = vmatprep.subr.mxu0 0.0
        %5362 = vmatpush2.msra.mxu0 0.0
        %5363 = vmatprep.subr.mxu0 0.0
        %5364 = vmatpush2.msra.mxu0 0.0
        %5365 = vmatprep.subr.mxu0 0.0
        %5366 = vmatpush2.msra.mxu0 0.0
        %5367 = vmatprep.subr.mxu0 0.0
        %5368 = vmatpush2.msra.mxu0 0.0
        %5369 = vmatprep.subr.mxu0 0.0
        %5370 = vmatpush2.msra.mxu0 0.0
        %5371 = vmatprep.subr.mxu0 0.0
        %5372 = vmatpush2.msra.mxu0 0.0
        %5373 = vmatprep.subr.mxu0 0.0
        %5374 = vmatpush2.msra.mxu0 0.0
        %5375 = vmatprep.subr.mxu0 0.0
        %5376 = vmatpush2.msra.mxu0 0.0
        %5377 = vmatprep.subr.mxu0 0.0
        %5378 = vmatpush2.msra.mxu0 0.0
        %5379 = vmatprep.subr.mxu0 0.0
        %5380 = vmatpush2.msra.mxu0 0.0
        %5381 = vmatprep.subr.mxu0 0.0
        %5382 = vmatpush2.msra.mxu0 0.0
        %5383 = vmatprep.subr.mxu0 0.0
        %5384 = vmatpush2.msra.mxu0 0.0
        %5385 = vmatprep.subr.mxu0 0.0
        %5386 = vmatpush2.msra.mxu0 0.0
        %5387 = vmatprep.subr.mxu0 0.0
        %5388 = vmatpush2.msra.mxu0 0.0
        %5389 = vmatprep.subr.mxu0 0.0
        %5390 = vmatpush2.msra.mxu0 0.0
        %5391 = vmatprep.mubr.f32.mxu0 0.0
        %5392 = vmatmul.mubr.f32.gmra.mxu0 %v5049
        %v5393 = vpop.f32.mrf.mxu0
        %v5394 = vadd.f32 %v5305, %v5393
        %v5395 = vpop.f32.mrf.mxu0
        %v5396 = vadd.f32 %v5307, %v5395
        %5397 = vmatprep.mubr.f32.mxu0 0.0
        %5398 = vmatmul.mubr.f32.gmra.mxu0 %v5052
        %v5399 = vpop.f32.mrf.mxu0
        %v5400 = vadd.f32 %v5311, %v5399
        %v5401 = vpop.f32.mrf.mxu0
        %v5402 = vadd.f32 %v5313, %v5401
        %5403 = vmatprep.mubr.f32.mxu0 0.0
        %5404 = vmatmul.mubr.f32.gmra.mxu0 %v5055
        %v5405 = vpop.f32.mrf.mxu0
        %v5406 = vadd.f32 %v5317, %v5405
        %v5407 = vpop.f32.mrf.mxu0
        %v5408 = vadd.f32 %v5319, %v5407
        %5409 = vmatprep.mubr.f32.mxu0 0.0
        %5410 = vmatmul.mubr.f32.gmra.mxu0 %v5058
        %v5411 = vpop.f32.mrf.mxu0
        %v5412 = vadd.f32 %v5323, %v5411
        %v5413 = vpop.f32.mrf.mxu0
        %v5414 = vadd.f32 %v5325, %v5413
        %5415 = vdwg.mxu0
        %5416 = vset.pattern.permute.xlu0 1
        %5417 = vperm.xlu0 %5416, %v4468
        %v5418 = vpop.permute.xlu0 %5417
        %5420 = vset.pattern.permute.xlu0 1
        %5421 = vperm.xlu0 %5420, %v4469
        %v5422 = vpop.permute.xlu0 %5421
        %5424 = vset.pattern.permute.xlu0 1
        %5425 = vperm.xlu0 %5424, %v4470
        %v5426 = vpop.permute.xlu0 %5425
        %5428 = vset.pattern.permute.xlu0 1
        %5429 = vperm.xlu0 %5428, %v4471
        %v5430 = vpop.permute.xlu0 %5429
        %v5432 = vadd.f32 %v5216, %v5418
        %v5433 = vadd.f32 %v5218, %v5418
        %v5434 = vadd.f32 %v5394, %v5418
        %v5435 = vadd.f32 %v5396, %v5418
        %v5436 = vadd.f32 %v5222, %v5422
        %v5437 = vadd.f32 %v5224, %v5422
        %v5438 = vadd.f32 %v5400, %v5422
        %v5439 = vadd.f32 %v5402, %v5422
        %v5440 = vadd.f32 %v5228, %v5426
        %v5441 = vadd.f32 %v5230, %v5426
        %v5442 = vadd.f32 %v5406, %v5426
        %v5443 = vadd.f32 %v5408, %v5426
        %v5444 = vadd.f32 %v5234, %v5430
        %v5445 = vadd.f32 %v5236, %v5430
        %v5446 = vadd.f32 %v5412, %v5430
        %v5447 = vadd.f32 %v5414, %v5430
        %v5448 = vmax.f32 %v5432, 0.0
        %v5449 = vmax.f32 %v5433, 0.0
        %v5450 = vmax.f32 %v5434, 0.0
        %v5451 = vmax.f32 %v5435, 0.0
        %v5452 = vmax.f32 %v5436, 0.0
        %v5453 = vmax.f32 %v5437, 0.0
        %v5454 = vmax.f32 %v5438, 0.0
        %v5455 = vmax.f32 %v5439, 0.0
        %v5456 = vmax.f32 %v5440, 0.0
        %v5457 = vmax.f32 %v5441, 0.0
        %v5458 = vmax.f32 %v5442, 0.0
        %v5459 = vmax.f32 %v5443, 0.0
        %v5460 = vmax.f32 %v5444, 0.0
        %v5461 = vmax.f32 %v5445, 0.0
        %v5462 = vmax.f32 %v5446, 0.0
        %v5463 = vmax.f32 %v5447, 0.0
        %5464 = vst [vmem:[%s367] sm:$0xff] %v5448
        %5465 = vst [vmem:[%s367 + $0x8] sm:$0xff] %v5449
        %5466 = vst [vmem:[%s367 + $0x10] sm:$0xff] %v5450
        %5467 = vst [vmem:[%s367 + $0x18] sm:$0xff] %v5451
        %5468 = vst [vmem:[%s367 + $0x20] sm:$0xff] %v5452
        %5469 = vst [vmem:[%s367 + $0x28] sm:$0xff] %v5453
        %5470 = vst [vmem:[%s367 + $0x30] sm:$0xff] %v5454
        %5471 = vst [vmem:[%s367 + $0x38] sm:$0xff] %v5455
        %5472 = vst [vmem:[%s367 + $0x40] sm:$0xff] %v5456
        %5473 = vst [vmem:[%s367 + $0x48] sm:$0xff] %v5457
        %5474 = vst [vmem:[%s367 + $0x50] sm:$0xff] %v5458
        %5475 = vst [vmem:[%s367 + $0x58] sm:$0xff] %v5459
        %5476 = vst [vmem:[%s367 + $0x60] sm:$0xff] %v5460
        %5477 = vst [vmem:[%s367 + $0x68] sm:$0xff] %v5461
        %5478 = vst [vmem:[%s367 + $0x70] sm:$0xff] %v5462
        %5479 = vst [vmem:[%s367 + $0x78] sm:$0xff] %v5463
        %s5480 = sand.u32 %s191, 1
        %s5481 = scalar_lea.sflag [#allocation5], %s5480
        %s5482 = sand.u32 %s191, 1
        %s5483 = smul.addr %s5482, 128
        %s5484 = scalar_lea.vmem [#allocation12], %s5483
        // Predicated region
        $region69: #{tpu_custom_call.1} parent=47 // pred_check
          %p5485 = pneg %p201
        $region70: #{tpu_custom_call.1} parent=47 // pred_check_branch
          %5487 = sbr.rel (%p5485) target = $region72
        $region71: #{tpu_custom_call.1} parent=47 // pred_region
          %s5489 = ssub.s32 2048, 2048
          %5490 = vsyncadd %s5481, %s5489
          %s5491 = smul.addr %s26, 16
          %s5492 = smul.addr %s5491, 128
          %s5493 = scalar_lea.hbm %s7, %s5492
          %s5494 = sshll.u32 %s5484, 4
          %s5495 = int_to_ptr.vmem [resolvable:$true] %s5494
          %5500 = dma.vmem_to_hbm [thread:$0]  %s5495, 2048, %s5493, %s5481, 512, 512, 32
        $region72: #{tpu_custom_call.1} parent=47 // pred_fallthru
          _
      $region48: #{tpu_custom_call.1} parent=5 // pred_fallthru
        _
      %p5501 = scmp.le.s32.totalorder 2, %s21
      // Predicated region
      $region73: #{tpu_custom_call.1} parent=5 // pred_check
        %p5502 = pneg %p5501
      $region74: #{tpu_custom_call.1} parent=5 // pred_check_branch
        %5504 = sbr.rel (%p5502) target = $region76
      $region75: #{tpu_custom_call.1} parent=5 // pred_region
        %s5505 = ssub.s32 %s21, 2
        // Predicated region
        $region77: #{tpu_custom_call.1} parent=75 // pred_check
          %p5506 = pneg %p207
        $region78: #{tpu_custom_call.1} parent=75 // pred_check_branch
          %5508 = sbr.rel (%p5506) target = $region80
        $region79: #{tpu_custom_call.1} parent=75 // pred_region
          %s5509 = sand.u32 %s192, 1
          %s5510 = scalar_lea.sflag [#allocation5], %s5509
          %s5511 = sand.u32 %s192, 1
          %s5512 = smul.addr %s5511, 128
          %s5513 = scalar_lea.vmem [#allocation12], %s5512
          %5514 = dma.done %s5510, 2048
        $region80: #{tpu_custom_call.1} parent=75 // pred_fallthru
          _
      $region76: #{tpu_custom_call.1} parent=5 // pred_fallthru
        _
    $region6: #{tpu_custom_call.1} parent=1 // loop_footer
      %s25 = sadd.s32 1, %s21
    $region7: #{tpu_custom_call.1} parent=1 // loop_footer_branch
      %20 = sbr.rel target = $region3
    $region8: #{tpu_custom_call.1} parent=1 // loop_exit
      _
    %5515 = vsyncpa [#allocation4], 1
    %s5516 = scalar_lea.sflag [#allocation4], 1
    %5517 = vsyncpa %s5516, 1
    %5518 = vsyncpa [#allocation7], 1
    %5519 = vsyncpa [#allocation10], 1
    %5520 = vsyncpa [#allocation5], 1
    %s5521 = scalar_lea.sflag [#allocation5], 1
    %5522 = vsyncpa %s5521, 1

</llo_original>
